<compile_context>
chip_gen: v7x
topology: tpu7x:2x2x1
jax: 0.10.0
libtpu: 0.0.40
codegen_flags: <defaults>
</compile_context>

<pallas_src>
import functools
import math

import numpy as np

import jax
import jax.numpy as jnp
from jax.experimental import pallas as pl
from jax.experimental.pallas import tpu as pltpu  # noqa: F401  (TPU backend)


def _round_up(x, m):
    return (x + m - 1) // m * m


def _full_spec(shape):
    # Whole-array block, grid-less call.
    return pl.BlockSpec(tuple(shape), lambda *_: (0,) * len(shape))


# Kernel argument order (after the activation input x).
_KERNEL_ARG_ORDER = (
    "g1", "g2", "g3", "g4",          # (4, B*OHl*OWl, B*Hl*Wl) bf16 0/1 tap gathers
    "wc1", "wc2", "wc3", "wc4",      # (4, Cin_pad, Cout)      bf16 conv tap weights
    "bc1", "bc2", "bc3", "bc4",      # (1, Cout)               f32 conv biases
    "sfc", "wfc", "bfc",             # flatten selection + fc weight/bias
    "wh1", "bh1",                    # pol1|val1 fused hidden head
    "wh2", "bh2",                    # blockdiag(pol2, val2) fused output head
)


# ----------------------------------------------------------------------------
# The single fused forward kernel.  Everything stays in VMEM.
# ----------------------------------------------------------------------------
def _fused_forward_kernel(
    x_ref,                                    # (B*H0*W0, C0_pad) bf16, NHWC rows
    g1_ref, g2_ref, g3_ref, g4_ref,
    wc1_ref, wc2_ref, wc3_ref, wc4_ref,
    bc1_ref, bc2_ref, bc3_ref, bc4_ref,
    sfc_ref, wfc_ref, bfc_ref,
    wh1_ref, bh1_ref, wh2_ref, bh2_ref,
    o_ref,                                    # (B, n2) f32, lane-dense
):
    bf16 = jnp.bfloat16
    f32 = jnp.float32

    def conv_relu(h, g_ref, w_ref, b_ref):
        # h: (rows_in, Cin) bf16  ->  (rows_out, Cout) bf16
        acc = b_ref[...]                      # (1, Cout) f32, broadcasts over rows
        for k in range(4):                    # static unroll over the 2x2 taps
            # Exact 0/1 row selection (padding rows -> zero), then tap GEMM.
            sel = jnp.dot(g_ref[k], h, preferred_element_type=f32).astype(bf16)
            acc = acc + jnp.dot(sel, w_ref[k], preferred_element_type=f32)
        return jnp.maximum(acc, 0.0).astype(bf16)

    h = x_ref[...]
    h = conv_relu(h, g1_ref, wc1_ref, bc1_ref)   # -> (B*81, 32)
    h = conv_relu(h, g2_ref, wc2_ref, bc2_ref)   # -> (B*25, 64)
    h = conv_relu(h, g3_ref, wc3_ref, bc3_ref)   # -> (B*9,  64)
    h = conv_relu(h, g4_ref, wc4_ref, bc4_ref)   # -> (B*4,  32)

    # Flatten (PyTorch NCHW semantics pre-baked into wfc) + fc, expressed as a
    # sum over the last conv's spatial positions -- avoids in-kernel reshapes.
    acc = bfc_ref[...]                           # (1, 128) f32
    for p in range(wfc_ref.shape[0]):
        rows = jnp.dot(sfc_ref[p], h, preferred_element_type=f32).astype(bf16)  # (B, C_last)
        acc = acc + jnp.dot(rows, wfc_ref[p], preferred_element_type=f32)
    hfc = jnp.maximum(acc, 0.0).astype(bf16)     # (B, 128)

    # Fused heads: [pol1|val1] then blockdiag(pol2, val2) -> lane-dense output.
    hh = jnp.dot(hfc, wh1_ref[...], preferred_element_type=f32) + bh1_ref[...]
    hh = jnp.maximum(hh, 0.0).astype(bf16)       # (B, 256)
    out = jnp.dot(hh, wh2_ref[...], preferred_element_type=f32) + bh2_ref[...]
    o_ref[...] = out.astype(o_ref.dtype)         # (B, n2): policy | value | zeros


# ----------------------------------------------------------------------------
# Forward wrapper: one small input-layout op (NCHW -> NHWC rows) + ONE kernel.
# ----------------------------------------------------------------------------
def policy_value_forward(packed, x, *, count_of_actions):
    n, c, hh, ww = x.shape
    c0pad = packed["wc1"].shape[1]
    n2 = packed["wh2"].shape[1]
    assert packed["g1"].shape[2] == n * hh * ww, (
        "packed params were built for a different batch / spatial size")

    # Single entry relayout on the raw input (no intermediate activations ever
    # leave VMEM after this point).
    xf = jnp.transpose(x, (0, 2, 3, 1)).reshape(n * hh * ww, c)
    xf = jnp.pad(xf, ((0, 0), (0, c0pad - c))).astype(jnp.bfloat16)

    args = [xf] + [packed[k] for k in _KERNEL_ARG_ORDER]
    out = pl.pallas_call(
        _fused_forward_kernel,
        out_shape=jax.ShapeDtypeStruct((n, n2), jnp.float32),
        in_specs=[_full_spec(a.shape) for a in args],
        out_specs=_full_spec((n, n2)),
    )(*args)

    policy = out[:, :count_of_actions]
    value = out[:, count_of_actions:count_of_actions + 1]
    return policy, value


# ----------------------------------------------------------------------------
# Parameters: synthetic PyTorch-layout init (orthogonal weights, zero biases).
# ----------------------------------------------------------------------------
def init_torch_params(key, count_of_actions, features_size):
    ks = jax.random.split(key, 9)
    gain = math.sqrt(2.0)

    def orth(k, shape, g):
        return jax.nn.initializers.orthogonal(scale=g)(k, shape, jnp.float32)

    conv_dims = [(21, 32), (32, 64), (64, 64), (64, 32)]
    convs = []
    for i, (cin, cout) in enumerate(conv_dims):
        w = orth(ks[i], (cout, cin * 4), gain).reshape(cout, cin, 2, 2)
        convs.append((w, jnp.zeros((cout,), jnp.float32)))

    return {
        "convs": convs,                                               # torch (Cout,Cin,2,2)
        "fc":   (orth(ks[4], (128, features_size), gain), jnp.zeros((128,), jnp.float32)),
        "pol1": (orth(ks[5], (128, 128), gain),           jnp.zeros((128,), jnp.float32)),
        "pol2": (orth(ks[6], (count_of_actions, 128), 0.01),
                 jnp.zeros((count_of_actions,), jnp.float32)),
        "val1": (orth(ks[7], (128, 128), gain),           jnp.zeros((128,), jnp.float32)),
        "val2": (orth(ks[8], (1, 128), 1.0),              jnp.zeros((1,), jnp.float32)),
    }


def _conv_taps_gather(h, w):
    """0/1 row-selection matrices for Conv2d(k=2, s=2, p=1) on an (h,w) image.

    g[k, oy*ow+ox, iy*w+ix] = 1 iff input pixel (iy,ix) is tap k of output
    (oy,ox); rows hitting the padding ring are all-zero (== zero padding).
    """
    oh, ow = h // 2 + 1, w // 2 + 1
    g = np.zeros((4, oh * ow, h * w), np.float32)
    for ky in range(2):
        for kx in range(2):
            k = ky * 2 + kx
            for oy in range(oh):
                iy = 2 * oy + ky - 1
                if not (0 <= iy < h):
                    continue
                for ox in range(ow):
                    ix = 2 * ox + kx - 1
                    if 0 <= ix < w:
                        g[k, oy * ow + ox, iy * w + ix] = 1.0
    return g, oh, ow


def pack_params(tp, *, batch, in_hw):
    """One-time repack of PyTorch-layout params into fused-kernel layouts."""
    f32, bf16 = jnp.float32, jnp.bfloat16
    h, w = in_hw
    packed = {}

    for li, (wt, bt) in enumerate(tp["convs"], start=1):
        cout, cin, kh, kw = wt.shape
        assert (kh, kw) == (2, 2)
        g, oh, ow = _conv_taps_gather(h, w)
        # Block-diagonal over the (small) batch so the kernel is one 2-D GEMM.
        gb = np.stack([np.kron(np.eye(batch, dtype=np.float32), g[k])
                       for k in range(4)])                 # (4, B*oh*ow, B*h*w)
        packed[f"g{li}"] = jnp.asarray(gb, dtype=bf16)

        cinpad = _round_up(cin, 8)
        wt_np = np.asarray(wt, np.float32)
        wk = np.zeros((4, cinpad, cout), np.float32)
        for ky in range(2):
            for kx in range(2):
                wk[ky * 2 + kx, :cin, :] = wt_np[:, :, ky, kx].T
        packed[f"wc{li}"] = jnp.asarray(wk, dtype=bf16)
        packed[f"bc{li}"] = jnp.asarray(np.asarray(bt, np.float32).reshape(1, cout))
        h, w = oh, ow

    c_last = tp["convs"][-1][0].shape[0]
    p_last = h * w                                          # spatial positions after conv4

    # Per-spatial-position batch selection for the flatten+fc (rows are
    # batch-major: row b*p_last + p).
    sfc = np.zeros((p_last, batch, batch * p_last), np.float32)
    for p in range(p_last):
        for b in range(batch):
            sfc[p, b, b * p_last + p] = 1.0
    packed["sfc"] = jnp.asarray(sfc, dtype=bf16)

    # fc: torch weight (128, F) with F flattened in (c, y, x) order; our rows
    # are spatial positions p with channel columns, so slice per p.
    wfc_t, bfc = tp["fc"]
    fdim = wfc_t.shape[1]
    assert fdim == c_last * p_last, "features_size inconsistent with conv stack"
    wfull = np.asarray(wfc_t, np.float32).T                 # (F, 128), torch (c,y,x) order
    wfc = wfull.reshape(c_last, p_last, wfull.shape[1]).transpose(1, 0, 2)  # (P, C_last, 128)
    packed["wfc"] = jnp.asarray(wfc, dtype=bf16)
    packed["bfc"] = jnp.asarray(np.asarray(bfc, np.float32).reshape(1, -1))

    # Hidden heads: pol1 | val1 concatenated along the output axis.
    (wp1, bp1), (wv1, bv1) = tp["pol1"], tp["val1"]
    wh1 = jnp.concatenate([wp1.T, wv1.T], axis=1).astype(bf16)        # (128, 256)
    bh1 = jnp.concatenate([bp1, bv1]).reshape(1, -1).astype(f32)      # (1, 256)
    packed["wh1"], packed["bh1"] = wh1, bh1

    # Output heads: block-diagonal [pol2; val2], padded to a lane-dense slab.
    (wp2, bp2), (wv2, bv2) = tp["pol2"], tp["val2"]
    a = wp2.shape[0]
    n2 = _round_up(a + 1, 128)
    wh2 = np.zeros((wh1.shape[1], n2), np.float32)
    wh2[:wp1.shape[0], :a] = np.asarray(wp2, np.float32).T
    wh2[wp1.shape[0]:, a] = np.asarray(wv2, np.float32).reshape(-1)
    bh2 = np.zeros((1, n2), np.float32)
    bh2[0, :a] = np.asarray(bp2, np.float32)
    bh2[0, a] = np.asarray(bv2, np.float32)[0]
    packed["wh2"] = jnp.asarray(wh2, dtype=bf16)
    packed["bh2"] = jnp.asarray(bh2, dtype=f32)

    return packed


# ----------------------------------------------------------------------------
# Pure-JAX reference with exact PyTorch layer semantics (NCHW conv, separate
# heads) at the same bf16 rounding points -- numerics sanity check.
# ----------------------------------------------------------------------------
def reference_forward(tp, x):
    bf16 = jnp.bfloat16

    def conv(h, w, b):
        y = jax.lax.conv_general_dilated(
            h.astype(bf16), w.astype(bf16), window_strides=(2, 2),
            padding=((1, 1), (1, 1)),
            dimension_numbers=("NCHW", "OIHW", "NCHW"),
            preferred_element_type=jnp.float32)
        return jax.nn.relu(y + b.reshape(1, -1, 1, 1))

    def lin(h, w, b, relu):
        y = jnp.dot(h.astype(bf16), w.T.astype(bf16),
                    preferred_element_type=jnp.float32) + b
        return jax.nn.relu(y) if relu else y

    h = x
    for (w, b) in tp["convs"]:
        h = conv(h, w, b)
    h = h.reshape(h.shape[0], -1)                       # PyTorch NCHW flatten
    h = lin(h, *tp["fc"], True)
    p = lin(lin(h, *tp["pol1"], True), *tp["pol2"], False)
    v = lin(lin(h, *tp["val1"], True), *tp["val2"], False)
    return p, v


if __name__ == "__main__":
    # Shapes consistent with the module:
    #   input (N=2, C=21, H=16, W=16); spatial trace 16 -> 9 -> 5 -> 3 -> 2
    #   => features_size = 32 * 2 * 2 = 128
    batch = 2
    count_of_actions = 8
    features_size = 32 * 2 * 2

    key = jax.random.PRNGKey(0)
    k_params, k_x = jax.random.split(key)
    torch_params = init_torch_params(k_params, count_of_actions, features_size)
    packed = pack_params(torch_params, batch=batch, in_hw=(16, 16))
    x = jax.random.normal(k_x, (batch, 21, 16, 16), dtype=jnp.float32)

    fwd = jax.jit(functools.partial(policy_value_forward,
                                    count_of_actions=count_of_actions))
    policy_logits, value = fwd(packed, x)
    jax.block_until_ready((policy_logits, value))

    assert policy_logits.shape == (batch, count_of_actions)
    assert value.shape == (batch, 1)

    # Numerics sanity check against the PyTorch-semantics reference.
    ref_p, ref_v = jax.jit(reference_forward)(torch_params, x)
    jax.block_until_ready((ref_p, ref_v))
    np.testing.assert_allclose(np.asarray(policy_logits), np.asarray(ref_p),
                               rtol=2e-2, atol=2e-2)
    np.testing.assert_allclose(np.asarray(value), np.asarray(ref_v),
                               rtol=2e-2, atol=2e-2)
    print("KERNEL_OK")
</pallas_src>

<mosaic_0001>
module attributes {stable_mosaic.version = 11 : i64} {
  func.func @_fused_forward_kernel(%arg0: memref<512x24xbf16, #tpu.memory_space<vmem>>, %arg1: memref<4x162x512xbf16, #tpu.memory_space<vmem>>, %arg2: memref<4x50x162xbf16, #tpu.memory_space<vmem>>, %arg3: memref<4x18x50xbf16, #tpu.memory_space<vmem>>, %arg4: memref<4x8x18xbf16, #tpu.memory_space<vmem>>, %arg5: memref<4x24x32xbf16, #tpu.memory_space<vmem>>, %arg6: memref<4x32x64xbf16, #tpu.memory_space<vmem>>, %arg7: memref<4x64x64xbf16, #tpu.memory_space<vmem>>, %arg8: memref<4x64x32xbf16, #tpu.memory_space<vmem>>, %arg9: memref<1x32xf32, #tpu.memory_space<vmem>>, %arg10: memref<1x64xf32, #tpu.memory_space<vmem>>, %arg11: memref<1x64xf32, #tpu.memory_space<vmem>>, %arg12: memref<1x32xf32, #tpu.memory_space<vmem>>, %arg13: memref<4x2x8xbf16, #tpu.memory_space<vmem>>, %arg14: memref<4x32x128xbf16, #tpu.memory_space<vmem>>, %arg15: memref<1x128xf32, #tpu.memory_space<vmem>>, %arg16: memref<128x256xbf16, #tpu.memory_space<vmem>>, %arg17: memref<1x256xf32, #tpu.memory_space<vmem>>, %arg18: memref<256x128xbf16, #tpu.memory_space<vmem>>, %arg19: memref<1x128xf32, #tpu.memory_space<vmem>>, %arg20: memref<2x128xf32, #tpu.memory_space<vmem>>) attributes {dimension_semantics = [], scalar_prefetch = 0 : i64, scratch_operands = 0 : i64, tpu.core_type = #tpu.core_type<tc>} {
    %c0 = arith.constant 0 : index
    %c0_0 = arith.constant 0 : index
    %0 = vector.load %arg0[%c0, %c0_0] : memref<512x24xbf16, #tpu.memory_space<vmem>>, vector<512x24xbf16>
    %c0_1 = arith.constant 0 : index
    %c0_2 = arith.constant 0 : index
    %1 = vector.load %arg9[%c0_1, %c0_2] : memref<1x32xf32, #tpu.memory_space<vmem>>, vector<1x32xf32>
    %c0_3 = arith.constant 0 : index
    %c0_4 = arith.constant 0 : index
    %c0_5 = arith.constant 0 : index
    %2 = vector.load %arg1[%c0_3, %c0_4, %c0_5] : memref<4x162x512xbf16, #tpu.memory_space<vmem>>, vector<1x162x512xbf16>
    %3 = vector.shape_cast %2 : vector<1x162x512xbf16> to vector<162x512xbf16>
    %cst = arith.constant dense<0.000000e+00> : vector<162x24xf32>
    %4 = tpu.matmul %3, %0, %cst {dimension_numbers = #tpu.dot_dimension_numbers<[1], [0], [0], [1], [0, 0, 1, 1], [], []>} : vector<162x512xbf16>, vector<512x24xbf16>, vector<162x24xf32> -> vector<162x24xf32>
    %5 = arith.truncf %4 : vector<162x24xf32> to vector<162x24xbf16>
    %c0_6 = arith.constant 0 : index
    %c0_7 = arith.constant 0 : index
    %c0_8 = arith.constant 0 : index
    %6 = vector.load %arg5[%c0_6, %c0_7, %c0_8] : memref<4x24x32xbf16, #tpu.memory_space<vmem>>, vector<1x24x32xbf16>
    %7 = vector.shape_cast %6 : vector<1x24x32xbf16> to vector<24x32xbf16>
    %cst_9 = arith.constant dense<0.000000e+00> : vector<162x32xf32>
    %8 = tpu.matmul %5, %7, %cst_9 {dimension_numbers = #tpu.dot_dimension_numbers<[1], [0], [0], [1], [0, 0, 1, 1], [], []>} : vector<162x24xbf16>, vector<24x32xbf16>, vector<162x32xf32> -> vector<162x32xf32>
    %9 = vector.broadcast %1 : vector<1x32xf32> to vector<162x32xf32>
    %10 = arith.addf %9, %8 : vector<162x32xf32>
    %c1 = arith.constant 1 : index
    %c0_10 = arith.constant 0 : index
    %c0_11 = arith.constant 0 : index
    %11 = vector.load %arg1[%c1, %c0_10, %c0_11] : memref<4x162x512xbf16, #tpu.memory_space<vmem>>, vector<1x162x512xbf16>
    %12 = vector.shape_cast %11 : vector<1x162x512xbf16> to vector<162x512xbf16>
    %cst_12 = arith.constant dense<0.000000e+00> : vector<162x24xf32>
    %13 = tpu.matmul %12, %0, %cst_12 {dimension_numbers = #tpu.dot_dimension_numbers<[1], [0], [0], [1], [0, 0, 1, 1], [], []>} : vector<162x512xbf16>, vector<512x24xbf16>, vector<162x24xf32> -> vector<162x24xf32>
    %14 = arith.truncf %13 : vector<162x24xf32> to vector<162x24xbf16>
    %c1_13 = arith.constant 1 : index
    %c0_14 = arith.constant 0 : index
    %c0_15 = arith.constant 0 : index
    %15 = vector.load %arg5[%c1_13, %c0_14, %c0_15] : memref<4x24x32xbf16, #tpu.memory_space<vmem>>, vector<1x24x32xbf16>
    %16 = vector.shape_cast %15 : vector<1x24x32xbf16> to vector<24x32xbf16>
    %cst_16 = arith.constant dense<0.000000e+00> : vector<162x32xf32>
    %17 = tpu.matmul %14, %16, %cst_16 {dimension_numbers = #tpu.dot_dimension_numbers<[1], [0], [0], [1], [0, 0, 1, 1], [], []>} : vector<162x24xbf16>, vector<24x32xbf16>, vector<162x32xf32> -> vector<162x32xf32>
    %18 = arith.addf %10, %17 : vector<162x32xf32>
    %c2 = arith.constant 2 : index
    %c0_17 = arith.constant 0 : index
    %c0_18 = arith.constant 0 : index
    %19 = vector.load %arg1[%c2, %c0_17, %c0_18] : memref<4x162x512xbf16, #tpu.memory_space<vmem>>, vector<1x162x512xbf16>
    %20 = vector.shape_cast %19 : vector<1x162x512xbf16> to vector<162x512xbf16>
    %cst_19 = arith.constant dense<0.000000e+00> : vector<162x24xf32>
    %21 = tpu.matmul %20, %0, %cst_19 {dimension_numbers = #tpu.dot_dimension_numbers<[1], [0], [0], [1], [0, 0, 1, 1], [], []>} : vector<162x512xbf16>, vector<512x24xbf16>, vector<162x24xf32> -> vector<162x24xf32>
    %22 = arith.truncf %21 : vector<162x24xf32> to vector<162x24xbf16>
    %c2_20 = arith.constant 2 : index
    %c0_21 = arith.constant 0 : index
    %c0_22 = arith.constant 0 : index
    %23 = vector.load %arg5[%c2_20, %c0_21, %c0_22] : memref<4x24x32xbf16, #tpu.memory_space<vmem>>, vector<1x24x32xbf16>
    %24 = vector.shape_cast %23 : vector<1x24x32xbf16> to vector<24x32xbf16>
    %cst_23 = arith.constant dense<0.000000e+00> : vector<162x32xf32>
    %25 = tpu.matmul %22, %24, %cst_23 {dimension_numbers = #tpu.dot_dimension_numbers<[1], [0], [0], [1], [0, 0, 1, 1], [], []>} : vector<162x24xbf16>, vector<24x32xbf16>, vector<162x32xf32> -> vector<162x32xf32>
    %26 = arith.addf %18, %25 : vector<162x32xf32>
    %c3 = arith.constant 3 : index
    %c0_24 = arith.constant 0 : index
    %c0_25 = arith.constant 0 : index
    %27 = vector.load %arg1[%c3, %c0_24, %c0_25] : memref<4x162x512xbf16, #tpu.memory_space<vmem>>, vector<1x162x512xbf16>
    %28 = vector.shape_cast %27 : vector<1x162x512xbf16> to vector<162x512xbf16>
    %cst_26 = arith.constant dense<0.000000e+00> : vector<162x24xf32>
    %29 = tpu.matmul %28, %0, %cst_26 {dimension_numbers = #tpu.dot_dimension_numbers<[1], [0], [0], [1], [0, 0, 1, 1], [], []>} : vector<162x512xbf16>, vector<512x24xbf16>, vector<162x24xf32> -> vector<162x24xf32>
    %30 = arith.truncf %29 : vector<162x24xf32> to vector<162x24xbf16>
    %c3_27 = arith.constant 3 : index
    %c0_28 = arith.constant 0 : index
    %c0_29 = arith.constant 0 : index
    %31 = vector.load %arg5[%c3_27, %c0_28, %c0_29] : memref<4x24x32xbf16, #tpu.memory_space<vmem>>, vector<1x24x32xbf16>
    %32 = vector.shape_cast %31 : vector<1x24x32xbf16> to vector<24x32xbf16>
    %cst_30 = arith.constant dense<0.000000e+00> : vector<162x32xf32>
    %33 = tpu.matmul %30, %32, %cst_30 {dimension_numbers = #tpu.dot_dimension_numbers<[1], [0], [0], [1], [0, 0, 1, 1], [], []>} : vector<162x24xbf16>, vector<24x32xbf16>, vector<162x32xf32> -> vector<162x32xf32>
    %34 = arith.addf %26, %33 : vector<162x32xf32>
    %cst_31 = arith.constant 0.000000e+00 : f32
    %35 = vector.broadcast %cst_31 : f32 to vector<162x32xf32>
    %36 = arith.maximumf %34, %35 : vector<162x32xf32>
    %37 = arith.truncf %36 : vector<162x32xf32> to vector<162x32xbf16>
    %c0_32 = arith.constant 0 : index
    %c0_33 = arith.constant 0 : index
    %38 = vector.load %arg10[%c0_32, %c0_33] : memref<1x64xf32, #tpu.memory_space<vmem>>, vector<1x64xf32>
    %c0_34 = arith.constant 0 : index
    %c0_35 = arith.constant 0 : index
    %c0_36 = arith.constant 0 : index
    %39 = vector.load %arg2[%c0_34, %c0_35, %c0_36] : memref<4x50x162xbf16, #tpu.memory_space<vmem>>, vector<1x50x162xbf16>
    %40 = vector.shape_cast %39 : vector<1x50x162xbf16> to vector<50x162xbf16>
    %cst_37 = arith.constant dense<0.000000e+00> : vector<50x32xf32>
    %41 = tpu.matmul %40, %37, %cst_37 {dimension_numbers = #tpu.dot_dimension_numbers<[1], [0], [0], [1], [0, 0, 1, 1], [], []>} : vector<50x162xbf16>, vector<162x32xbf16>, vector<50x32xf32> -> vector<50x32xf32>
    %42 = arith.truncf %41 : vector<50x32xf32> to vector<50x32xbf16>
    %c0_38 = arith.constant 0 : index
    %c0_39 = arith.constant 0 : index
    %c0_40 = arith.constant 0 : index
    %43 = vector.load %arg6[%c0_38, %c0_39, %c0_40] : memref<4x32x64xbf16, #tpu.memory_space<vmem>>, vector<1x32x64xbf16>
    %44 = vector.shape_cast %43 : vector<1x32x64xbf16> to vector<32x64xbf16>
    %cst_41 = arith.constant dense<0.000000e+00> : vector<50x64xf32>
    %45 = tpu.matmul %42, %44, %cst_41 {dimension_numbers = #tpu.dot_dimension_numbers<[1], [0], [0], [1], [0, 0, 1, 1], [], []>} : vector<50x32xbf16>, vector<32x64xbf16>, vector<50x64xf32> -> vector<50x64xf32>
    %46 = vector.broadcast %38 : vector<1x64xf32> to vector<50x64xf32>
    %47 = arith.addf %46, %45 : vector<50x64xf32>
    %c1_42 = arith.constant 1 : index
    %c0_43 = arith.constant 0 : index
    %c0_44 = arith.constant 0 : index
    %48 = vector.load %arg2[%c1_42, %c0_43, %c0_44] : memref<4x50x162xbf16, #tpu.memory_space<vmem>>, vector<1x50x162xbf16>
    %49 = vector.shape_cast %48 : vector<1x50x162xbf16> to vector<50x162xbf16>
    %cst_45 = arith.constant dense<0.000000e+00> : vector<50x32xf32>
    %50 = tpu.matmul %49, %37, %cst_45 {dimension_numbers = #tpu.dot_dimension_numbers<[1], [0], [0], [1], [0, 0, 1, 1], [], []>} : vector<50x162xbf16>, vector<162x32xbf16>, vector<50x32xf32> -> vector<50x32xf32>
    %51 = arith.truncf %50 : vector<50x32xf32> to vector<50x32xbf16>
    %c1_46 = arith.constant 1 : index
    %c0_47 = arith.constant 0 : index
    %c0_48 = arith.constant 0 : index
    %52 = vector.load %arg6[%c1_46, %c0_47, %c0_48] : memref<4x32x64xbf16, #tpu.memory_space<vmem>>, vector<1x32x64xbf16>
    %53 = vector.shape_cast %52 : vector<1x32x64xbf16> to vector<32x64xbf16>
    %cst_49 = arith.constant dense<0.000000e+00> : vector<50x64xf32>
    %54 = tpu.matmul %51, %53, %cst_49 {dimension_numbers = #tpu.dot_dimension_numbers<[1], [0], [0], [1], [0, 0, 1, 1], [], []>} : vector<50x32xbf16>, vector<32x64xbf16>, vector<50x64xf32> -> vector<50x64xf32>
    %55 = arith.addf %47, %54 : vector<50x64xf32>
    %c2_50 = arith.constant 2 : index
    %c0_51 = arith.constant 0 : index
    %c0_52 = arith.constant 0 : index
    %56 = vector.load %arg2[%c2_50, %c0_51, %c0_52] : memref<4x50x162xbf16, #tpu.memory_space<vmem>>, vector<1x50x162xbf16>
    %57 = vector.shape_cast %56 : vector<1x50x162xbf16> to vector<50x162xbf16>
    %cst_53 = arith.constant dense<0.000000e+00> : vector<50x32xf32>
    %58 = tpu.matmul %57, %37, %cst_53 {dimension_numbers = #tpu.dot_dimension_numbers<[1], [0], [0], [1], [0, 0, 1, 1], [], []>} : vector<50x162xbf16>, vector<162x32xbf16>, vector<50x32xf32> -> vector<50x32xf32>
    %59 = arith.truncf %58 : vector<50x32xf32> to vector<50x32xbf16>
    %c2_54 = arith.constant 2 : index
    %c0_55 = arith.constant 0 : index
    %c0_56 = arith.constant 0 : index
    %60 = vector.load %arg6[%c2_54, %c0_55, %c0_56] : memref<4x32x64xbf16, #tpu.memory_space<vmem>>, vector<1x32x64xbf16>
    %61 = vector.shape_cast %60 : vector<1x32x64xbf16> to vector<32x64xbf16>
    %cst_57 = arith.constant dense<0.000000e+00> : vector<50x64xf32>
    %62 = tpu.matmul %59, %61, %cst_57 {dimension_numbers = #tpu.dot_dimension_numbers<[1], [0], [0], [1], [0, 0, 1, 1], [], []>} : vector<50x32xbf16>, vector<32x64xbf16>, vector<50x64xf32> -> vector<50x64xf32>
    %63 = arith.addf %55, %62 : vector<50x64xf32>
    %c3_58 = arith.constant 3 : index
    %c0_59 = arith.constant 0 : index
    %c0_60 = arith.constant 0 : index
    %64 = vector.load %arg2[%c3_58, %c0_59, %c0_60] : memref<4x50x162xbf16, #tpu.memory_space<vmem>>, vector<1x50x162xbf16>
    %65 = vector.shape_cast %64 : vector<1x50x162xbf16> to vector<50x162xbf16>
    %cst_61 = arith.constant dense<0.000000e+00> : vector<50x32xf32>
    %66 = tpu.matmul %65, %37, %cst_61 {dimension_numbers = #tpu.dot_dimension_numbers<[1], [0], [0], [1], [0, 0, 1, 1], [], []>} : vector<50x162xbf16>, vector<162x32xbf16>, vector<50x32xf32> -> vector<50x32xf32>
    %67 = arith.truncf %66 : vector<50x32xf32> to vector<50x32xbf16>
    %c3_62 = arith.constant 3 : index
    %c0_63 = arith.constant 0 : index
    %c0_64 = arith.constant 0 : index
    %68 = vector.load %arg6[%c3_62, %c0_63, %c0_64] : memref<4x32x64xbf16, #tpu.memory_space<vmem>>, vector<1x32x64xbf16>
    %69 = vector.shape_cast %68 : vector<1x32x64xbf16> to vector<32x64xbf16>
    %cst_65 = arith.constant dense<0.000000e+00> : vector<50x64xf32>
    %70 = tpu.matmul %67, %69, %cst_65 {dimension_numbers = #tpu.dot_dimension_numbers<[1], [0], [0], [1], [0, 0, 1, 1], [], []>} : vector<50x32xbf16>, vector<32x64xbf16>, vector<50x64xf32> -> vector<50x64xf32>
    %71 = arith.addf %63, %70 : vector<50x64xf32>
    %cst_66 = arith.constant 0.000000e+00 : f32
    %72 = vector.broadcast %cst_66 : f32 to vector<50x64xf32>
    %73 = arith.maximumf %71, %72 : vector<50x64xf32>
    %74 = arith.truncf %73 : vector<50x64xf32> to vector<50x64xbf16>
    %c0_67 = arith.constant 0 : index
    %c0_68 = arith.constant 0 : index
    %75 = vector.load %arg11[%c0_67, %c0_68] : memref<1x64xf32, #tpu.memory_space<vmem>>, vector<1x64xf32>
    %c0_69 = arith.constant 0 : index
    %c0_70 = arith.constant 0 : index
    %c0_71 = arith.constant 0 : index
    %76 = vector.load %arg3[%c0_69, %c0_70, %c0_71] : memref<4x18x50xbf16, #tpu.memory_space<vmem>>, vector<1x18x50xbf16>
    %77 = vector.shape_cast %76 : vector<1x18x50xbf16> to vector<18x50xbf16>
    %cst_72 = arith.constant dense<0.000000e+00> : vector<18x64xf32>
    %78 = tpu.matmul %77, %74, %cst_72 {dimension_numbers = #tpu.dot_dimension_numbers<[1], [0], [0], [1], [0, 0, 1, 1], [], []>} : vector<18x50xbf16>, vector<50x64xbf16>, vector<18x64xf32> -> vector<18x64xf32>
    %79 = arith.truncf %78 : vector<18x64xf32> to vector<18x64xbf16>
    %c0_73 = arith.constant 0 : index
    %c0_74 = arith.constant 0 : index
    %c0_75 = arith.constant 0 : index
    %80 = vector.load %arg7[%c0_73, %c0_74, %c0_75] : memref<4x64x64xbf16, #tpu.memory_space<vmem>>, vector<1x64x64xbf16>
    %81 = vector.shape_cast %80 : vector<1x64x64xbf16> to vector<64x64xbf16>
    %cst_76 = arith.constant dense<0.000000e+00> : vector<18x64xf32>
    %82 = tpu.matmul %79, %81, %cst_76 {dimension_numbers = #tpu.dot_dimension_numbers<[1], [0], [0], [1], [0, 0, 1, 1], [], []>} : vector<18x64xbf16>, vector<64x64xbf16>, vector<18x64xf32> -> vector<18x64xf32>
    %83 = vector.broadcast %75 : vector<1x64xf32> to vector<18x64xf32>
    %84 = arith.addf %83, %82 : vector<18x64xf32>
    %c1_77 = arith.constant 1 : index
    %c0_78 = arith.constant 0 : index
    %c0_79 = arith.constant 0 : index
    %85 = vector.load %arg3[%c1_77, %c0_78, %c0_79] : memref<4x18x50xbf16, #tpu.memory_space<vmem>>, vector<1x18x50xbf16>
    %86 = vector.shape_cast %85 : vector<1x18x50xbf16> to vector<18x50xbf16>
    %cst_80 = arith.constant dense<0.000000e+00> : vector<18x64xf32>
    %87 = tpu.matmul %86, %74, %cst_80 {dimension_numbers = #tpu.dot_dimension_numbers<[1], [0], [0], [1], [0, 0, 1, 1], [], []>} : vector<18x50xbf16>, vector<50x64xbf16>, vector<18x64xf32> -> vector<18x64xf32>
    %88 = arith.truncf %87 : vector<18x64xf32> to vector<18x64xbf16>
    %c1_81 = arith.constant 1 : index
    %c0_82 = arith.constant 0 : index
    %c0_83 = arith.constant 0 : index
    %89 = vector.load %arg7[%c1_81, %c0_82, %c0_83] : memref<4x64x64xbf16, #tpu.memory_space<vmem>>, vector<1x64x64xbf16>
    %90 = vector.shape_cast %89 : vector<1x64x64xbf16> to vector<64x64xbf16>
    %cst_84 = arith.constant dense<0.000000e+00> : vector<18x64xf32>
    %91 = tpu.matmul %88, %90, %cst_84 {dimension_numbers = #tpu.dot_dimension_numbers<[1], [0], [0], [1], [0, 0, 1, 1], [], []>} : vector<18x64xbf16>, vector<64x64xbf16>, vector<18x64xf32> -> vector<18x64xf32>
    %92 = arith.addf %84, %91 : vector<18x64xf32>
    %c2_85 = arith.constant 2 : index
    %c0_86 = arith.constant 0 : index
    %c0_87 = arith.constant 0 : index
    %93 = vector.load %arg3[%c2_85, %c0_86, %c0_87] : memref<4x18x50xbf16, #tpu.memory_space<vmem>>, vector<1x18x50xbf16>
    %94 = vector.shape_cast %93 : vector<1x18x50xbf16> to vector<18x50xbf16>
    %cst_88 = arith.constant dense<0.000000e+00> : vector<18x64xf32>
    %95 = tpu.matmul %94, %74, %cst_88 {dimension_numbers = #tpu.dot_dimension_numbers<[1], [0], [0], [1], [0, 0, 1, 1], [], []>} : vector<18x50xbf16>, vector<50x64xbf16>, vector<18x64xf32> -> vector<18x64xf32>
    %96 = arith.truncf %95 : vector<18x64xf32> to vector<18x64xbf16>
    %c2_89 = arith.constant 2 : index
    %c0_90 = arith.constant 0 : index
    %c0_91 = arith.constant 0 : index
    %97 = vector.load %arg7[%c2_89, %c0_90, %c0_91] : memref<4x64x64xbf16, #tpu.memory_space<vmem>>, vector<1x64x64xbf16>
    %98 = vector.shape_cast %97 : vector<1x64x64xbf16> to vector<64x64xbf16>
    %cst_92 = arith.constant dense<0.000000e+00> : vector<18x64xf32>
    %99 = tpu.matmul %96, %98, %cst_92 {dimension_numbers = #tpu.dot_dimension_numbers<[1], [0], [0], [1], [0, 0, 1, 1], [], []>} : vector<18x64xbf16>, vector<64x64xbf16>, vector<18x64xf32> -> vector<18x64xf32>
    %100 = arith.addf %92, %99 : vector<18x64xf32>
    %c3_93 = arith.constant 3 : index
    %c0_94 = arith.constant 0 : index
    %c0_95 = arith.constant 0 : index
    %101 = vector.load %arg3[%c3_93, %c0_94, %c0_95] : memref<4x18x50xbf16, #tpu.memory_space<vmem>>, vector<1x18x50xbf16>
    %102 = vector.shape_cast %101 : vector<1x18x50xbf16> to vector<18x50xbf16>
    %cst_96 = arith.constant dense<0.000000e+00> : vector<18x64xf32>
    %103 = tpu.matmul %102, %74, %cst_96 {dimension_numbers = #tpu.dot_dimension_numbers<[1], [0], [0], [1], [0, 0, 1, 1], [], []>} : vector<18x50xbf16>, vector<50x64xbf16>, vector<18x64xf32> -> vector<18x64xf32>
    %104 = arith.truncf %103 : vector<18x64xf32> to vector<18x64xbf16>
    %c3_97 = arith.constant 3 : index
    %c0_98 = arith.constant 0 : index
    %c0_99 = arith.constant 0 : index
    %105 = vector.load %arg7[%c3_97, %c0_98, %c0_99] : memref<4x64x64xbf16, #tpu.memory_space<vmem>>, vector<1x64x64xbf16>
    %106 = vector.shape_cast %105 : vector<1x64x64xbf16> to vector<64x64xbf16>
    %cst_100 = arith.constant dense<0.000000e+00> : vector<18x64xf32>
    %107 = tpu.matmul %104, %106, %cst_100 {dimension_numbers = #tpu.dot_dimension_numbers<[1], [0], [0], [1], [0, 0, 1, 1], [], []>} : vector<18x64xbf16>, vector<64x64xbf16>, vector<18x64xf32> -> vector<18x64xf32>
    %108 = arith.addf %100, %107 : vector<18x64xf32>
    %cst_101 = arith.constant 0.000000e+00 : f32
    %109 = vector.broadcast %cst_101 : f32 to vector<18x64xf32>
    %110 = arith.maximumf %108, %109 : vector<18x64xf32>
    %111 = arith.truncf %110 : vector<18x64xf32> to vector<18x64xbf16>
    %c0_102 = arith.constant 0 : index
    %c0_103 = arith.constant 0 : index
    %112 = vector.load %arg12[%c0_102, %c0_103] : memref<1x32xf32, #tpu.memory_space<vmem>>, vector<1x32xf32>
    %c0_104 = arith.constant 0 : index
    %c0_105 = arith.constant 0 : index
    %c0_106 = arith.constant 0 : index
    %113 = vector.load %arg4[%c0_104, %c0_105, %c0_106] : memref<4x8x18xbf16, #tpu.memory_space<vmem>>, vector<1x8x18xbf16>
    %114 = vector.shape_cast %113 : vector<1x8x18xbf16> to vector<8x18xbf16>
    %cst_107 = arith.constant dense<0.000000e+00> : vector<8x64xf32>
    %115 = tpu.matmul %114, %111, %cst_107 {dimension_numbers = #tpu.dot_dimension_numbers<[1], [0], [0], [1], [0, 0, 1, 1], [], []>} : vector<8x18xbf16>, vector<18x64xbf16>, vector<8x64xf32> -> vector<8x64xf32>
    %116 = arith.truncf %115 : vector<8x64xf32> to vector<8x64xbf16>
    %c0_108 = arith.constant 0 : index
    %c0_109 = arith.constant 0 : index
    %c0_110 = arith.constant 0 : index
    %117 = vector.load %arg8[%c0_108, %c0_109, %c0_110] : memref<4x64x32xbf16, #tpu.memory_space<vmem>>, vector<1x64x32xbf16>
    %118 = vector.shape_cast %117 : vector<1x64x32xbf16> to vector<64x32xbf16>
    %cst_111 = arith.constant dense<0.000000e+00> : vector<8x32xf32>
    %119 = tpu.matmul %116, %118, %cst_111 {dimension_numbers = #tpu.dot_dimension_numbers<[1], [0], [0], [1], [0, 0, 1, 1], [], []>} : vector<8x64xbf16>, vector<64x32xbf16>, vector<8x32xf32> -> vector<8x32xf32>
    %120 = vector.broadcast %112 : vector<1x32xf32> to vector<8x32xf32>
    %121 = arith.addf %120, %119 : vector<8x32xf32>
    %c1_112 = arith.constant 1 : index
    %c0_113 = arith.constant 0 : index
    %c0_114 = arith.constant 0 : index
    %122 = vector.load %arg4[%c1_112, %c0_113, %c0_114] : memref<4x8x18xbf16, #tpu.memory_space<vmem>>, vector<1x8x18xbf16>
    %123 = vector.shape_cast %122 : vector<1x8x18xbf16> to vector<8x18xbf16>
    %cst_115 = arith.constant dense<0.000000e+00> : vector<8x64xf32>
    %124 = tpu.matmul %123, %111, %cst_115 {dimension_numbers = #tpu.dot_dimension_numbers<[1], [0], [0], [1], [0, 0, 1, 1], [], []>} : vector<8x18xbf16>, vector<18x64xbf16>, vector<8x64xf32> -> vector<8x64xf32>
    %125 = arith.truncf %124 : vector<8x64xf32> to vector<8x64xbf16>
    %c1_116 = arith.constant 1 : index
    %c0_117 = arith.constant 0 : index
    %c0_118 = arith.constant 0 : index
    %126 = vector.load %arg8[%c1_116, %c0_117, %c0_118] : memref<4x64x32xbf16, #tpu.memory_space<vmem>>, vector<1x64x32xbf16>
    %127 = vector.shape_cast %126 : vector<1x64x32xbf16> to vector<64x32xbf16>
    %cst_119 = arith.constant dense<0.000000e+00> : vector<8x32xf32>
    %128 = tpu.matmul %125, %127, %cst_119 {dimension_numbers = #tpu.dot_dimension_numbers<[1], [0], [0], [1], [0, 0, 1, 1], [], []>} : vector<8x64xbf16>, vector<64x32xbf16>, vector<8x32xf32> -> vector<8x32xf32>
    %129 = arith.addf %121, %128 : vector<8x32xf32>
    %c2_120 = arith.constant 2 : index
    %c0_121 = arith.constant 0 : index
    %c0_122 = arith.constant 0 : index
    %130 = vector.load %arg4[%c2_120, %c0_121, %c0_122] : memref<4x8x18xbf16, #tpu.memory_space<vmem>>, vector<1x8x18xbf16>
    %131 = vector.shape_cast %130 : vector<1x8x18xbf16> to vector<8x18xbf16>
    %cst_123 = arith.constant dense<0.000000e+00> : vector<8x64xf32>
    %132 = tpu.matmul %131, %111, %cst_123 {dimension_numbers = #tpu.dot_dimension_numbers<[1], [0], [0], [1], [0, 0, 1, 1], [], []>} : vector<8x18xbf16>, vector<18x64xbf16>, vector<8x64xf32> -> vector<8x64xf32>
    %133 = arith.truncf %132 : vector<8x64xf32> to vector<8x64xbf16>
    %c2_124 = arith.constant 2 : index
    %c0_125 = arith.constant 0 : index
    %c0_126 = arith.constant 0 : index
    %134 = vector.load %arg8[%c2_124, %c0_125, %c0_126] : memref<4x64x32xbf16, #tpu.memory_space<vmem>>, vector<1x64x32xbf16>
    %135 = vector.shape_cast %134 : vector<1x64x32xbf16> to vector<64x32xbf16>
    %cst_127 = arith.constant dense<0.000000e+00> : vector<8x32xf32>
    %136 = tpu.matmul %133, %135, %cst_127 {dimension_numbers = #tpu.dot_dimension_numbers<[1], [0], [0], [1], [0, 0, 1, 1], [], []>} : vector<8x64xbf16>, vector<64x32xbf16>, vector<8x32xf32> -> vector<8x32xf32>
    %137 = arith.addf %129, %136 : vector<8x32xf32>
    %c3_128 = arith.constant 3 : index
    %c0_129 = arith.constant 0 : index
    %c0_130 = arith.constant 0 : index
    %138 = vector.load %arg4[%c3_128, %c0_129, %c0_130] : memref<4x8x18xbf16, #tpu.memory_space<vmem>>, vector<1x8x18xbf16>
    %139 = vector.shape_cast %138 : vector<1x8x18xbf16> to vector<8x18xbf16>
    %cst_131 = arith.constant dense<0.000000e+00> : vector<8x64xf32>
    %140 = tpu.matmul %139, %111, %cst_131 {dimension_numbers = #tpu.dot_dimension_numbers<[1], [0], [0], [1], [0, 0, 1, 1], [], []>} : vector<8x18xbf16>, vector<18x64xbf16>, vector<8x64xf32> -> vector<8x64xf32>
    %141 = arith.truncf %140 : vector<8x64xf32> to vector<8x64xbf16>
    %c3_132 = arith.constant 3 : index
    %c0_133 = arith.constant 0 : index
    %c0_134 = arith.constant 0 : index
    %142 = vector.load %arg8[%c3_132, %c0_133, %c0_134] : memref<4x64x32xbf16, #tpu.memory_space<vmem>>, vector<1x64x32xbf16>
    %143 = vector.shape_cast %142 : vector<1x64x32xbf16> to vector<64x32xbf16>
    %cst_135 = arith.constant dense<0.000000e+00> : vector<8x32xf32>
    %144 = tpu.matmul %141, %143, %cst_135 {dimension_numbers = #tpu.dot_dimension_numbers<[1], [0], [0], [1], [0, 0, 1, 1], [], []>} : vector<8x64xbf16>, vector<64x32xbf16>, vector<8x32xf32> -> vector<8x32xf32>
    %145 = arith.addf %137, %144 : vector<8x32xf32>
    %cst_136 = arith.constant 0.000000e+00 : f32
    %146 = vector.broadcast %cst_136 : f32 to vector<8x32xf32>
    %147 = arith.maximumf %145, %146 : vector<8x32xf32>
    %148 = arith.truncf %147 : vector<8x32xf32> to vector<8x32xbf16>
    %c0_137 = arith.constant 0 : index
    %c0_138 = arith.constant 0 : index
    %149 = vector.load %arg15[%c0_137, %c0_138] : memref<1x128xf32, #tpu.memory_space<vmem>>, vector<1x128xf32>
    %c0_139 = arith.constant 0 : index
    %c0_140 = arith.constant 0 : index
    %c0_141 = arith.constant 0 : index
    %150 = vector.load %arg13[%c0_139, %c0_140, %c0_141] : memref<4x2x8xbf16, #tpu.memory_space<vmem>>, vector<1x2x8xbf16>
    %151 = vector.shape_cast %150 : vector<1x2x8xbf16> to vector<2x8xbf16>
    %cst_142 = arith.constant dense<0.000000e+00> : vector<2x32xf32>
    %152 = tpu.matmul %151, %148, %cst_142 {dimension_numbers = #tpu.dot_dimension_numbers<[1], [0], [0], [1], [0, 0, 1, 1], [], []>} : vector<2x8xbf16>, vector<8x32xbf16>, vector<2x32xf32> -> vector<2x32xf32>
    %153 = arith.truncf %152 : vector<2x32xf32> to vector<2x32xbf16>
    %c0_143 = arith.constant 0 : index
    %c0_144 = arith.constant 0 : index
    %c0_145 = arith.constant 0 : index
    %154 = vector.load %arg14[%c0_143, %c0_144, %c0_145] : memref<4x32x128xbf16, #tpu.memory_space<vmem>>, vector<1x32x128xbf16>
    %155 = vector.shape_cast %154 : vector<1x32x128xbf16> to vector<32x128xbf16>
    %cst_146 = arith.constant dense<0.000000e+00> : vector<2x128xf32>
    %156 = tpu.matmul %153, %155, %cst_146 {dimension_numbers = #tpu.dot_dimension_numbers<[1], [0], [0], [1], [0, 0, 1, 1], [], []>} : vector<2x32xbf16>, vector<32x128xbf16>, vector<2x128xf32> -> vector<2x128xf32>
    %157 = vector.broadcast %149 : vector<1x128xf32> to vector<2x128xf32>
    %158 = arith.addf %157, %156 : vector<2x128xf32>
    %c1_147 = arith.constant 1 : index
    %c0_148 = arith.constant 0 : index
    %c0_149 = arith.constant 0 : index
    %159 = vector.load %arg13[%c1_147, %c0_148, %c0_149] : memref<4x2x8xbf16, #tpu.memory_space<vmem>>, vector<1x2x8xbf16>
    %160 = vector.shape_cast %159 : vector<1x2x8xbf16> to vector<2x8xbf16>
    %cst_150 = arith.constant dense<0.000000e+00> : vector<2x32xf32>
    %161 = tpu.matmul %160, %148, %cst_150 {dimension_numbers = #tpu.dot_dimension_numbers<[1], [0], [0], [1], [0, 0, 1, 1], [], []>} : vector<2x8xbf16>, vector<8x32xbf16>, vector<2x32xf32> -> vector<2x32xf32>
    %162 = arith.truncf %161 : vector<2x32xf32> to vector<2x32xbf16>
    %c1_151 = arith.constant 1 : index
    %c0_152 = arith.constant 0 : index
    %c0_153 = arith.constant 0 : index
    %163 = vector.load %arg14[%c1_151, %c0_152, %c0_153] : memref<4x32x128xbf16, #tpu.memory_space<vmem>>, vector<1x32x128xbf16>
    %164 = vector.shape_cast %163 : vector<1x32x128xbf16> to vector<32x128xbf16>
    %cst_154 = arith.constant dense<0.000000e+00> : vector<2x128xf32>
    %165 = tpu.matmul %162, %164, %cst_154 {dimension_numbers = #tpu.dot_dimension_numbers<[1], [0], [0], [1], [0, 0, 1, 1], [], []>} : vector<2x32xbf16>, vector<32x128xbf16>, vector<2x128xf32> -> vector<2x128xf32>
    %166 = arith.addf %158, %165 : vector<2x128xf32>
    %c2_155 = arith.constant 2 : index
    %c0_156 = arith.constant 0 : index
    %c0_157 = arith.constant 0 : index
    %167 = vector.load %arg13[%c2_155, %c0_156, %c0_157] : memref<4x2x8xbf16, #tpu.memory_space<vmem>>, vector<1x2x8xbf16>
    %168 = vector.shape_cast %167 : vector<1x2x8xbf16> to vector<2x8xbf16>
    %cst_158 = arith.constant dense<0.000000e+00> : vector<2x32xf32>
    %169 = tpu.matmul %168, %148, %cst_158 {dimension_numbers = #tpu.dot_dimension_numbers<[1], [0], [0], [1], [0, 0, 1, 1], [], []>} : vector<2x8xbf16>, vector<8x32xbf16>, vector<2x32xf32> -> vector<2x32xf32>
    %170 = arith.truncf %169 : vector<2x32xf32> to vector<2x32xbf16>
    %c2_159 = arith.constant 2 : index
    %c0_160 = arith.constant 0 : index
    %c0_161 = arith.constant 0 : index
    %171 = vector.load %arg14[%c2_159, %c0_160, %c0_161] : memref<4x32x128xbf16, #tpu.memory_space<vmem>>, vector<1x32x128xbf16>
    %172 = vector.shape_cast %171 : vector<1x32x128xbf16> to vector<32x128xbf16>
    %cst_162 = arith.constant dense<0.000000e+00> : vector<2x128xf32>
    %173 = tpu.matmul %170, %172, %cst_162 {dimension_numbers = #tpu.dot_dimension_numbers<[1], [0], [0], [1], [0, 0, 1, 1], [], []>} : vector<2x32xbf16>, vector<32x128xbf16>, vector<2x128xf32> -> vector<2x128xf32>
    %174 = arith.addf %166, %173 : vector<2x128xf32>
    %c3_163 = arith.constant 3 : index
    %c0_164 = arith.constant 0 : index
    %c0_165 = arith.constant 0 : index
    %175 = vector.load %arg13[%c3_163, %c0_164, %c0_165] : memref<4x2x8xbf16, #tpu.memory_space<vmem>>, vector<1x2x8xbf16>
    %176 = vector.shape_cast %175 : vector<1x2x8xbf16> to vector<2x8xbf16>
    %cst_166 = arith.constant dense<0.000000e+00> : vector<2x32xf32>
    %177 = tpu.matmul %176, %148, %cst_166 {dimension_numbers = #tpu.dot_dimension_numbers<[1], [0], [0], [1], [0, 0, 1, 1], [], []>} : vector<2x8xbf16>, vector<8x32xbf16>, vector<2x32xf32> -> vector<2x32xf32>
    %178 = arith.truncf %177 : vector<2x32xf32> to vector<2x32xbf16>
    %c3_167 = arith.constant 3 : index
    %c0_168 = arith.constant 0 : index
    %c0_169 = arith.constant 0 : index
    %179 = vector.load %arg14[%c3_167, %c0_168, %c0_169] : memref<4x32x128xbf16, #tpu.memory_space<vmem>>, vector<1x32x128xbf16>
    %180 = vector.shape_cast %179 : vector<1x32x128xbf16> to vector<32x128xbf16>
    %cst_170 = arith.constant dense<0.000000e+00> : vector<2x128xf32>
    %181 = tpu.matmul %178, %180, %cst_170 {dimension_numbers = #tpu.dot_dimension_numbers<[1], [0], [0], [1], [0, 0, 1, 1], [], []>} : vector<2x32xbf16>, vector<32x128xbf16>, vector<2x128xf32> -> vector<2x128xf32>
    %182 = arith.addf %174, %181 : vector<2x128xf32>
    %cst_171 = arith.constant 0.000000e+00 : f32
    %183 = vector.broadcast %cst_171 : f32 to vector<2x128xf32>
    %184 = arith.maximumf %182, %183 : vector<2x128xf32>
    %185 = arith.truncf %184 : vector<2x128xf32> to vector<2x128xbf16>
    %c0_172 = arith.constant 0 : index
    %c0_173 = arith.constant 0 : index
    %186 = vector.load %arg16[%c0_172, %c0_173] : memref<128x256xbf16, #tpu.memory_space<vmem>>, vector<128x256xbf16>
    %cst_174 = arith.constant dense<0.000000e+00> : vector<2x256xf32>
    %187 = tpu.matmul %185, %186, %cst_174 {dimension_numbers = #tpu.dot_dimension_numbers<[1], [0], [0], [1], [0, 0, 1, 1], [], []>} : vector<2x128xbf16>, vector<128x256xbf16>, vector<2x256xf32> -> vector<2x256xf32>
    %c0_175 = arith.constant 0 : index
    %c0_176 = arith.constant 0 : index
    %188 = vector.load %arg17[%c0_175, %c0_176] : memref<1x256xf32, #tpu.memory_space<vmem>>, vector<1x256xf32>
    %189 = vector.broadcast %188 : vector<1x256xf32> to vector<2x256xf32>
    %190 = arith.addf %187, %189 : vector<2x256xf32>
    %cst_177 = arith.constant 0.000000e+00 : f32
    %191 = vector.broadcast %cst_177 : f32 to vector<2x256xf32>
    %192 = arith.maximumf %190, %191 : vector<2x256xf32>
    %193 = arith.truncf %192 : vector<2x256xf32> to vector<2x256xbf16>
    %c0_178 = arith.constant 0 : index
    %c0_179 = arith.constant 0 : index
    %194 = vector.load %arg18[%c0_178, %c0_179] : memref<256x128xbf16, #tpu.memory_space<vmem>>, vector<256x128xbf16>
    %cst_180 = arith.constant dense<0.000000e+00> : vector<2x128xf32>
    %195 = tpu.matmul %193, %194, %cst_180 {dimension_numbers = #tpu.dot_dimension_numbers<[1], [0], [0], [1], [0, 0, 1, 1], [], []>} : vector<2x256xbf16>, vector<256x128xbf16>, vector<2x128xf32> -> vector<2x128xf32>
    %c0_181 = arith.constant 0 : index
    %c0_182 = arith.constant 0 : index
    %196 = vector.load %arg19[%c0_181, %c0_182] : memref<1x128xf32, #tpu.memory_space<vmem>>, vector<1x128xf32>
    %197 = vector.broadcast %196 : vector<1x128xf32> to vector<2x128xf32>
    %198 = arith.addf %195, %197 : vector<2x128xf32>
    %c0_183 = arith.constant 0 : index
    %c0_184 = arith.constant 0 : index
    %199 = vector.load %arg20[%c0_183, %c0_184] : memref<2x128xf32, #tpu.memory_space<vmem>>, vector<2x128xf32>
    tpu.vector_store %arg20[%c0_183, %c0_184], %198 {strides = array<i32>} : memref<2x128xf32, #tpu.memory_space<vmem>>, vector<2x128xf32>,
    return
  }
}

</mosaic_0001>

<llo_original>
// kernel: policy_value_forward.1
$region0: #{policy_value_forward.1}
  #allocation0 [shape = 'u32[]', space=smem, size = 0x4, offset = 0x4, fixed_abs, tag = 'smem constant byte address 0x4 - core index']
  #allocation1 [shape = 'u32[144,128]{1,0:T(1,128)}', space=vmem, size = 0x12000, scoped, tag = 'internal scratch']
  %s0 = inlined_call_operand.vmem [shape: bf16[512,24], index: 0, kind: input, shape index: {}]
  %s1 = inlined_call_operand.vmem [shape: bf16[4,162,512], index: 1, kind: input, shape index: {}]
  %s2 = inlined_call_operand.vmem [shape: bf16[4,50,162], index: 2, kind: input, shape index: {}]
  %s3 = inlined_call_operand.vmem [shape: bf16[4,18,50], index: 3, kind: input, shape index: {}]
  %s4 = inlined_call_operand.vmem [shape: bf16[4,8,18], index: 4, kind: input, shape index: {}]
  %s5 = inlined_call_operand.vmem [shape: bf16[4,24,32], index: 5, kind: input, shape index: {}]
  %s6 = inlined_call_operand.vmem [shape: bf16[4,32,64], index: 6, kind: input, shape index: {}]
  %s7 = inlined_call_operand.vmem [shape: bf16[4,64,64], index: 7, kind: input, shape index: {}]
  %s8 = inlined_call_operand.vmem [shape: bf16[4,64,32], index: 8, kind: input, shape index: {}]
  %s9 = inlined_call_operand.vmem [shape: f32[1,32], index: 9, kind: input, shape index: {}]
  %s10 = inlined_call_operand.vmem [shape: f32[1,64], index: 10, kind: input, shape index: {}]
  %s11 = inlined_call_operand.vmem [shape: f32[1,64], index: 11, kind: input, shape index: {}]
  %s12 = inlined_call_operand.vmem [shape: f32[1,32], index: 12, kind: input, shape index: {}]
  %s13 = inlined_call_operand.vmem [shape: bf16[4,2,8], index: 13, kind: input, shape index: {}]
  %s14 = inlined_call_operand.vmem [shape: bf16[4,32,128], index: 14, kind: input, shape index: {}]
  %s15 = inlined_call_operand.vmem [shape: f32[1,128], index: 15, kind: input, shape index: {}]
  %s16 = inlined_call_operand.vmem [shape: bf16[128,256], index: 16, kind: input, shape index: {}]
  %s17 = inlined_call_operand.vmem [shape: f32[1,256], index: 17, kind: input, shape index: {}]
  %s18 = inlined_call_operand.vmem [shape: bf16[256,128], index: 18, kind: input, shape index: {}]
  %s19 = inlined_call_operand.vmem [shape: f32[1,128], index: 19, kind: input, shape index: {}]
  %s20 = inlined_call_operand.vmem [shape: f32[2,128], index: 20, kind: output, shape index: {}]
  %s21 = sld [smem:[#allocation0]]
  $region90: #{policy_value_forward.1} parent=0
    _
  %s23 = ssub.s32 1, %s21
  %s24 = scalar_select 0, %s23, %s21
  // Predicated region
  $region2: #{policy_value_forward.1} parent=0 // pred_check
    _
  $region3: #{policy_value_forward.1} parent=0 // pred_check_branch
    %26 = sbr.rel (0) target = $region5
  $region4: #{policy_value_forward.1} parent=0 // pred_region
    _
  $region5: #{policy_value_forward.1} parent=0 // pred_fallthru
    _
  // Predicated region
  $region6: #{policy_value_forward.1} parent=0 // pred_check
    _
  $region7: #{policy_value_forward.1} parent=0 // pred_check_branch
    %28 = sbr.rel (0) target = $region9
  $region8: #{policy_value_forward.1} parent=0 // pred_region
    _
  $region9: #{policy_value_forward.1} parent=0 // pred_fallthru
    _
  // Predicated region
  $region10: #{policy_value_forward.1} parent=0 // pred_check
    _
  $region11: #{policy_value_forward.1} parent=0 // pred_check_branch
    %30 = sbr.rel (0) target = $region13
  $region12: #{policy_value_forward.1} parent=0 // pred_region
    _
  $region13: #{policy_value_forward.1} parent=0 // pred_fallthru
    _
  // Predicated region
  $region14: #{policy_value_forward.1} parent=0 // pred_check
    _
  $region15: #{policy_value_forward.1} parent=0 // pred_check_branch
    %32 = sbr.rel (0) target = $region17
  $region16: #{policy_value_forward.1} parent=0 // pred_region
    _
  $region17: #{policy_value_forward.1} parent=0 // pred_fallthru
    _
  // Predicated region
  $region18: #{policy_value_forward.1} parent=0 // pred_check
    _
  $region19: #{policy_value_forward.1} parent=0 // pred_check_branch
    %34 = sbr.rel (0) target = $region21
  $region20: #{policy_value_forward.1} parent=0 // pred_region
    _
  $region21: #{policy_value_forward.1} parent=0 // pred_fallthru
    _
  // Predicated region
  $region22: #{policy_value_forward.1} parent=0 // pred_check
    _
  $region23: #{policy_value_forward.1} parent=0 // pred_check_branch
    %36 = sbr.rel (0) target = $region25
  $region24: #{policy_value_forward.1} parent=0 // pred_region
    _
  $region25: #{policy_value_forward.1} parent=0 // pred_fallthru
    _
  // Predicated region
  $region26: #{policy_value_forward.1} parent=0 // pred_check
    _
  $region27: #{policy_value_forward.1} parent=0 // pred_check_branch
    %38 = sbr.rel (0) target = $region29
  $region28: #{policy_value_forward.1} parent=0 // pred_region
    _
  $region29: #{policy_value_forward.1} parent=0 // pred_fallthru
    _
  // Predicated region
  $region30: #{policy_value_forward.1} parent=0 // pred_check
    _
  $region31: #{policy_value_forward.1} parent=0 // pred_check_branch
    %40 = sbr.rel (0) target = $region33
  $region32: #{policy_value_forward.1} parent=0 // pred_region
    _
  $region33: #{policy_value_forward.1} parent=0 // pred_fallthru
    _
  // Predicated region
  $region34: #{policy_value_forward.1} parent=0 // pred_check
    _
  $region35: #{policy_value_forward.1} parent=0 // pred_check_branch
    %42 = sbr.rel (0) target = $region37
  $region36: #{policy_value_forward.1} parent=0 // pred_region
    _
  $region37: #{policy_value_forward.1} parent=0 // pred_fallthru
    _
  // Predicated region
  $region38: #{policy_value_forward.1} parent=0 // pred_check
    _
  $region39: #{policy_value_forward.1} parent=0 // pred_check_branch
    %44 = sbr.rel (0) target = $region41
  $region40: #{policy_value_forward.1} parent=0 // pred_region
    _
  $region41: #{policy_value_forward.1} parent=0 // pred_fallthru
    _
  // Predicated region
  $region42: #{policy_value_forward.1} parent=0 // pred_check
    _
  $region43: #{policy_value_forward.1} parent=0 // pred_check_branch
    %46 = sbr.rel (0) target = $region45
  $region44: #{policy_value_forward.1} parent=0 // pred_region
    _
  $region45: #{policy_value_forward.1} parent=0 // pred_fallthru
    _
  // Predicated region
  $region46: #{policy_value_forward.1} parent=0 // pred_check
    _
  $region47: #{policy_value_forward.1} parent=0 // pred_check_branch
    %48 = sbr.rel (0) target = $region49
  $region48: #{policy_value_forward.1} parent=0 // pred_region
    _
  $region49: #{policy_value_forward.1} parent=0 // pred_fallthru
    _
  // Predicated region
  $region50: #{policy_value_forward.1} parent=0 // pred_check
    _
  $region51: #{policy_value_forward.1} parent=0 // pred_check_branch
    %50 = sbr.rel (0) target = $region53
  $region52: #{policy_value_forward.1} parent=0 // pred_region
    _
  $region53: #{policy_value_forward.1} parent=0 // pred_fallthru
    _
  // Predicated region
  $region54: #{policy_value_forward.1} parent=0 // pred_check
    _
  $region55: #{policy_value_forward.1} parent=0 // pred_check_branch
    %52 = sbr.rel (0) target = $region57
  $region56: #{policy_value_forward.1} parent=0 // pred_region
    _
  $region57: #{policy_value_forward.1} parent=0 // pred_fallthru
    _
  // Predicated region
  $region58: #{policy_value_forward.1} parent=0 // pred_check
    _
  $region59: #{policy_value_forward.1} parent=0 // pred_check_branch
    %54 = sbr.rel (0) target = $region61
  $region60: #{policy_value_forward.1} parent=0 // pred_region
    _
  $region61: #{policy_value_forward.1} parent=0 // pred_fallthru
    _
  // Predicated region
  $region62: #{policy_value_forward.1} parent=0 // pred_check
    _
  $region63: #{policy_value_forward.1} parent=0 // pred_check_branch
    %56 = sbr.rel (0) target = $region65
  $region64: #{policy_value_forward.1} parent=0 // pred_region
    _
  $region65: #{policy_value_forward.1} parent=0 // pred_fallthru
    _
  // Predicated region
  $region66: #{policy_value_forward.1} parent=0 // pred_check
    _
  $region67: #{policy_value_forward.1} parent=0 // pred_check_branch
    %58 = sbr.rel (0) target = $region69
  $region68: #{policy_value_forward.1} parent=0 // pred_region
    _
  $region69: #{policy_value_forward.1} parent=0 // pred_fallthru
    _
  // Predicated region
  $region70: #{policy_value_forward.1} parent=0 // pred_check
    _
  $region71: #{policy_value_forward.1} parent=0 // pred_check_branch
    %60 = sbr.rel (0) target = $region73
  $region72: #{policy_value_forward.1} parent=0 // pred_region
    _
  $region73: #{policy_value_forward.1} parent=0 // pred_fallthru
    _
  // Predicated region
  $region74: #{policy_value_forward.1} parent=0 // pred_check
    _
  $region75: #{policy_value_forward.1} parent=0 // pred_check_branch
    %62 = sbr.rel (0) target = $region77
  $region76: #{policy_value_forward.1} parent=0 // pred_region
    _
  $region77: #{policy_value_forward.1} parent=0 // pred_fallthru
    _
  // Predicated region
  $region78: #{policy_value_forward.1} parent=0 // pred_check
    _
  $region79: #{policy_value_forward.1} parent=0 // pred_check_branch
    %64 = sbr.rel (0) target = $region81
  $region80: #{policy_value_forward.1} parent=0 // pred_region
    _
  $region81: #{policy_value_forward.1} parent=0 // pred_fallthru
    _
  %v66 = vld [vmem:[%s0] sm:$0xf]
  %v67 = vld [vmem:[%s0 + $0x4] sm:$0xf]
  %v68 = vld [vmem:[%s0 + $0x8] sm:$0xf]
  %v69 = vld [vmem:[%s0 + $0xc] sm:$0xf]
  %v70 = vld [vmem:[%s0 + $0x10] sm:$0xf]
  %v71 = vld [vmem:[%s0 + $0x14] sm:$0xf]
  %v72 = vld [vmem:[%s0 + $0x18] sm:$0xf]
  %v73 = vld [vmem:[%s0 + $0x1c] sm:$0xf]
  %v74 = vld [vmem:[%s0 + $0x20] sm:$0xf]
  %v75 = vld [vmem:[%s0 + $0x24] sm:$0xf]
  %v76 = vld [vmem:[%s0 + $0x28] sm:$0xf]
  %v77 = vld [vmem:[%s0 + $0x2c] sm:$0xf]
  %v78 = vld [vmem:[%s0 + $0x30] sm:$0xf]
  %v79 = vld [vmem:[%s0 + $0x34] sm:$0xf]
  %v80 = vld [vmem:[%s0 + $0x38] sm:$0xf]
  %v81 = vld [vmem:[%s0 + $0x3c] sm:$0xf]
  %v82 = vld [vmem:[%s0 + $0x40] sm:$0xf]
  %v83 = vld [vmem:[%s0 + $0x44] sm:$0xf]
  %v84 = vld [vmem:[%s0 + $0x48] sm:$0xf]
  %v85 = vld [vmem:[%s0 + $0x4c] sm:$0xf]
  %v86 = vld [vmem:[%s0 + $0x50] sm:$0xf]
  %v87 = vld [vmem:[%s0 + $0x54] sm:$0xf]
  %v88 = vld [vmem:[%s0 + $0x58] sm:$0xf]
  %v89 = vld [vmem:[%s0 + $0x5c] sm:$0xf]
  %v90 = vld [vmem:[%s0 + $0x60] sm:$0xf]
  %v91 = vld [vmem:[%s0 + $0x64] sm:$0xf]
  %v92 = vld [vmem:[%s0 + $0x68] sm:$0xf]
  %v93 = vld [vmem:[%s0 + $0x6c] sm:$0xf]
  %v94 = vld [vmem:[%s0 + $0x70] sm:$0xf]
  %v95 = vld [vmem:[%s0 + $0x74] sm:$0xf]
  %v96 = vld [vmem:[%s0 + $0x78] sm:$0xf]
  %v97 = vld [vmem:[%s0 + $0x7c] sm:$0xf]
  %v98 = vld [vmem:[%s0 + $0x80] sm:$0xf]
  %v99 = vld [vmem:[%s0 + $0x84] sm:$0xf]
  %v100 = vld [vmem:[%s0 + $0x88] sm:$0xf]
  %v101 = vld [vmem:[%s0 + $0x8c] sm:$0xf]
  %v102 = vld [vmem:[%s0 + $0x90] sm:$0xf]
  %v103 = vld [vmem:[%s0 + $0x94] sm:$0xf]
  %v104 = vld [vmem:[%s0 + $0x98] sm:$0xf]
  %v105 = vld [vmem:[%s0 + $0x9c] sm:$0xf]
  %v106 = vld [vmem:[%s0 + $0xa0] sm:$0xf]
  %v107 = vld [vmem:[%s0 + $0xa4] sm:$0xf]
  %v108 = vld [vmem:[%s0 + $0xa8] sm:$0xf]
  %v109 = vld [vmem:[%s0 + $0xac] sm:$0xf]
  %v110 = vld [vmem:[%s0 + $0xb0] sm:$0xf]
  %v111 = vld [vmem:[%s0 + $0xb4] sm:$0xf]
  %v112 = vld [vmem:[%s0 + $0xb8] sm:$0xf]
  %v113 = vld [vmem:[%s0 + $0xbc] sm:$0xf]
  %v114 = vld [vmem:[%s0 + $0xc0] sm:$0xf]
  %v115 = vld [vmem:[%s0 + $0xc4] sm:$0xf]
  %v116 = vld [vmem:[%s0 + $0xc8] sm:$0xf]
  %v117 = vld [vmem:[%s0 + $0xcc] sm:$0xf]
  %v118 = vld [vmem:[%s0 + $0xd0] sm:$0xf]
  %v119 = vld [vmem:[%s0 + $0xd4] sm:$0xf]
  %v120 = vld [vmem:[%s0 + $0xd8] sm:$0xf]
  %v121 = vld [vmem:[%s0 + $0xdc] sm:$0xf]
  %v122 = vld [vmem:[%s0 + $0xe0] sm:$0xf]
  %v123 = vld [vmem:[%s0 + $0xe4] sm:$0xf]
  %v124 = vld [vmem:[%s0 + $0xe8] sm:$0xf]
  %v125 = vld [vmem:[%s0 + $0xec] sm:$0xf]
  %v126 = vld [vmem:[%s0 + $0xf0] sm:$0xf]
  %v127 = vld [vmem:[%s0 + $0xf4] sm:$0xf]
  %v128 = vld [vmem:[%s0 + $0xf8] sm:$0xf]
  %v129 = vld [vmem:[%s0 + $0xfc] sm:$0xf]
  %v130 = vld [vmem:[%s9] sm:$0x1]
  %v131 = vld [vmem:[%s1] sm:$0xff]
  %v132 = vld [vmem:[%s1 + $0x8] sm:$0xff]
  %v133 = vld [vmem:[%s1 + $0x10] sm:$0xff]
  %v134 = vld [vmem:[%s1 + $0x18] sm:$0xff]
  %v135 = vld [vmem:[%s1 + $0x20] sm:$0xff]
  %v136 = vld [vmem:[%s1 + $0x28] sm:$0xff]
  %v137 = vld [vmem:[%s1 + $0x30] sm:$0xff]
  %v138 = vld [vmem:[%s1 + $0x38] sm:$0xff]
  %v139 = vld [vmem:[%s1 + $0x40] sm:$0xff]
  %v140 = vld [vmem:[%s1 + $0x48] sm:$0xff]
  %v141 = vld [vmem:[%s1 + $0x50] sm:$0xff]
  %v142 = vld [vmem:[%s1 + $0x58] sm:$0xff]
  %v143 = vld [vmem:[%s1 + $0x60] sm:$0xff]
  %v144 = vld [vmem:[%s1 + $0x68] sm:$0xff]
  %v145 = vld [vmem:[%s1 + $0x70] sm:$0xff]
  %v146 = vld [vmem:[%s1 + $0x78] sm:$0xff]
  %v147 = vld [vmem:[%s1 + $0x80] sm:$0xff]
  %v148 = vld [vmem:[%s1 + $0x88] sm:$0xff]
  %v149 = vld [vmem:[%s1 + $0x90] sm:$0xff]
  %v150 = vld [vmem:[%s1 + $0x98] sm:$0xff]
  %v151 = vld [vmem:[%s1 + $0xa0] sm:$0xff]
  %v152 = vld [vmem:[%s1 + $0xa8] sm:$0xff]
  %v153 = vld [vmem:[%s1 + $0xb0] sm:$0xff]
  %v154 = vld [vmem:[%s1 + $0xb8] sm:$0xff]
  %v155 = vld [vmem:[%s1 + $0xc0] sm:$0xff]
  %v156 = vld [vmem:[%s1 + $0xc8] sm:$0xff]
  %v157 = vld [vmem:[%s1 + $0xd0] sm:$0xff]
  %v158 = vld [vmem:[%s1 + $0xd8] sm:$0xff]
  %v159 = vld [vmem:[%s1 + $0xe0] sm:$0xff]
  %v160 = vld [vmem:[%s1 + $0xe8] sm:$0xff]
  %v161 = vld [vmem:[%s1 + $0xf0] sm:$0xff]
  %v162 = vld [vmem:[%s1 + $0xf8] sm:$0xff]
  %v163 = vld [vmem:[%s1 + $0x100] sm:$0xff]
  %v164 = vld [vmem:[%s1 + $0x108] sm:$0xff]
  %v165 = vld [vmem:[%s1 + $0x110] sm:$0xff]
  %v166 = vld [vmem:[%s1 + $0x118] sm:$0xff]
  %v167 = vld [vmem:[%s1 + $0x120] sm:$0xff]
  %v168 = vld [vmem:[%s1 + $0x128] sm:$0xff]
  %v169 = vld [vmem:[%s1 + $0x130] sm:$0xff]
  %v170 = vld [vmem:[%s1 + $0x138] sm:$0xff]
  %v171 = vld [vmem:[%s1 + $0x140] sm:$0x11]
  %v172 = vld [vmem:[%s1 + $0x148] sm:$0x11]
  %v215 = vunpack.c.l.b16 %v131
  %v216 = vunpack.c.h.b16 %v131
  %v217 = vunpack.c.l.b16 %v132
  %v218 = vunpack.c.h.b16 %v132
  %v219 = vunpack.c.l.b16 %v133
  %v220 = vunpack.c.h.b16 %v133
  %v221 = vunpack.c.l.b16 %v134
  %v222 = vunpack.c.h.b16 %v134
  %v223 = vunpack.c.l.b16 %v135
  %v224 = vunpack.c.h.b16 %v135
  %v225 = vunpack.c.l.b16 %v136
  %v226 = vunpack.c.h.b16 %v136
  %v227 = vunpack.c.l.b16 %v137
  %v228 = vunpack.c.h.b16 %v137
  %v229 = vunpack.c.l.b16 %v138
  %v230 = vunpack.c.h.b16 %v138
  %v231 = vunpack.c.l.b16 %v139
  %v232 = vunpack.c.h.b16 %v139
  %v233 = vunpack.c.l.b16 %v140
  %v234 = vunpack.c.h.b16 %v140
  %v235 = vunpack.c.l.b16 %v141
  %v236 = vunpack.c.h.b16 %v141
  %v237 = vunpack.c.l.b16 %v142
  %v238 = vunpack.c.h.b16 %v142
  %v239 = vunpack.c.l.b16 %v143
  %v240 = vunpack.c.h.b16 %v143
  %v241 = vunpack.c.l.b16 %v144
  %v242 = vunpack.c.h.b16 %v144
  %v243 = vunpack.c.l.b16 %v145
  %v244 = vunpack.c.h.b16 %v145
  %v245 = vunpack.c.l.b16 %v146
  %v246 = vunpack.c.h.b16 %v146
  %v247 = vunpack.c.l.b16 %v147
  %v248 = vunpack.c.h.b16 %v147
  %v249 = vunpack.c.l.b16 %v148
  %v250 = vunpack.c.h.b16 %v148
  %v251 = vunpack.c.l.b16 %v149
  %v252 = vunpack.c.h.b16 %v149
  %v253 = vunpack.c.l.b16 %v150
  %v254 = vunpack.c.h.b16 %v150
  %v255 = vunpack.c.l.b16 %v151
  %v256 = vunpack.c.h.b16 %v151
  %v257 = vunpack.c.l.b16 %v152
  %v258 = vunpack.c.h.b16 %v152
  %v259 = vunpack.c.l.b16 %v153
  %v260 = vunpack.c.h.b16 %v153
  %v261 = vunpack.c.l.b16 %v154
  %v262 = vunpack.c.h.b16 %v154
  %v263 = vunpack.c.l.b16 %v155
  %v264 = vunpack.c.h.b16 %v155
  %v265 = vunpack.c.l.b16 %v156
  %v266 = vunpack.c.h.b16 %v156
  %v267 = vunpack.c.l.b16 %v157
  %v268 = vunpack.c.h.b16 %v157
  %v269 = vunpack.c.l.b16 %v158
  %v270 = vunpack.c.h.b16 %v158
  %v271 = vunpack.c.l.b16 %v159
  %v272 = vunpack.c.h.b16 %v159
  %v273 = vunpack.c.l.b16 %v160
  %v274 = vunpack.c.h.b16 %v160
  %v275 = vunpack.c.l.b16 %v161
  %v276 = vunpack.c.h.b16 %v161
  %v277 = vunpack.c.l.b16 %v162
  %v278 = vunpack.c.h.b16 %v162
  %v279 = vunpack.c.l.b16 %v163
  %v280 = vunpack.c.h.b16 %v163
  %v281 = vunpack.c.l.b16 %v164
  %v282 = vunpack.c.h.b16 %v164
  %v283 = vunpack.c.l.b16 %v165
  %v284 = vunpack.c.h.b16 %v165
  %v285 = vunpack.c.l.b16 %v166
  %v286 = vunpack.c.h.b16 %v166
  %v287 = vunpack.c.l.b16 %v167
  %v288 = vunpack.c.h.b16 %v167
  %v289 = vunpack.c.l.b16 %v168
  %v290 = vunpack.c.h.b16 %v168
  %v291 = vunpack.c.l.b16 %v169
  %v292 = vunpack.c.h.b16 %v169
  %v293 = vunpack.c.l.b16 %v170
  %v294 = vunpack.c.h.b16 %v170
  %v295 = vunpack.c.l.b16 %v171
  %v296 = vunpack.c.h.b16 %v171
  %v297 = vunpack.c.l.b16 %v172
  %v298 = vunpack.c.h.b16 %v172
  %v299 = vpack.c.b16 %v219, %v215
  %v300 = vpack.c.b16 %v220, %v216
  %v301 = vpack.c.b16 %v221, %v217
  %v302 = vpack.c.b16 %v222, %v218
  %v303 = vpack.c.b16 %v227, %v223
  %v304 = vpack.c.b16 %v228, %v224
  %v305 = vpack.c.b16 %v229, %v225
  %v306 = vpack.c.b16 %v230, %v226
  %v307 = vpack.c.b16 %v235, %v231
  %v308 = vpack.c.b16 %v236, %v232
  %v309 = vpack.c.b16 %v237, %v233
  %v310 = vpack.c.b16 %v238, %v234
  %v311 = vpack.c.b16 %v243, %v239
  %v312 = vpack.c.b16 %v244, %v240
  %v313 = vpack.c.b16 %v245, %v241
  %v314 = vpack.c.b16 %v246, %v242
  %v315 = vpack.c.b16 %v251, %v247
  %v316 = vpack.c.b16 %v252, %v248
  %v317 = vpack.c.b16 %v253, %v249
  %v318 = vpack.c.b16 %v254, %v250
  %v319 = vpack.c.b16 %v259, %v255
  %v320 = vpack.c.b16 %v260, %v256
  %v321 = vpack.c.b16 %v261, %v257
  %v322 = vpack.c.b16 %v262, %v258
  %v323 = vpack.c.b16 %v267, %v263
  %v324 = vpack.c.b16 %v268, %v264
  %v325 = vpack.c.b16 %v269, %v265
  %v326 = vpack.c.b16 %v270, %v266
  %v327 = vpack.c.b16 %v275, %v271
  %v328 = vpack.c.b16 %v276, %v272
  %v329 = vpack.c.b16 %v277, %v273
  %v330 = vpack.c.b16 %v278, %v274
  %v331 = vpack.c.b16 %v283, %v279
  %v332 = vpack.c.b16 %v284, %v280
  %v333 = vpack.c.b16 %v285, %v281
  %v334 = vpack.c.b16 %v286, %v282
  %v335 = vpack.c.b16 %v291, %v287
  %v336 = vpack.c.b16 %v292, %v288
  %v337 = vpack.c.b16 %v293, %v289
  %v338 = vpack.c.b16 %v294, %v290
  %v339 = vpack.c.b16 %v295, %v295
  %v340 = vpack.c.b16 %v296, %v296
  %v341 = vpack.c.b16 %v297, %v297
  %v342 = vpack.c.b16 %v298, %v298
  %v451 = vunpack.c.l.b16 %v66
  %v452 = vunpack.c.l.b16 %v67
  %v453 = vunpack.c.l.b16 %v68
  %v454 = vunpack.c.l.b16 %v69
  %v455 = vunpack.c.l.b16 %v70
  %v456 = vunpack.c.l.b16 %v71
  %v457 = vunpack.c.l.b16 %v72
  %v458 = vunpack.c.l.b16 %v73
  %v459 = vunpack.c.l.b16 %v74
  %v460 = vunpack.c.l.b16 %v75
  %v461 = vunpack.c.l.b16 %v76
  %v462 = vunpack.c.l.b16 %v77
  %v463 = vunpack.c.l.b16 %v78
  %v464 = vunpack.c.l.b16 %v79
  %v465 = vunpack.c.l.b16 %v80
  %v466 = vunpack.c.l.b16 %v81
  %v467 = vunpack.c.l.b16 %v82
  %v468 = vunpack.c.l.b16 %v83
  %v469 = vunpack.c.l.b16 %v84
  %v470 = vunpack.c.l.b16 %v85
  %v471 = vunpack.c.l.b16 %v86
  %v472 = vunpack.c.l.b16 %v87
  %v473 = vunpack.c.l.b16 %v88
  %v474 = vunpack.c.l.b16 %v89
  %v475 = vunpack.c.l.b16 %v90
  %v476 = vunpack.c.l.b16 %v91
  %v477 = vunpack.c.l.b16 %v92
  %v478 = vunpack.c.l.b16 %v93
  %v479 = vunpack.c.l.b16 %v94
  %v480 = vunpack.c.l.b16 %v95
  %v481 = vunpack.c.l.b16 %v96
  %v482 = vunpack.c.l.b16 %v97
  %v483 = vunpack.c.l.b16 %v98
  %v484 = vunpack.c.l.b16 %v99
  %v485 = vunpack.c.l.b16 %v100
  %v486 = vunpack.c.l.b16 %v101
  %v487 = vunpack.c.l.b16 %v102
  %v488 = vunpack.c.l.b16 %v103
  %v489 = vunpack.c.l.b16 %v104
  %v490 = vunpack.c.l.b16 %v105
  %v491 = vunpack.c.l.b16 %v106
  %v492 = vunpack.c.l.b16 %v107
  %v493 = vunpack.c.l.b16 %v108
  %v494 = vunpack.c.l.b16 %v109
  %v495 = vunpack.c.l.b16 %v110
  %v496 = vunpack.c.l.b16 %v111
  %v497 = vunpack.c.l.b16 %v112
  %v498 = vunpack.c.l.b16 %v113
  %v499 = vunpack.c.l.b16 %v114
  %v500 = vunpack.c.l.b16 %v115
  %v501 = vunpack.c.l.b16 %v116
  %v502 = vunpack.c.l.b16 %v117
  %v503 = vunpack.c.l.b16 %v118
  %v504 = vunpack.c.l.b16 %v119
  %v505 = vunpack.c.l.b16 %v120
  %v506 = vunpack.c.l.b16 %v121
  %v507 = vunpack.c.l.b16 %v122
  %v508 = vunpack.c.l.b16 %v123
  %v509 = vunpack.c.l.b16 %v124
  %v510 = vunpack.c.l.b16 %v125
  %v511 = vunpack.c.l.b16 %v126
  %v512 = vunpack.c.l.b16 %v127
  %v513 = vunpack.c.l.b16 %v128
  %v514 = vunpack.c.l.b16 %v129
  %v515 = vpack.c.b16 %v452, %v451
  %v516 = vpack.c.b16 %v454, %v453
  %v517 = vpack.c.b16 %v456, %v455
  %v518 = vpack.c.b16 %v458, %v457
  %v519 = vpack.c.b16 %v460, %v459
  %v520 = vpack.c.b16 %v462, %v461
  %v521 = vpack.c.b16 %v464, %v463
  %v522 = vpack.c.b16 %v466, %v465
  %v523 = vpack.c.b16 %v468, %v467
  %v524 = vpack.c.b16 %v470, %v469
  %v525 = vpack.c.b16 %v472, %v471
  %v526 = vpack.c.b16 %v474, %v473
  %v527 = vpack.c.b16 %v476, %v475
  %v528 = vpack.c.b16 %v478, %v477
  %v529 = vpack.c.b16 %v480, %v479
  %v530 = vpack.c.b16 %v482, %v481
  %v531 = vpack.c.b16 %v484, %v483
  %v532 = vpack.c.b16 %v486, %v485
  %v533 = vpack.c.b16 %v488, %v487
  %v534 = vpack.c.b16 %v490, %v489
  %v535 = vpack.c.b16 %v492, %v491
  %v536 = vpack.c.b16 %v494, %v493
  %v537 = vpack.c.b16 %v496, %v495
  %v538 = vpack.c.b16 %v498, %v497
  %v539 = vpack.c.b16 %v500, %v499
  %v540 = vpack.c.b16 %v502, %v501
  %v541 = vpack.c.b16 %v504, %v503
  %v542 = vpack.c.b16 %v506, %v505
  %v543 = vpack.c.b16 %v508, %v507
  %v544 = vpack.c.b16 %v510, %v509
  %v545 = vpack.c.b16 %v512, %v511
  %v546 = vpack.c.b16 %v514, %v513
  %579 = vmatprep.subr.bf16.mxu0 0
  %580 = vmatpush1.bf16.msra.mxu0 %v515
  %581 = vmatprep.subr.bf16.mxu0 0
  %582 = vmatpush1.bf16.msra.mxu0 %v516
  %583 = vmatprep.subr.bf16.mxu0 0
  %584 = vmatpush1.bf16.msra.mxu0 %v517
  %585 = vmatprep.subr.bf16.mxu0 0
  %586 = vmatpush1.bf16.msra.mxu0 %v518
  %587 = vmatprep.subr.bf16.mxu0 0
  %588 = vmatpush1.bf16.msra.mxu0 %v519
  %589 = vmatprep.subr.bf16.mxu0 0
  %590 = vmatpush1.bf16.msra.mxu0 %v520
  %591 = vmatprep.subr.bf16.mxu0 0
  %592 = vmatpush1.bf16.msra.mxu0 %v521
  %593 = vmatprep.subr.bf16.mxu0 0
  %594 = vmatpush1.bf16.msra.mxu0 %v522
  %595 = vmatprep.subr.bf16.mxu0 0
  %596 = vmatpush1.bf16.msra.mxu0 %v523
  %597 = vmatprep.subr.bf16.mxu0 0
  %598 = vmatpush1.bf16.msra.mxu0 %v524
  %599 = vmatprep.subr.bf16.mxu0 0
  %600 = vmatpush1.bf16.msra.mxu0 %v525
  %601 = vmatprep.subr.bf16.mxu0 0
  %602 = vmatpush1.bf16.msra.mxu0 %v526
  %603 = vmatprep.subr.bf16.mxu0 0
  %604 = vmatpush1.bf16.msra.mxu0 %v527
  %605 = vmatprep.subr.bf16.mxu0 0
  %606 = vmatpush1.bf16.msra.mxu0 %v528
  %607 = vmatprep.subr.bf16.mxu0 0
  %608 = vmatpush1.bf16.msra.mxu0 %v529
  %609 = vmatprep.subr.bf16.mxu0 0
  %610 = vmatpush1.bf16.msra.mxu0 %v530
  %611 = vmatprep.mubr.bf16.mxu0 %v300
  %612 = vmatmul.mubr.bf16.gmra.mrb[0].mxu0 %v299
  %v613 = vpop.f32.mrb[0].mxu0
  %v614 = vadd.f32 0.0, %v613
  %v615 = vpop.f32.mrb[0].mxu0
  %v616 = vpop.f32.mrb[0].mxu0
  %v617 = vadd.f32 0.0, %v616
  %v618 = vpop.f32.mrb[0].mxu0
  %619 = vmatprep.mubr.bf16.mxu0 %v304
  %620 = vmatmul.mubr.bf16.gmra.mrb[0].mxu0 %v303
  %v621 = vpop.f32.mrb[0].mxu0
  %v622 = vadd.f32 0.0, %v621
  %v623 = vpop.f32.mrb[0].mxu0
  %v624 = vpop.f32.mrb[0].mxu0
  %v625 = vadd.f32 0.0, %v624
  %v626 = vpop.f32.mrb[0].mxu0
  %627 = vmatprep.mubr.bf16.mxu0 %v308
  %628 = vmatmul.mubr.bf16.gmra.mrb[0].mxu0 %v307
  %v629 = vpop.f32.mrb[0].mxu0
  %v630 = vadd.f32 0.0, %v629
  %v631 = vpop.f32.mrb[0].mxu0
  %v632 = vpop.f32.mrb[0].mxu0
  %v633 = vadd.f32 0.0, %v632
  %v634 = vpop.f32.mrb[0].mxu0
  %635 = vmatprep.mubr.bf16.mxu0 %v312
  %636 = vmatmul.mubr.bf16.gmra.mrb[0].mxu0 %v311
  %v637 = vpop.f32.mrb[0].mxu0
  %v638 = vadd.f32 0.0, %v637
  %v639 = vpop.f32.mrb[0].mxu0
  %v640 = vpop.f32.mrb[0].mxu0
  %v641 = vadd.f32 0.0, %v640
  %v642 = vpop.f32.mrb[0].mxu0
  %643 = vmatprep.mubr.bf16.mxu0 %v316
  %644 = vmatmul.mubr.bf16.gmra.mrb[0].mxu0 %v315
  %v645 = vpop.f32.mrb[0].mxu0
  %v646 = vadd.f32 0.0, %v645
  %v647 = vpop.f32.mrb[0].mxu0
  %v648 = vpop.f32.mrb[0].mxu0
  %v649 = vadd.f32 0.0, %v648
  %v650 = vpop.f32.mrb[0].mxu0
  %651 = vmatprep.mubr.bf16.mxu0 %v320
  %652 = vmatmul.mubr.bf16.gmra.mrb[0].mxu0 %v319
  %v653 = vpop.f32.mrb[0].mxu0
  %v654 = vadd.f32 0.0, %v653
  %v655 = vpop.f32.mrb[0].mxu0
  %v656 = vpop.f32.mrb[0].mxu0
  %v657 = vadd.f32 0.0, %v656
  %v658 = vpop.f32.mrb[0].mxu0
  %659 = vmatprep.mubr.bf16.mxu0 %v324
  %660 = vmatmul.mubr.bf16.gmra.mrb[0].mxu0 %v323
  %v661 = vpop.f32.mrb[0].mxu0
  %v662 = vadd.f32 0.0, %v661
  %v663 = vpop.f32.mrb[0].mxu0
  %v664 = vpop.f32.mrb[0].mxu0
  %v665 = vadd.f32 0.0, %v664
  %v666 = vpop.f32.mrb[0].mxu0
  %667 = vmatprep.mubr.bf16.mxu0 %v328
  %668 = vmatmul.mubr.bf16.gmra.mrb[0].mxu0 %v327
  %v669 = vpop.f32.mrb[0].mxu0
  %v670 = vadd.f32 0.0, %v669
  %v671 = vpop.f32.mrb[0].mxu0
  %v672 = vpop.f32.mrb[0].mxu0
  %v673 = vadd.f32 0.0, %v672
  %v674 = vpop.f32.mrb[0].mxu0
  %675 = vmatprep.mubr.bf16.mxu0 %v332
  %676 = vmatmul.mubr.bf16.gmra.mrb[0].mxu0 %v331
  %v677 = vpop.f32.mrb[0].mxu0
  %v678 = vadd.f32 0.0, %v677
  %v679 = vpop.f32.mrb[0].mxu0
  %v680 = vpop.f32.mrb[0].mxu0
  %v681 = vadd.f32 0.0, %v680
  %v682 = vpop.f32.mrb[0].mxu0
  %683 = vmatprep.mubr.bf16.mxu0 %v336
  %684 = vmatmul.mubr.bf16.gmra.mrb[0].mxu0 %v335
  %v685 = vpop.f32.mrb[0].mxu0
  %v686 = vadd.f32 0.0, %v685
  %v687 = vpop.f32.mrb[0].mxu0
  %v688 = vpop.f32.mrb[0].mxu0
  %v689 = vadd.f32 0.0, %v688
  %v690 = vpop.f32.mrb[0].mxu0
  %691 = vmatprep.mubr.bf16.mxu0 %v340
  %692 = vmatmul.mubr.bf16.gmra.mrb[0].mxu0 %v339
  %v693 = vpop.f32.mrb[0].mxu0
  %v694 = vadd.f32 0.0, %v693
  %v695 = vpop.f32.mrb[0].mxu0
  %v696 = vpop.f32.mrb[0].mxu0
  %v697 = vpop.f32.mrb[0].mxu0
  %698 = vdwg.mxu0
  %699 = vmatprep.subr.bf16.mxu0 0
  %700 = vmatpush1.bf16.msra.mxu0 %v531
  %701 = vmatprep.subr.bf16.mxu0 0
  %702 = vmatpush1.bf16.msra.mxu0 %v532
  %703 = vmatprep.subr.bf16.mxu0 0
  %704 = vmatpush1.bf16.msra.mxu0 %v533
  %705 = vmatprep.subr.bf16.mxu0 0
  %706 = vmatpush1.bf16.msra.mxu0 %v534
  %707 = vmatprep.subr.bf16.mxu0 0
  %708 = vmatpush1.bf16.msra.mxu0 %v535
  %709 = vmatprep.subr.bf16.mxu0 0
  %710 = vmatpush1.bf16.msra.mxu0 %v536
  %711 = vmatprep.subr.bf16.mxu0 0
  %712 = vmatpush1.bf16.msra.mxu0 %v537
  %713 = vmatprep.subr.bf16.mxu0 0
  %714 = vmatpush1.bf16.msra.mxu0 %v538
  %715 = vmatprep.subr.bf16.mxu0 0
  %716 = vmatpush1.bf16.msra.mxu0 %v539
  %717 = vmatprep.subr.bf16.mxu0 0
  %718 = vmatpush1.bf16.msra.mxu0 %v540
  %719 = vmatprep.subr.bf16.mxu0 0
  %720 = vmatpush1.bf16.msra.mxu0 %v541
  %721 = vmatprep.subr.bf16.mxu0 0
  %722 = vmatpush1.bf16.msra.mxu0 %v542
  %723 = vmatprep.subr.bf16.mxu0 0
  %724 = vmatpush1.bf16.msra.mxu0 %v543
  %725 = vmatprep.subr.bf16.mxu0 0
  %726 = vmatpush1.bf16.msra.mxu0 %v544
  %727 = vmatprep.subr.bf16.mxu0 0
  %728 = vmatpush1.bf16.msra.mxu0 %v545
  %729 = vmatprep.subr.bf16.mxu0 0
  %730 = vmatpush1.bf16.msra.mxu0 %v546
  %731 = vmatprep.mubr.bf16.mxu0 %v302
  %732 = vmatmul.mubr.bf16.gmra.mrb[0].mxu0 %v301
  %v733 = vpop.f32.mrb[0].mxu0
  %v734 = vadd.f32 %v614, %v733
  %v735 = vpop.f32.mrb[0].mxu0
  %v736 = vpop.f32.mrb[0].mxu0
  %v737 = vadd.f32 %v617, %v736
  %v738 = vpop.f32.mrb[0].mxu0
  %739 = vmatprep.mubr.bf16.mxu0 %v306
  %740 = vmatmul.mubr.bf16.gmra.mrb[0].mxu0 %v305
  %v741 = vpop.f32.mrb[0].mxu0
  %v742 = vadd.f32 %v622, %v741
  %v743 = vpop.f32.mrb[0].mxu0
  %v744 = vpop.f32.mrb[0].mxu0
  %v745 = vadd.f32 %v625, %v744
  %v746 = vpop.f32.mrb[0].mxu0
  %747 = vmatprep.mubr.bf16.mxu0 %v310
  %748 = vmatmul.mubr.bf16.gmra.mrb[0].mxu0 %v309
  %v749 = vpop.f32.mrb[0].mxu0
  %v750 = vadd.f32 %v630, %v749
  %v751 = vpop.f32.mrb[0].mxu0
  %v752 = vpop.f32.mrb[0].mxu0
  %v753 = vadd.f32 %v633, %v752
  %v754 = vpop.f32.mrb[0].mxu0
  %755 = vmatprep.mubr.bf16.mxu0 %v314
  %756 = vmatmul.mubr.bf16.gmra.mrb[0].mxu0 %v313
  %v757 = vpop.f32.mrb[0].mxu0
  %v758 = vadd.f32 %v638, %v757
  %v759 = vpop.f32.mrb[0].mxu0
  %v760 = vpop.f32.mrb[0].mxu0
  %v761 = vadd.f32 %v641, %v760
  %v762 = vpop.f32.mrb[0].mxu0
  %763 = vmatprep.mubr.bf16.mxu0 %v318
  %764 = vmatmul.mubr.bf16.gmra.mrb[0].mxu0 %v317
  %v765 = vpop.f32.mrb[0].mxu0
  %v766 = vadd.f32 %v646, %v765
  %v767 = vpop.f32.mrb[0].mxu0
  %v768 = vpop.f32.mrb[0].mxu0
  %v769 = vadd.f32 %v649, %v768
  %v770 = vpop.f32.mrb[0].mxu0
  %771 = vmatprep.mubr.bf16.mxu0 %v322
  %772 = vmatmul.mubr.bf16.gmra.mrb[0].mxu0 %v321
  %v773 = vpop.f32.mrb[0].mxu0
  %v774 = vadd.f32 %v654, %v773
  %v775 = vpop.f32.mrb[0].mxu0
  %v776 = vpop.f32.mrb[0].mxu0
  %v777 = vadd.f32 %v657, %v776
  %v778 = vpop.f32.mrb[0].mxu0
  %779 = vmatprep.mubr.bf16.mxu0 %v326
  %780 = vmatmul.mubr.bf16.gmra.mrb[0].mxu0 %v325
  %v781 = vpop.f32.mrb[0].mxu0
  %v782 = vadd.f32 %v662, %v781
  %v783 = vpop.f32.mrb[0].mxu0
  %v784 = vpop.f32.mrb[0].mxu0
  %v785 = vadd.f32 %v665, %v784
  %v786 = vpop.f32.mrb[0].mxu0
  %787 = vmatprep.mubr.bf16.mxu0 %v330
  %788 = vmatmul.mubr.bf16.gmra.mrb[0].mxu0 %v329
  %v789 = vpop.f32.mrb[0].mxu0
  %v790 = vadd.f32 %v670, %v789
  %v791 = vpop.f32.mrb[0].mxu0
  %v792 = vpop.f32.mrb[0].mxu0
  %v793 = vadd.f32 %v673, %v792
  %v794 = vpop.f32.mrb[0].mxu0
  %795 = vmatprep.mubr.bf16.mxu0 %v334
  %796 = vmatmul.mubr.bf16.gmra.mrb[0].mxu0 %v333
  %v797 = vpop.f32.mrb[0].mxu0
  %v798 = vadd.f32 %v678, %v797
  %v799 = vpop.f32.mrb[0].mxu0
  %v800 = vpop.f32.mrb[0].mxu0
  %v801 = vadd.f32 %v681, %v800
  %v802 = vpop.f32.mrb[0].mxu0
  %803 = vmatprep.mubr.bf16.mxu0 %v338
  %804 = vmatmul.mubr.bf16.gmra.mrb[0].mxu0 %v337
  %v805 = vpop.f32.mrb[0].mxu0
  %v806 = vadd.f32 %v686, %v805
  %v807 = vpop.f32.mrb[0].mxu0
  %v808 = vpop.f32.mrb[0].mxu0
  %v809 = vadd.f32 %v689, %v808
  %v810 = vpop.f32.mrb[0].mxu0
  %811 = vmatprep.mubr.bf16.mxu0 %v342
  %812 = vmatmul.mubr.bf16.gmra.mrb[0].mxu0 %v341
  %v813 = vpop.f32.mrb[0].mxu0
  %v814 = vadd.f32 %v694, %v813
  %v815 = vpop.f32.mrb[0].mxu0
  %v816 = vpop.f32.mrb[0].mxu0
  %v817 = vpop.f32.mrb[0].mxu0
  %818 = vdwg.mxu0
  %v819 = vpack.c.bf16 %v737, %v734
  %v820 = vpack.c.bf16 %v745, %v742
  %v821 = vpack.c.bf16 %v753, %v750
  %v822 = vpack.c.bf16 %v761, %v758
  %v823 = vpack.c.bf16 %v769, %v766
  %v824 = vpack.c.bf16 %v777, %v774
  %v825 = vpack.c.bf16 %v785, %v782
  %v826 = vpack.c.bf16 %v793, %v790
  %v827 = vpack.c.bf16 %v801, %v798
  %v828 = vpack.c.bf16 %v809, %v806
  %v829 = vpack.c.bf16 %v814, %v814
  %v830 = vld [vmem:[%s5] sm:$0xf]
  %v831 = vld [vmem:[%s5 + $0x4] sm:$0xf]
  %v832 = vld [vmem:[%s5 + $0x8] sm:$0xf]
  %v836 = vunpack.c.l.b16 %v830
  %v837 = vunpack.c.l.b16 %v831
  %v838 = vunpack.c.l.b16 %v832
  %v839 = vpack.c.b16 %v837, %v836
  %v840 = vpack.c.b16 %v838, %v838
  %vm842 = vcmask 195584
  %v844 = vsel %vm842, %v819, 0
  %v847 = vsel %vm842, %v820, 0
  %v850 = vsel %vm842, %v821, 0
  %v853 = vsel %vm842, %v822, 0
  %v856 = vsel %vm842, %v823, 0
  %v859 = vsel %vm842, %v824, 0
  %v862 = vsel %vm842, %v825, 0
  %v865 = vsel %vm842, %v826, 0
  %v868 = vsel %vm842, %v827, 0
  %v871 = vsel %vm842, %v828, 0
  %v874 = vsel %vm842, %v829, 0
  %vm876 = vcmask 1043456
  %v878 = vsel %vm876, %v840, 0
  %880 = vmatprep.subr.bf16.mxu0 0
  %881 = vmatpush1.bf16.msra.mxu0 %v839
  %882 = vmatprep.subr.bf16.mxu0 0
  %883 = vmatpush1.bf16.msra.mxu0 %v878
  %884 = vmatprep.subr.bf16.mxu0 0
  %885 = vmatpush1.bf16.msra.mxu0 0
  %886 = vmatprep.subr.bf16.mxu0 0
  %887 = vmatpush1.bf16.msra.mxu0 0
  %888 = vmatprep.subr.bf16.mxu0 0
  %889 = vmatpush1.bf16.msra.mxu0 0
  %890 = vmatprep.subr.bf16.mxu0 0
  %891 = vmatpush1.bf16.msra.mxu0 0
  %892 = vmatprep.subr.bf16.mxu0 0
  %893 = vmatpush1.bf16.msra.mxu0 0
  %894 = vmatprep.subr.bf16.mxu0 0
  %895 = vmatpush1.bf16.msra.mxu0 0
  %896 = vmatprep.subr.bf16.mxu0 0
  %897 = vmatpush1.bf16.msra.mxu0 0
  %898 = vmatprep.subr.bf16.mxu0 0
  %899 = vmatpush1.bf16.msra.mxu0 0
  %900 = vmatprep.subr.bf16.mxu0 0
  %901 = vmatpush1.bf16.msra.mxu0 0
  %902 = vmatprep.subr.bf16.mxu0 0
  %903 = vmatpush1.bf16.msra.mxu0 0
  %904 = vmatprep.subr.bf16.mxu0 0
  %905 = vmatpush1.bf16.msra.mxu0 0
  %906 = vmatprep.subr.bf16.mxu0 0
  %907 = vmatpush1.bf16.msra.mxu0 0
  %908 = vmatprep.subr.bf16.mxu0 0
  %909 = vmatpush1.bf16.msra.mxu0 0
  %910 = vmatprep.subr.bf16.mxu0 0
  %911 = vmatpush1.bf16.msra.mxu0 0
  %912 = vmatprep.mubr.bf16.mxu0 0
  %913 = vmatmul.mubr.bf16.gmra.mrb[0].mxu0 %v844
  %v914 = vpop.f32.mrb[0].mxu0
  %v915 = vadd.f32 0.0, %v914
  %v916 = vpop.f32.mrb[0].mxu0
  %v917 = vpop.f32.mrb[0].mxu0
  %v918 = vadd.f32 0.0, %v917
  %v919 = vpop.f32.mrb[0].mxu0
  %920 = vmatprep.mubr.bf16.mxu0 0
  %921 = vmatmul.mubr.bf16.gmra.mrb[0].mxu0 %v847
  %v922 = vpop.f32.mrb[0].mxu0
  %v923 = vadd.f32 0.0, %v922
  %v924 = vpop.f32.mrb[0].mxu0
  %v925 = vpop.f32.mrb[0].mxu0
  %v926 = vadd.f32 0.0, %v925
  %v927 = vpop.f32.mrb[0].mxu0
  %928 = vmatprep.mubr.bf16.mxu0 0
  %929 = vmatmul.mubr.bf16.gmra.mrb[0].mxu0 %v850
  %v930 = vpop.f32.mrb[0].mxu0
  %v931 = vadd.f32 0.0, %v930
  %v932 = vpop.f32.mrb[0].mxu0
  %v933 = vpop.f32.mrb[0].mxu0
  %v934 = vadd.f32 0.0, %v933
  %v935 = vpop.f32.mrb[0].mxu0
  %936 = vmatprep.mubr.bf16.mxu0 0
  %937 = vmatmul.mubr.bf16.gmra.mrb[0].mxu0 %v853
  %v938 = vpop.f32.mrb[0].mxu0
  %v939 = vadd.f32 0.0, %v938
  %v940 = vpop.f32.mrb[0].mxu0
  %v941 = vpop.f32.mrb[0].mxu0
  %v942 = vadd.f32 0.0, %v941
  %v943 = vpop.f32.mrb[0].mxu0
  %944 = vmatprep.mubr.bf16.mxu0 0
  %945 = vmatmul.mubr.bf16.gmra.mrb[0].mxu0 %v856
  %v946 = vpop.f32.mrb[0].mxu0
  %v947 = vadd.f32 0.0, %v946
  %v948 = vpop.f32.mrb[0].mxu0
  %v949 = vpop.f32.mrb[0].mxu0
  %v950 = vadd.f32 0.0, %v949
  %v951 = vpop.f32.mrb[0].mxu0
  %952 = vmatprep.mubr.bf16.mxu0 0
  %953 = vmatmul.mubr.bf16.gmra.mrb[0].mxu0 %v859
  %v954 = vpop.f32.mrb[0].mxu0
  %v955 = vadd.f32 0.0, %v954
  %v956 = vpop.f32.mrb[0].mxu0
  %v957 = vpop.f32.mrb[0].mxu0
  %v958 = vadd.f32 0.0, %v957
  %v959 = vpop.f32.mrb[0].mxu0
  %960 = vmatprep.mubr.bf16.mxu0 0
  %961 = vmatmul.mubr.bf16.gmra.mrb[0].mxu0 %v862
  %v962 = vpop.f32.mrb[0].mxu0
  %v963 = vadd.f32 0.0, %v962
  %v964 = vpop.f32.mrb[0].mxu0
  %v965 = vpop.f32.mrb[0].mxu0
  %v966 = vadd.f32 0.0, %v965
  %v967 = vpop.f32.mrb[0].mxu0
  %968 = vmatprep.mubr.bf16.mxu0 0
  %969 = vmatmul.mubr.bf16.gmra.mrb[0].mxu0 %v865
  %v970 = vpop.f32.mrb[0].mxu0
  %v971 = vadd.f32 0.0, %v970
  %v972 = vpop.f32.mrb[0].mxu0
  %v973 = vpop.f32.mrb[0].mxu0
  %v974 = vadd.f32 0.0, %v973
  %v975 = vpop.f32.mrb[0].mxu0
  %976 = vmatprep.mubr.bf16.mxu0 0
  %977 = vmatmul.mubr.bf16.gmra.mrb[0].mxu0 %v868
  %v978 = vpop.f32.mrb[0].mxu0
  %v979 = vadd.f32 0.0, %v978
  %v980 = vpop.f32.mrb[0].mxu0
  %v981 = vpop.f32.mrb[0].mxu0
  %v982 = vadd.f32 0.0, %v981
  %v983 = vpop.f32.mrb[0].mxu0
  %984 = vmatprep.mubr.bf16.mxu0 0
  %985 = vmatmul.mubr.bf16.gmra.mrb[0].mxu0 %v871
  %v986 = vpop.f32.mrb[0].mxu0
  %v987 = vadd.f32 0.0, %v986
  %v988 = vpop.f32.mrb[0].mxu0
  %v989 = vpop.f32.mrb[0].mxu0
  %v990 = vadd.f32 0.0, %v989
  %v991 = vpop.f32.mrb[0].mxu0
  %992 = vmatprep.mubr.bf16.mxu0 0
  %993 = vmatmul.mubr.bf16.gmra.mrb[0].mxu0 %v874
  %v994 = vpop.f32.mrb[0].mxu0
  %v995 = vadd.f32 0.0, %v994
  %v996 = vpop.f32.mrb[0].mxu0
  %v997 = vpop.f32.mrb[0].mxu0
  %v998 = vpop.f32.mrb[0].mxu0
  %999 = vdwg.mxu0
  %v1001 = vlaneseq
  %v1002 = vshrl.u32 %v1001, 7
  %v1003 = vsub.s32 0, %v1002
  %v1004 = vrot.slane %v130, %v1003
  %v1006 = vadd.f32 %v1004, %v915
  %v1007 = vadd.f32 %v1004, %v918
  %v1008 = vadd.f32 %v1004, %v923
  %v1009 = vadd.f32 %v1004, %v926
  %v1010 = vadd.f32 %v1004, %v931
  %v1011 = vadd.f32 %v1004, %v934
  %v1012 = vadd.f32 %v1004, %v939
  %v1013 = vadd.f32 %v1004, %v942
  %v1014 = vadd.f32 %v1004, %v947
  %v1015 = vadd.f32 %v1004, %v950
  %v1016 = vadd.f32 %v1004, %v955
  %v1017 = vadd.f32 %v1004, %v958
  %v1018 = vadd.f32 %v1004, %v963
  %v1019 = vadd.f32 %v1004, %v966
  %v1020 = vadd.f32 %v1004, %v971
  %v1021 = vadd.f32 %v1004, %v974
  %v1022 = vadd.f32 %v1004, %v979
  %v1023 = vadd.f32 %v1004, %v982
  %v1024 = vadd.f32 %v1004, %v987
  %v1025 = vadd.f32 %v1004, %v990
  %v1026 = vadd.f32 %v1004, %v995
  %s1027 = scalar_lea.vmem %s1, 336
  %v1028 = vld [vmem:[%s1027] sm:$0xff]
  %v1029 = vld [vmem:[%s1027 + $0x8] sm:$0xff]
  %v1030 = vld [vmem:[%s1027 + $0x10] sm:$0xff]
  %v1031 = vld [vmem:[%s1027 + $0x18] sm:$0xff]
  %v1032 = vld [vmem:[%s1027 + $0x20] sm:$0xff]
  %v1033 = vld [vmem:[%s1027 + $0x28] sm:$0xff]
  %v1034 = vld [vmem:[%s1027 + $0x30] sm:$0xff]
  %v1035 = vld [vmem:[%s1027 + $0x38] sm:$0xff]
  %v1036 = vld [vmem:[%s1027 + $0x40] sm:$0xff]
  %v1037 = vld [vmem:[%s1027 + $0x48] sm:$0xff]
  %v1038 = vld [vmem:[%s1027 + $0x50] sm:$0xff]
  %v1039 = vld [vmem:[%s1027 + $0x58] sm:$0xff]
  %v1040 = vld [vmem:[%s1027 + $0x60] sm:$0xff]
  %v1041 = vld [vmem:[%s1027 + $0x68] sm:$0xff]
  %v1042 = vld [vmem:[%s1027 + $0x70] sm:$0xff]
  %v1043 = vld [vmem:[%s1027 + $0x78] sm:$0xff]
  %v1044 = vld [vmem:[%s1027 + $0x80] sm:$0xff]
  %v1045 = vld [vmem:[%s1027 + $0x88] sm:$0xff]
  %v1046 = vld [vmem:[%s1027 + $0x90] sm:$0xff]
  %v1047 = vld [vmem:[%s1027 + $0x98] sm:$0xff]
  %v1048 = vld [vmem:[%s1027 + $0xa0] sm:$0xff]
  %v1049 = vld [vmem:[%s1027 + $0xa8] sm:$0xff]
  %v1050 = vld [vmem:[%s1027 + $0xb0] sm:$0xff]
  %v1051 = vld [vmem:[%s1027 + $0xb8] sm:$0xff]
  %v1052 = vld [vmem:[%s1027 + $0xc0] sm:$0xff]
  %v1053 = vld [vmem:[%s1027 + $0xc8] sm:$0xff]
  %v1054 = vld [vmem:[%s1027 + $0xd0] sm:$0xff]
  %v1055 = vld [vmem:[%s1027 + $0xd8] sm:$0xff]
  %v1056 = vld [vmem:[%s1027 + $0xe0] sm:$0xff]
  %v1057 = vld [vmem:[%s1027 + $0xe8] sm:$0xff]
  %v1058 = vld [vmem:[%s1027 + $0xf0] sm:$0xff]
  %v1059 = vld [vmem:[%s1027 + $0xf8] sm:$0xff]
  %v1060 = vld [vmem:[%s1027 + $0x100] sm:$0xff]
  %v1061 = vld [vmem:[%s1027 + $0x108] sm:$0xff]
  %v1062 = vld [vmem:[%s1027 + $0x110] sm:$0xff]
  %v1063 = vld [vmem:[%s1027 + $0x118] sm:$0xff]
  %v1064 = vld [vmem:[%s1027 + $0x120] sm:$0xff]
  %v1065 = vld [vmem:[%s1027 + $0x128] sm:$0xff]
  %v1066 = vld [vmem:[%s1027 + $0x130] sm:$0xff]
  %v1067 = vld [vmem:[%s1027 + $0x138] sm:$0xff]
  %v1068 = vld [vmem:[%s1027 + $0x140] sm:$0x11]
  %v1069 = vld [vmem:[%s1027 + $0x148] sm:$0x11]
  %v1112 = vunpack.c.l.b16 %v1028
  %v1113 = vunpack.c.h.b16 %v1028
  %v1114 = vunpack.c.l.b16 %v1029
  %v1115 = vunpack.c.h.b16 %v1029
  %v1116 = vunpack.c.l.b16 %v1030
  %v1117 = vunpack.c.h.b16 %v1030
  %v1118 = vunpack.c.l.b16 %v1031
  %v1119 = vunpack.c.h.b16 %v1031
  %v1120 = vunpack.c.l.b16 %v1032
  %v1121 = vunpack.c.h.b16 %v1032
  %v1122 = vunpack.c.l.b16 %v1033
  %v1123 = vunpack.c.h.b16 %v1033
  %v1124 = vunpack.c.l.b16 %v1034
  %v1125 = vunpack.c.h.b16 %v1034
  %v1126 = vunpack.c.l.b16 %v1035
  %v1127 = vunpack.c.h.b16 %v1035
  %v1128 = vunpack.c.l.b16 %v1036
  %v1129 = vunpack.c.h.b16 %v1036
  %v1130 = vunpack.c.l.b16 %v1037
  %v1131 = vunpack.c.h.b16 %v1037
  %v1132 = vunpack.c.l.b16 %v1038
  %v1133 = vunpack.c.h.b16 %v1038
  %v1134 = vunpack.c.l.b16 %v1039
  %v1135 = vunpack.c.h.b16 %v1039
  %v1136 = vunpack.c.l.b16 %v1040
  %v1137 = vunpack.c.h.b16 %v1040
  %v1138 = vunpack.c.l.b16 %v1041
  %v1139 = vunpack.c.h.b16 %v1041
  %v1140 = vunpack.c.l.b16 %v1042
  %v1141 = vunpack.c.h.b16 %v1042
  %v1142 = vunpack.c.l.b16 %v1043
  %v1143 = vunpack.c.h.b16 %v1043
  %v1144 = vunpack.c.l.b16 %v1044
  %v1145 = vunpack.c.h.b16 %v1044
  %v1146 = vunpack.c.l.b16 %v1045
  %v1147 = vunpack.c.h.b16 %v1045
  %v1148 = vunpack.c.l.b16 %v1046
  %v1149 = vunpack.c.h.b16 %v1046
  %v1150 = vunpack.c.l.b16 %v1047
  %v1151 = vunpack.c.h.b16 %v1047
  %v1152 = vunpack.c.l.b16 %v1048
  %v1153 = vunpack.c.h.b16 %v1048
  %v1154 = vunpack.c.l.b16 %v1049
  %v1155 = vunpack.c.h.b16 %v1049
  %v1156 = vunpack.c.l.b16 %v1050
  %v1157 = vunpack.c.h.b16 %v1050
  %v1158 = vunpack.c.l.b16 %v1051
  %v1159 = vunpack.c.h.b16 %v1051
  %v1160 = vunpack.c.l.b16 %v1052
  %v1161 = vunpack.c.h.b16 %v1052
  %v1162 = vunpack.c.l.b16 %v1053
  %v1163 = vunpack.c.h.b16 %v1053
  %v1164 = vunpack.c.l.b16 %v1054
  %v1165 = vunpack.c.h.b16 %v1054
  %v1166 = vunpack.c.l.b16 %v1055
  %v1167 = vunpack.c.h.b16 %v1055
  %v1168 = vunpack.c.l.b16 %v1056
  %v1169 = vunpack.c.h.b16 %v1056
  %v1170 = vunpack.c.l.b16 %v1057
  %v1171 = vunpack.c.h.b16 %v1057
  %v1172 = vunpack.c.l.b16 %v1058
  %v1173 = vunpack.c.h.b16 %v1058
  %v1174 = vunpack.c.l.b16 %v1059
  %v1175 = vunpack.c.h.b16 %v1059
  %v1176 = vunpack.c.l.b16 %v1060
  %v1177 = vunpack.c.h.b16 %v1060
  %v1178 = vunpack.c.l.b16 %v1061
  %v1179 = vunpack.c.h.b16 %v1061
  %v1180 = vunpack.c.l.b16 %v1062
  %v1181 = vunpack.c.h.b16 %v1062
  %v1182 = vunpack.c.l.b16 %v1063
  %v1183 = vunpack.c.h.b16 %v1063
  %v1184 = vunpack.c.l.b16 %v1064
  %v1185 = vunpack.c.h.b16 %v1064
  %v1186 = vunpack.c.l.b16 %v1065
  %v1187 = vunpack.c.h.b16 %v1065
  %v1188 = vunpack.c.l.b16 %v1066
  %v1189 = vunpack.c.h.b16 %v1066
  %v1190 = vunpack.c.l.b16 %v1067
  %v1191 = vunpack.c.h.b16 %v1067
  %v1192 = vunpack.c.l.b16 %v1068
  %v1193 = vunpack.c.h.b16 %v1068
  %v1194 = vunpack.c.l.b16 %v1069
  %v1195 = vunpack.c.h.b16 %v1069
  %v1196 = vpack.c.b16 %v1116, %v1112
  %v1197 = vpack.c.b16 %v1117, %v1113
  %v1198 = vpack.c.b16 %v1118, %v1114
  %v1199 = vpack.c.b16 %v1119, %v1115
  %v1200 = vpack.c.b16 %v1124, %v1120
  %v1201 = vpack.c.b16 %v1125, %v1121
  %v1202 = vpack.c.b16 %v1126, %v1122
  %v1203 = vpack.c.b16 %v1127, %v1123
  %v1204 = vpack.c.b16 %v1132, %v1128
  %v1205 = vpack.c.b16 %v1133, %v1129
  %v1206 = vpack.c.b16 %v1134, %v1130
  %v1207 = vpack.c.b16 %v1135, %v1131
  %v1208 = vpack.c.b16 %v1140, %v1136
  %v1209 = vpack.c.b16 %v1141, %v1137
  %v1210 = vpack.c.b16 %v1142, %v1138
  %v1211 = vpack.c.b16 %v1143, %v1139
  %v1212 = vpack.c.b16 %v1148, %v1144
  %v1213 = vpack.c.b16 %v1149, %v1145
  %v1214 = vpack.c.b16 %v1150, %v1146
  %v1215 = vpack.c.b16 %v1151, %v1147
  %v1216 = vpack.c.b16 %v1156, %v1152
  %v1217 = vpack.c.b16 %v1157, %v1153
  %v1218 = vpack.c.b16 %v1158, %v1154
  %v1219 = vpack.c.b16 %v1159, %v1155
  %v1220 = vpack.c.b16 %v1164, %v1160
  %v1221 = vpack.c.b16 %v1165, %v1161
  %v1222 = vpack.c.b16 %v1166, %v1162
  %v1223 = vpack.c.b16 %v1167, %v1163
  %v1224 = vpack.c.b16 %v1172, %v1168
  %v1225 = vpack.c.b16 %v1173, %v1169
  %v1226 = vpack.c.b16 %v1174, %v1170
  %v1227 = vpack.c.b16 %v1175, %v1171
  %v1228 = vpack.c.b16 %v1180, %v1176
  %v1229 = vpack.c.b16 %v1181, %v1177
  %v1230 = vpack.c.b16 %v1182, %v1178
  %v1231 = vpack.c.b16 %v1183, %v1179
  %v1232 = vpack.c.b16 %v1188, %v1184
  %v1233 = vpack.c.b16 %v1189, %v1185
  %v1234 = vpack.c.b16 %v1190, %v1186
  %v1235 = vpack.c.b16 %v1191, %v1187
  %v1236 = vpack.c.b16 %v1192, %v1192
  %v1237 = vpack.c.b16 %v1193, %v1193
  %v1238 = vpack.c.b16 %v1194, %v1194
  %v1239 = vpack.c.b16 %v1195, %v1195
  %1284 = vmatprep.subr.bf16.mxu0 0
  %1285 = vmatpush1.bf16.msra.mxu0 %v515
  %1286 = vmatprep.subr.bf16.mxu0 0
  %1287 = vmatpush1.bf16.msra.mxu0 %v516
  %1288 = vmatprep.subr.bf16.mxu0 0
  %1289 = vmatpush1.bf16.msra.mxu0 %v517
  %1290 = vmatprep.subr.bf16.mxu0 0
  %1291 = vmatpush1.bf16.msra.mxu0 %v518
  %1292 = vmatprep.subr.bf16.mxu0 0
  %1293 = vmatpush1.bf16.msra.mxu0 %v519
  %1294 = vmatprep.subr.bf16.mxu0 0
  %1295 = vmatpush1.bf16.msra.mxu0 %v520
  %1296 = vmatprep.subr.bf16.mxu0 0
  %1297 = vmatpush1.bf16.msra.mxu0 %v521
  %1298 = vmatprep.subr.bf16.mxu0 0
  %1299 = vmatpush1.bf16.msra.mxu0 %v522
  %1300 = vmatprep.subr.bf16.mxu0 0
  %1301 = vmatpush1.bf16.msra.mxu0 %v523
  %1302 = vmatprep.subr.bf16.mxu0 0
  %1303 = vmatpush1.bf16.msra.mxu0 %v524
  %1304 = vmatprep.subr.bf16.mxu0 0
  %1305 = vmatpush1.bf16.msra.mxu0 %v525
  %1306 = vmatprep.subr.bf16.mxu0 0
  %1307 = vmatpush1.bf16.msra.mxu0 %v526
  %1308 = vmatprep.subr.bf16.mxu0 0
  %1309 = vmatpush1.bf16.msra.mxu0 %v527
  %1310 = vmatprep.subr.bf16.mxu0 0
  %1311 = vmatpush1.bf16.msra.mxu0 %v528
  %1312 = vmatprep.subr.bf16.mxu0 0
  %1313 = vmatpush1.bf16.msra.mxu0 %v529
  %1314 = vmatprep.subr.bf16.mxu0 0
  %1315 = vmatpush1.bf16.msra.mxu0 %v530
  %1316 = vmatprep.mubr.bf16.mxu0 %v1197
  %1317 = vmatmul.mubr.bf16.gmra.mrb[0].mxu0 %v1196
  %v1318 = vpop.f32.mrb[0].mxu0
  %v1319 = vadd.f32 0.0, %v1318
  %v1320 = vpop.f32.mrb[0].mxu0
  %v1321 = vpop.f32.mrb[0].mxu0
  %v1322 = vadd.f32 0.0, %v1321
  %v1323 = vpop.f32.mrb[0].mxu0
  %1324 = vmatprep.mubr.bf16.mxu0 %v1201
  %1325 = vmatmul.mubr.bf16.gmra.mrb[0].mxu0 %v1200
  %v1326 = vpop.f32.mrb[0].mxu0
  %v1327 = vadd.f32 0.0, %v1326
  %v1328 = vpop.f32.mrb[0].mxu0
  %v1329 = vpop.f32.mrb[0].mxu0
  %v1330 = vadd.f32 0.0, %v1329
  %v1331 = vpop.f32.mrb[0].mxu0
  %1332 = vmatprep.mubr.bf16.mxu0 %v1205
  %1333 = vmatmul.mubr.bf16.gmra.mrb[0].mxu0 %v1204
  %v1334 = vpop.f32.mrb[0].mxu0
  %v1335 = vadd.f32 0.0, %v1334
  %v1336 = vpop.f32.mrb[0].mxu0
  %v1337 = vpop.f32.mrb[0].mxu0
  %v1338 = vadd.f32 0.0, %v1337
  %v1339 = vpop.f32.mrb[0].mxu0
  %1340 = vmatprep.mubr.bf16.mxu0 %v1209
  %1341 = vmatmul.mubr.bf16.gmra.mrb[0].mxu0 %v1208
  %v1342 = vpop.f32.mrb[0].mxu0
  %v1343 = vadd.f32 0.0, %v1342
  %v1344 = vpop.f32.mrb[0].mxu0
  %v1345 = vpop.f32.mrb[0].mxu0
  %v1346 = vadd.f32 0.0, %v1345
  %v1347 = vpop.f32.mrb[0].mxu0
  %1348 = vmatprep.mubr.bf16.mxu0 %v1213
  %1349 = vmatmul.mubr.bf16.gmra.mrb[0].mxu0 %v1212
  %v1350 = vpop.f32.mrb[0].mxu0
  %v1351 = vadd.f32 0.0, %v1350
  %v1352 = vpop.f32.mrb[0].mxu0
  %v1353 = vpop.f32.mrb[0].mxu0
  %v1354 = vadd.f32 0.0, %v1353
  %v1355 = vpop.f32.mrb[0].mxu0
  %1356 = vmatprep.mubr.bf16.mxu0 %v1217
  %1357 = vmatmul.mubr.bf16.gmra.mrb[0].mxu0 %v1216
  %v1358 = vpop.f32.mrb[0].mxu0
  %v1359 = vadd.f32 0.0, %v1358
  %v1360 = vpop.f32.mrb[0].mxu0
  %v1361 = vpop.f32.mrb[0].mxu0
  %v1362 = vadd.f32 0.0, %v1361
  %v1363 = vpop.f32.mrb[0].mxu0
  %1364 = vmatprep.mubr.bf16.mxu0 %v1221
  %1365 = vmatmul.mubr.bf16.gmra.mrb[0].mxu0 %v1220
  %v1366 = vpop.f32.mrb[0].mxu0
  %v1367 = vadd.f32 0.0, %v1366
  %v1368 = vpop.f32.mrb[0].mxu0
  %v1369 = vpop.f32.mrb[0].mxu0
  %v1370 = vadd.f32 0.0, %v1369
  %v1371 = vpop.f32.mrb[0].mxu0
  %1372 = vmatprep.mubr.bf16.mxu0 %v1225
  %1373 = vmatmul.mubr.bf16.gmra.mrb[0].mxu0 %v1224
  %v1374 = vpop.f32.mrb[0].mxu0
  %v1375 = vadd.f32 0.0, %v1374
  %v1376 = vpop.f32.mrb[0].mxu0
  %v1377 = vpop.f32.mrb[0].mxu0
  %v1378 = vadd.f32 0.0, %v1377
  %v1379 = vpop.f32.mrb[0].mxu0
  %1380 = vmatprep.mubr.bf16.mxu0 %v1229
  %1381 = vmatmul.mubr.bf16.gmra.mrb[0].mxu0 %v1228
  %v1382 = vpop.f32.mrb[0].mxu0
  %v1383 = vadd.f32 0.0, %v1382
  %v1384 = vpop.f32.mrb[0].mxu0
  %v1385 = vpop.f32.mrb[0].mxu0
  %v1386 = vadd.f32 0.0, %v1385
  %v1387 = vpop.f32.mrb[0].mxu0
  %1388 = vmatprep.mubr.bf16.mxu0 %v1233
  %1389 = vmatmul.mubr.bf16.gmra.mrb[0].mxu0 %v1232
  %v1390 = vpop.f32.mrb[0].mxu0
  %v1391 = vadd.f32 0.0, %v1390
  %v1392 = vpop.f32.mrb[0].mxu0
  %v1393 = vpop.f32.mrb[0].mxu0
  %v1394 = vadd.f32 0.0, %v1393
  %v1395 = vpop.f32.mrb[0].mxu0
  %1396 = vmatprep.mubr.bf16.mxu0 %v1237
  %1397 = vmatmul.mubr.bf16.gmra.mrb[0].mxu0 %v1236
  %v1398 = vpop.f32.mrb[0].mxu0
  %v1399 = vadd.f32 0.0, %v1398
  %v1400 = vpop.f32.mrb[0].mxu0
  %v1401 = vpop.f32.mrb[0].mxu0
  %v1402 = vpop.f32.mrb[0].mxu0
  %1403 = vdwg.mxu0
  %1404 = vmatprep.subr.bf16.mxu0 0
  %1405 = vmatpush1.bf16.msra.mxu0 %v531
  %1406 = vmatprep.subr.bf16.mxu0 0
  %1407 = vmatpush1.bf16.msra.mxu0 %v532
  %1408 = vmatprep.subr.bf16.mxu0 0
  %1409 = vmatpush1.bf16.msra.mxu0 %v533
  %1410 = vmatprep.subr.bf16.mxu0 0
  %1411 = vmatpush1.bf16.msra.mxu0 %v534
  %1412 = vmatprep.subr.bf16.mxu0 0
  %1413 = vmatpush1.bf16.msra.mxu0 %v535
  %1414 = vmatprep.subr.bf16.mxu0 0
  %1415 = vmatpush1.bf16.msra.mxu0 %v536
  %1416 = vmatprep.subr.bf16.mxu0 0
  %1417 = vmatpush1.bf16.msra.mxu0 %v537
  %1418 = vmatprep.subr.bf16.mxu0 0
  %1419 = vmatpush1.bf16.msra.mxu0 %v538
  %1420 = vmatprep.subr.bf16.mxu0 0
  %1421 = vmatpush1.bf16.msra.mxu0 %v539
  %1422 = vmatprep.subr.bf16.mxu0 0
  %1423 = vmatpush1.bf16.msra.mxu0 %v540
  %1424 = vmatprep.subr.bf16.mxu0 0
  %1425 = vmatpush1.bf16.msra.mxu0 %v541
  %1426 = vmatprep.subr.bf16.mxu0 0
  %1427 = vmatpush1.bf16.msra.mxu0 %v542
  %1428 = vmatprep.subr.bf16.mxu0 0
  %1429 = vmatpush1.bf16.msra.mxu0 %v543
  %1430 = vmatprep.subr.bf16.mxu0 0
  %1431 = vmatpush1.bf16.msra.mxu0 %v544
  %1432 = vmatprep.subr.bf16.mxu0 0
  %1433 = vmatpush1.bf16.msra.mxu0 %v545
  %1434 = vmatprep.subr.bf16.mxu0 0
  %1435 = vmatpush1.bf16.msra.mxu0 %v546
  %1436 = vmatprep.mubr.bf16.mxu0 %v1199
  %1437 = vmatmul.mubr.bf16.gmra.mrb[0].mxu0 %v1198
  %v1438 = vpop.f32.mrb[0].mxu0
  %v1439 = vadd.f32 %v1319, %v1438
  %v1440 = vpop.f32.mrb[0].mxu0
  %v1441 = vpop.f32.mrb[0].mxu0
  %v1442 = vadd.f32 %v1322, %v1441
  %v1443 = vpop.f32.mrb[0].mxu0
  %1444 = vmatprep.mubr.bf16.mxu0 %v1203
  %1445 = vmatmul.mubr.bf16.gmra.mrb[0].mxu0 %v1202
  %v1446 = vpop.f32.mrb[0].mxu0
  %v1447 = vadd.f32 %v1327, %v1446
  %v1448 = vpop.f32.mrb[0].mxu0
  %v1449 = vpop.f32.mrb[0].mxu0
  %v1450 = vadd.f32 %v1330, %v1449
  %v1451 = vpop.f32.mrb[0].mxu0
  %1452 = vmatprep.mubr.bf16.mxu0 %v1207
  %1453 = vmatmul.mubr.bf16.gmra.mrb[0].mxu0 %v1206
  %v1454 = vpop.f32.mrb[0].mxu0
  %v1455 = vadd.f32 %v1335, %v1454
  %v1456 = vpop.f32.mrb[0].mxu0
  %v1457 = vpop.f32.mrb[0].mxu0
  %v1458 = vadd.f32 %v1338, %v1457
  %v1459 = vpop.f32.mrb[0].mxu0
  %1460 = vmatprep.mubr.bf16.mxu0 %v1211
  %1461 = vmatmul.mubr.bf16.gmra.mrb[0].mxu0 %v1210
  %v1462 = vpop.f32.mrb[0].mxu0
  %v1463 = vadd.f32 %v1343, %v1462
  %v1464 = vpop.f32.mrb[0].mxu0
  %v1465 = vpop.f32.mrb[0].mxu0
  %v1466 = vadd.f32 %v1346, %v1465
  %v1467 = vpop.f32.mrb[0].mxu0
  %1468 = vmatprep.mubr.bf16.mxu0 %v1215
  %1469 = vmatmul.mubr.bf16.gmra.mrb[0].mxu0 %v1214
  %v1470 = vpop.f32.mrb[0].mxu0
  %v1471 = vadd.f32 %v1351, %v1470
  %v1472 = vpop.f32.mrb[0].mxu0
  %v1473 = vpop.f32.mrb[0].mxu0
  %v1474 = vadd.f32 %v1354, %v1473
  %v1475 = vpop.f32.mrb[0].mxu0
  %1476 = vmatprep.mubr.bf16.mxu0 %v1219
  %1477 = vmatmul.mubr.bf16.gmra.mrb[0].mxu0 %v1218
  %v1478 = vpop.f32.mrb[0].mxu0
  %v1479 = vadd.f32 %v1359, %v1478
  %v1480 = vpop.f32.mrb[0].mxu0
  %v1481 = vpop.f32.mrb[0].mxu0
  %v1482 = vadd.f32 %v1362, %v1481
  %v1483 = vpop.f32.mrb[0].mxu0
  %1484 = vmatprep.mubr.bf16.mxu0 %v1223
  %1485 = vmatmul.mubr.bf16.gmra.mrb[0].mxu0 %v1222
  %v1486 = vpop.f32.mrb[0].mxu0
  %v1487 = vadd.f32 %v1367, %v1486
  %v1488 = vpop.f32.mrb[0].mxu0
  %v1489 = vpop.f32.mrb[0].mxu0
  %v1490 = vadd.f32 %v1370, %v1489
  %v1491 = vpop.f32.mrb[0].mxu0
  %1492 = vmatprep.mubr.bf16.mxu0 %v1227
  %1493 = vmatmul.mubr.bf16.gmra.mrb[0].mxu0 %v1226
  %v1494 = vpop.f32.mrb[0].mxu0
  %v1495 = vadd.f32 %v1375, %v1494
  %v1496 = vpop.f32.mrb[0].mxu0
  %v1497 = vpop.f32.mrb[0].mxu0
  %v1498 = vadd.f32 %v1378, %v1497
  %v1499 = vpop.f32.mrb[0].mxu0
  %1500 = vmatprep.mubr.bf16.mxu0 %v1231
  %1501 = vmatmul.mubr.bf16.gmra.mrb[0].mxu0 %v1230
  %v1502 = vpop.f32.mrb[0].mxu0
  %v1503 = vadd.f32 %v1383, %v1502
  %v1504 = vpop.f32.mrb[0].mxu0
  %v1505 = vpop.f32.mrb[0].mxu0
  %v1506 = vadd.f32 %v1386, %v1505
  %v1507 = vpop.f32.mrb[0].mxu0
  %1508 = vmatprep.mubr.bf16.mxu0 %v1235
  %1509 = vmatmul.mubr.bf16.gmra.mrb[0].mxu0 %v1234
  %v1510 = vpop.f32.mrb[0].mxu0
  %v1511 = vadd.f32 %v1391, %v1510
  %v1512 = vpop.f32.mrb[0].mxu0
  %v1513 = vpop.f32.mrb[0].mxu0
  %v1514 = vadd.f32 %v1394, %v1513
  %v1515 = vpop.f32.mrb[0].mxu0
  %1516 = vmatprep.mubr.bf16.mxu0 %v1239
  %1517 = vmatmul.mubr.bf16.gmra.mrb[0].mxu0 %v1238
  %v1518 = vpop.f32.mrb[0].mxu0
  %v1519 = vadd.f32 %v1399, %v1518
  %v1520 = vpop.f32.mrb[0].mxu0
  %v1521 = vpop.f32.mrb[0].mxu0
  %v1522 = vpop.f32.mrb[0].mxu0
  %1523 = vdwg.mxu0
  %v1524 = vpack.c.bf16 %v1442, %v1439
  %v1525 = vpack.c.bf16 %v1450, %v1447
  %v1526 = vpack.c.bf16 %v1458, %v1455
  %v1527 = vpack.c.bf16 %v1466, %v1463
  %v1528 = vpack.c.bf16 %v1474, %v1471
  %v1529 = vpack.c.bf16 %v1482, %v1479
  %v1530 = vpack.c.bf16 %v1490, %v1487
  %v1531 = vpack.c.bf16 %v1498, %v1495
  %v1532 = vpack.c.bf16 %v1506, %v1503
  %v1533 = vpack.c.bf16 %v1514, %v1511
  %v1534 = vpack.c.bf16 %v1519, %v1519
  %s1535 = scalar_lea.vmem %s5, 12
  %v1536 = vld [vmem:[%s1535] sm:$0xf]
  %v1537 = vld [vmem:[%s1535 + $0x4] sm:$0xf]
  %v1538 = vld [vmem:[%s1535 + $0x8] sm:$0xf]
  %v1542 = vunpack.c.l.b16 %v1536
  %v1543 = vunpack.c.l.b16 %v1537
  %v1544 = vunpack.c.l.b16 %v1538
  %v1545 = vpack.c.b16 %v1543, %v1542
  %v1546 = vpack.c.b16 %v1544, %v1544
  %v1549 = vsel %vm842, %v1524, 0
  %v1552 = vsel %vm842, %v1525, 0
  %v1555 = vsel %vm842, %v1526, 0
  %v1558 = vsel %vm842, %v1527, 0
  %v1561 = vsel %vm842, %v1528, 0
  %v1564 = vsel %vm842, %v1529, 0
  %v1567 = vsel %vm842, %v1530, 0
  %v1570 = vsel %vm842, %v1531, 0
  %v1573 = vsel %vm842, %v1532, 0
  %v1576 = vsel %vm842, %v1533, 0
  %v1579 = vsel %vm842, %v1534, 0
  %v1582 = vsel %vm876, %v1546, 0
  %1584 = vmatprep.subr.bf16.mxu0 0
  %1585 = vmatpush1.bf16.msra.mxu0 %v1545
  %1586 = vmatprep.subr.bf16.mxu0 0
  %1587 = vmatpush1.bf16.msra.mxu0 %v1582
  %1588 = vmatprep.subr.bf16.mxu0 0
  %1589 = vmatpush1.bf16.msra.mxu0 0
  %1590 = vmatprep.subr.bf16.mxu0 0
  %1591 = vmatpush1.bf16.msra.mxu0 0
  %1592 = vmatprep.subr.bf16.mxu0 0
  %1593 = vmatpush1.bf16.msra.mxu0 0
  %1594 = vmatprep.subr.bf16.mxu0 0
  %1595 = vmatpush1.bf16.msra.mxu0 0
  %1596 = vmatprep.subr.bf16.mxu0 0
  %1597 = vmatpush1.bf16.msra.mxu0 0
  %1598 = vmatprep.subr.bf16.mxu0 0
  %1599 = vmatpush1.bf16.msra.mxu0 0
  %1600 = vmatprep.subr.bf16.mxu0 0
  %1601 = vmatpush1.bf16.msra.mxu0 0
  %1602 = vmatprep.subr.bf16.mxu0 0
  %1603 = vmatpush1.bf16.msra.mxu0 0
  %1604 = vmatprep.subr.bf16.mxu0 0
  %1605 = vmatpush1.bf16.msra.mxu0 0
  %1606 = vmatprep.subr.bf16.mxu0 0
  %1607 = vmatpush1.bf16.msra.mxu0 0
  %1608 = vmatprep.subr.bf16.mxu0 0
  %1609 = vmatpush1.bf16.msra.mxu0 0
  %1610 = vmatprep.subr.bf16.mxu0 0
  %1611 = vmatpush1.bf16.msra.mxu0 0
  %1612 = vmatprep.subr.bf16.mxu0 0
  %1613 = vmatpush1.bf16.msra.mxu0 0
  %1614 = vmatprep.subr.bf16.mxu0 0
  %1615 = vmatpush1.bf16.msra.mxu0 0
  %1616 = vmatprep.mubr.bf16.mxu0 0
  %1617 = vmatmul.mubr.bf16.gmra.mrb[0].mxu0 %v1549
  %v1618 = vpop.f32.mrb[0].mxu0
  %v1619 = vadd.f32 0.0, %v1618
  %v1620 = vpop.f32.mrb[0].mxu0
  %v1621 = vpop.f32.mrb[0].mxu0
  %v1622 = vadd.f32 0.0, %v1621
  %v1623 = vpop.f32.mrb[0].mxu0
  %1624 = vmatprep.mubr.bf16.mxu0 0
  %1625 = vmatmul.mubr.bf16.gmra.mrb[0].mxu0 %v1552
  %v1626 = vpop.f32.mrb[0].mxu0
  %v1627 = vadd.f32 0.0, %v1626
  %v1628 = vpop.f32.mrb[0].mxu0
  %v1629 = vpop.f32.mrb[0].mxu0
  %v1630 = vadd.f32 0.0, %v1629
  %v1631 = vpop.f32.mrb[0].mxu0
  %1632 = vmatprep.mubr.bf16.mxu0 0
  %1633 = vmatmul.mubr.bf16.gmra.mrb[0].mxu0 %v1555
  %v1634 = vpop.f32.mrb[0].mxu0
  %v1635 = vadd.f32 0.0, %v1634
  %v1636 = vpop.f32.mrb[0].mxu0
  %v1637 = vpop.f32.mrb[0].mxu0
  %v1638 = vadd.f32 0.0, %v1637
  %v1639 = vpop.f32.mrb[0].mxu0
  %1640 = vmatprep.mubr.bf16.mxu0 0
  %1641 = vmatmul.mubr.bf16.gmra.mrb[0].mxu0 %v1558
  %v1642 = vpop.f32.mrb[0].mxu0
  %v1643 = vadd.f32 0.0, %v1642
  %v1644 = vpop.f32.mrb[0].mxu0
  %v1645 = vpop.f32.mrb[0].mxu0
  %v1646 = vadd.f32 0.0, %v1645
  %v1647 = vpop.f32.mrb[0].mxu0
  %1648 = vmatprep.mubr.bf16.mxu0 0
  %1649 = vmatmul.mubr.bf16.gmra.mrb[0].mxu0 %v1561
  %v1650 = vpop.f32.mrb[0].mxu0
  %v1651 = vadd.f32 0.0, %v1650
  %v1652 = vpop.f32.mrb[0].mxu0
  %v1653 = vpop.f32.mrb[0].mxu0
  %v1654 = vadd.f32 0.0, %v1653
  %v1655 = vpop.f32.mrb[0].mxu0
  %1656 = vmatprep.mubr.bf16.mxu0 0
  %1657 = vmatmul.mubr.bf16.gmra.mrb[0].mxu0 %v1564
  %v1658 = vpop.f32.mrb[0].mxu0
  %v1659 = vadd.f32 0.0, %v1658
  %v1660 = vpop.f32.mrb[0].mxu0
  %v1661 = vpop.f32.mrb[0].mxu0
  %v1662 = vadd.f32 0.0, %v1661
  %v1663 = vpop.f32.mrb[0].mxu0
  %1664 = vmatprep.mubr.bf16.mxu0 0
  %1665 = vmatmul.mubr.bf16.gmra.mrb[0].mxu0 %v1567
  %v1666 = vpop.f32.mrb[0].mxu0
  %v1667 = vadd.f32 0.0, %v1666
  %v1668 = vpop.f32.mrb[0].mxu0
  %v1669 = vpop.f32.mrb[0].mxu0
  %v1670 = vadd.f32 0.0, %v1669
  %v1671 = vpop.f32.mrb[0].mxu0
  %1672 = vmatprep.mubr.bf16.mxu0 0
  %1673 = vmatmul.mubr.bf16.gmra.mrb[0].mxu0 %v1570
  %v1674 = vpop.f32.mrb[0].mxu0
  %v1675 = vadd.f32 0.0, %v1674
  %v1676 = vpop.f32.mrb[0].mxu0
  %v1677 = vpop.f32.mrb[0].mxu0
  %v1678 = vadd.f32 0.0, %v1677
  %v1679 = vpop.f32.mrb[0].mxu0
  %1680 = vmatprep.mubr.bf16.mxu0 0
  %1681 = vmatmul.mubr.bf16.gmra.mrb[0].mxu0 %v1573
  %v1682 = vpop.f32.mrb[0].mxu0
  %v1683 = vadd.f32 0.0, %v1682
  %v1684 = vpop.f32.mrb[0].mxu0
  %v1685 = vpop.f32.mrb[0].mxu0
  %v1686 = vadd.f32 0.0, %v1685
  %v1687 = vpop.f32.mrb[0].mxu0
  %1688 = vmatprep.mubr.bf16.mxu0 0
  %1689 = vmatmul.mubr.bf16.gmra.mrb[0].mxu0 %v1576
  %v1690 = vpop.f32.mrb[0].mxu0
  %v1691 = vadd.f32 0.0, %v1690
  %v1692 = vpop.f32.mrb[0].mxu0
  %v1693 = vpop.f32.mrb[0].mxu0
  %v1694 = vadd.f32 0.0, %v1693
  %v1695 = vpop.f32.mrb[0].mxu0
  %1696 = vmatprep.mubr.bf16.mxu0 0
  %1697 = vmatmul.mubr.bf16.gmra.mrb[0].mxu0 %v1579
  %v1698 = vpop.f32.mrb[0].mxu0
  %v1699 = vadd.f32 0.0, %v1698
  %v1700 = vpop.f32.mrb[0].mxu0
  %v1701 = vpop.f32.mrb[0].mxu0
  %v1702 = vpop.f32.mrb[0].mxu0
  %1703 = vdwg.mxu0
  %v1704 = vadd.f32 %v1006, %v1619
  %v1705 = vadd.f32 %v1007, %v1622
  %v1706 = vadd.f32 %v1008, %v1627
  %v1707 = vadd.f32 %v1009, %v1630
  %v1708 = vadd.f32 %v1010, %v1635
  %v1709 = vadd.f32 %v1011, %v1638
  %v1710 = vadd.f32 %v1012, %v1643
  %v1711 = vadd.f32 %v1013, %v1646
  %v1712 = vadd.f32 %v1014, %v1651
  %v1713 = vadd.f32 %v1015, %v1654
  %v1714 = vadd.f32 %v1016, %v1659
  %v1715 = vadd.f32 %v1017, %v1662
  %v1716 = vadd.f32 %v1018, %v1667
  %v1717 = vadd.f32 %v1019, %v1670
  %v1718 = vadd.f32 %v1020, %v1675
  %v1719 = vadd.f32 %v1021, %v1678
  %v1720 = vadd.f32 %v1022, %v1683
  %v1721 = vadd.f32 %v1023, %v1686
  %v1722 = vadd.f32 %v1024, %v1691
  %v1723 = vadd.f32 %v1025, %v1694
  %v1724 = vadd.f32 %v1026, %v1699
  %s1725 = scalar_lea.vmem %s1, 672
  %v1726 = vld [vmem:[%s1725] sm:$0xff]
  %v1727 = vld [vmem:[%s1725 + $0x8] sm:$0xff]
  %v1728 = vld [vmem:[%s1725 + $0x10] sm:$0xff]
  %v1729 = vld [vmem:[%s1725 + $0x18] sm:$0xff]
  %v1730 = vld [vmem:[%s1725 + $0x20] sm:$0xff]
  %v1731 = vld [vmem:[%s1725 + $0x28] sm:$0xff]
  %v1732 = vld [vmem:[%s1725 + $0x30] sm:$0xff]
  %v1733 = vld [vmem:[%s1725 + $0x38] sm:$0xff]
  %v1734 = vld [vmem:[%s1725 + $0x40] sm:$0xff]
  %v1735 = vld [vmem:[%s1725 + $0x48] sm:$0xff]
  %v1736 = vld [vmem:[%s1725 + $0x50] sm:$0xff]
  %v1737 = vld [vmem:[%s1725 + $0x58] sm:$0xff]
  %v1738 = vld [vmem:[%s1725 + $0x60] sm:$0xff]
  %v1739 = vld [vmem:[%s1725 + $0x68] sm:$0xff]
  %v1740 = vld [vmem:[%s1725 + $0x70] sm:$0xff]
  %v1741 = vld [vmem:[%s1725 + $0x78] sm:$0xff]
  %v1742 = vld [vmem:[%s1725 + $0x80] sm:$0xff]
  %v1743 = vld [vmem:[%s1725 + $0x88] sm:$0xff]
  %v1744 = vld [vmem:[%s1725 + $0x90] sm:$0xff]
  %v1745 = vld [vmem:[%s1725 + $0x98] sm:$0xff]
  %v1746 = vld [vmem:[%s1725 + $0xa0] sm:$0xff]
  %v1747 = vld [vmem:[%s1725 + $0xa8] sm:$0xff]
  %v1748 = vld [vmem:[%s1725 + $0xb0] sm:$0xff]
  %v1749 = vld [vmem:[%s1725 + $0xb8] sm:$0xff]
  %v1750 = vld [vmem:[%s1725 + $0xc0] sm:$0xff]
  %v1751 = vld [vmem:[%s1725 + $0xc8] sm:$0xff]
  %v1752 = vld [vmem:[%s1725 + $0xd0] sm:$0xff]
  %v1753 = vld [vmem:[%s1725 + $0xd8] sm:$0xff]
  %v1754 = vld [vmem:[%s1725 + $0xe0] sm:$0xff]
  %v1755 = vld [vmem:[%s1725 + $0xe8] sm:$0xff]
  %v1756 = vld [vmem:[%s1725 + $0xf0] sm:$0xff]
  %v1757 = vld [vmem:[%s1725 + $0xf8] sm:$0xff]
  %v1758 = vld [vmem:[%s1725 + $0x100] sm:$0xff]
  %v1759 = vld [vmem:[%s1725 + $0x108] sm:$0xff]
  %v1760 = vld [vmem:[%s1725 + $0x110] sm:$0xff]
  %v1761 = vld [vmem:[%s1725 + $0x118] sm:$0xff]
  %v1762 = vld [vmem:[%s1725 + $0x120] sm:$0xff]
  %v1763 = vld [vmem:[%s1725 + $0x128] sm:$0xff]
  %v1764 = vld [vmem:[%s1725 + $0x130] sm:$0xff]
  %v1765 = vld [vmem:[%s1725 + $0x138] sm:$0xff]
  %v1766 = vld [vmem:[%s1725 + $0x140] sm:$0x11]
  %v1767 = vld [vmem:[%s1725 + $0x148] sm:$0x11]
  %v1810 = vunpack.c.l.b16 %v1726
  %v1811 = vunpack.c.h.b16 %v1726
  %v1812 = vunpack.c.l.b16 %v1727
  %v1813 = vunpack.c.h.b16 %v1727
  %v1814 = vunpack.c.l.b16 %v1728
  %v1815 = vunpack.c.h.b16 %v1728
  %v1816 = vunpack.c.l.b16 %v1729
  %v1817 = vunpack.c.h.b16 %v1729
  %v1818 = vunpack.c.l.b16 %v1730
  %v1819 = vunpack.c.h.b16 %v1730
  %v1820 = vunpack.c.l.b16 %v1731
  %v1821 = vunpack.c.h.b16 %v1731
  %v1822 = vunpack.c.l.b16 %v1732
  %v1823 = vunpack.c.h.b16 %v1732
  %v1824 = vunpack.c.l.b16 %v1733
  %v1825 = vunpack.c.h.b16 %v1733
  %v1826 = vunpack.c.l.b16 %v1734
  %v1827 = vunpack.c.h.b16 %v1734
  %v1828 = vunpack.c.l.b16 %v1735
  %v1829 = vunpack.c.h.b16 %v1735
  %v1830 = vunpack.c.l.b16 %v1736
  %v1831 = vunpack.c.h.b16 %v1736
  %v1832 = vunpack.c.l.b16 %v1737
  %v1833 = vunpack.c.h.b16 %v1737
  %v1834 = vunpack.c.l.b16 %v1738
  %v1835 = vunpack.c.h.b16 %v1738
  %v1836 = vunpack.c.l.b16 %v1739
  %v1837 = vunpack.c.h.b16 %v1739
  %v1838 = vunpack.c.l.b16 %v1740
  %v1839 = vunpack.c.h.b16 %v1740
  %v1840 = vunpack.c.l.b16 %v1741
  %v1841 = vunpack.c.h.b16 %v1741
  %v1842 = vunpack.c.l.b16 %v1742
  %v1843 = vunpack.c.h.b16 %v1742
  %v1844 = vunpack.c.l.b16 %v1743
  %v1845 = vunpack.c.h.b16 %v1743
  %v1846 = vunpack.c.l.b16 %v1744
  %v1847 = vunpack.c.h.b16 %v1744
  %v1848 = vunpack.c.l.b16 %v1745
  %v1849 = vunpack.c.h.b16 %v1745
  %v1850 = vunpack.c.l.b16 %v1746
  %v1851 = vunpack.c.h.b16 %v1746
  %v1852 = vunpack.c.l.b16 %v1747
  %v1853 = vunpack.c.h.b16 %v1747
  %v1854 = vunpack.c.l.b16 %v1748
  %v1855 = vunpack.c.h.b16 %v1748
  %v1856 = vunpack.c.l.b16 %v1749
  %v1857 = vunpack.c.h.b16 %v1749
  %v1858 = vunpack.c.l.b16 %v1750
  %v1859 = vunpack.c.h.b16 %v1750
  %v1860 = vunpack.c.l.b16 %v1751
  %v1861 = vunpack.c.h.b16 %v1751
  %v1862 = vunpack.c.l.b16 %v1752
  %v1863 = vunpack.c.h.b16 %v1752
  %v1864 = vunpack.c.l.b16 %v1753
  %v1865 = vunpack.c.h.b16 %v1753
  %v1866 = vunpack.c.l.b16 %v1754
  %v1867 = vunpack.c.h.b16 %v1754
  %v1868 = vunpack.c.l.b16 %v1755
  %v1869 = vunpack.c.h.b16 %v1755
  %v1870 = vunpack.c.l.b16 %v1756
  %v1871 = vunpack.c.h.b16 %v1756
  %v1872 = vunpack.c.l.b16 %v1757
  %v1873 = vunpack.c.h.b16 %v1757
  %v1874 = vunpack.c.l.b16 %v1758
  %v1875 = vunpack.c.h.b16 %v1758
  %v1876 = vunpack.c.l.b16 %v1759
  %v1877 = vunpack.c.h.b16 %v1759
  %v1878 = vunpack.c.l.b16 %v1760
  %v1879 = vunpack.c.h.b16 %v1760
  %v1880 = vunpack.c.l.b16 %v1761
  %v1881 = vunpack.c.h.b16 %v1761
  %v1882 = vunpack.c.l.b16 %v1762
  %v1883 = vunpack.c.h.b16 %v1762
  %v1884 = vunpack.c.l.b16 %v1763
  %v1885 = vunpack.c.h.b16 %v1763
  %v1886 = vunpack.c.l.b16 %v1764
  %v1887 = vunpack.c.h.b16 %v1764
  %v1888 = vunpack.c.l.b16 %v1765
  %v1889 = vunpack.c.h.b16 %v1765
  %v1890 = vunpack.c.l.b16 %v1766
  %v1891 = vunpack.c.h.b16 %v1766
  %v1892 = vunpack.c.l.b16 %v1767
  %v1893 = vunpack.c.h.b16 %v1767
  %v1894 = vpack.c.b16 %v1814, %v1810
  %v1895 = vpack.c.b16 %v1815, %v1811
  %v1896 = vpack.c.b16 %v1816, %v1812
  %v1897 = vpack.c.b16 %v1817, %v1813
  %v1898 = vpack.c.b16 %v1822, %v1818
  %v1899 = vpack.c.b16 %v1823, %v1819
  %v1900 = vpack.c.b16 %v1824, %v1820
  %v1901 = vpack.c.b16 %v1825, %v1821
  %v1902 = vpack.c.b16 %v1830, %v1826
  %v1903 = vpack.c.b16 %v1831, %v1827
  %v1904 = vpack.c.b16 %v1832, %v1828
  %v1905 = vpack.c.b16 %v1833, %v1829
  %v1906 = vpack.c.b16 %v1838, %v1834
  %v1907 = vpack.c.b16 %v1839, %v1835
  %v1908 = vpack.c.b16 %v1840, %v1836
  %v1909 = vpack.c.b16 %v1841, %v1837
  %v1910 = vpack.c.b16 %v1846, %v1842
  %v1911 = vpack.c.b16 %v1847, %v1843
  %v1912 = vpack.c.b16 %v1848, %v1844
  %v1913 = vpack.c.b16 %v1849, %v1845
  %v1914 = vpack.c.b16 %v1854, %v1850
  %v1915 = vpack.c.b16 %v1855, %v1851
  %v1916 = vpack.c.b16 %v1856, %v1852
  %v1917 = vpack.c.b16 %v1857, %v1853
  %v1918 = vpack.c.b16 %v1862, %v1858
  %v1919 = vpack.c.b16 %v1863, %v1859
  %v1920 = vpack.c.b16 %v1864, %v1860
  %v1921 = vpack.c.b16 %v1865, %v1861
  %v1922 = vpack.c.b16 %v1870, %v1866
  %v1923 = vpack.c.b16 %v1871, %v1867
  %v1924 = vpack.c.b16 %v1872, %v1868
  %v1925 = vpack.c.b16 %v1873, %v1869
  %v1926 = vpack.c.b16 %v1878, %v1874
  %v1927 = vpack.c.b16 %v1879, %v1875
  %v1928 = vpack.c.b16 %v1880, %v1876
  %v1929 = vpack.c.b16 %v1881, %v1877
  %v1930 = vpack.c.b16 %v1886, %v1882
  %v1931 = vpack.c.b16 %v1887, %v1883
  %v1932 = vpack.c.b16 %v1888, %v1884
  %v1933 = vpack.c.b16 %v1889, %v1885
  %v1934 = vpack.c.b16 %v1890, %v1890
  %v1935 = vpack.c.b16 %v1891, %v1891
  %v1936 = vpack.c.b16 %v1892, %v1892
  %v1937 = vpack.c.b16 %v1893, %v1893
  %1982 = vmatprep.subr.bf16.mxu0 0
  %1983 = vmatpush1.bf16.msra.mxu0 %v515
  %1984 = vmatprep.subr.bf16.mxu0 0
  %1985 = vmatpush1.bf16.msra.mxu0 %v516
  %1986 = vmatprep.subr.bf16.mxu0 0
  %1987 = vmatpush1.bf16.msra.mxu0 %v517
  %1988 = vmatprep.subr.bf16.mxu0 0
  %1989 = vmatpush1.bf16.msra.mxu0 %v518
  %1990 = vmatprep.subr.bf16.mxu0 0
  %1991 = vmatpush1.bf16.msra.mxu0 %v519
  %1992 = vmatprep.subr.bf16.mxu0 0
  %1993 = vmatpush1.bf16.msra.mxu0 %v520
  %1994 = vmatprep.subr.bf16.mxu0 0
  %1995 = vmatpush1.bf16.msra.mxu0 %v521
  %1996 = vmatprep.subr.bf16.mxu0 0
  %1997 = vmatpush1.bf16.msra.mxu0 %v522
  %1998 = vmatprep.subr.bf16.mxu0 0
  %1999 = vmatpush1.bf16.msra.mxu0 %v523
  %2000 = vmatprep.subr.bf16.mxu0 0
  %2001 = vmatpush1.bf16.msra.mxu0 %v524
  %2002 = vmatprep.subr.bf16.mxu0 0
  %2003 = vmatpush1.bf16.msra.mxu0 %v525
  %2004 = vmatprep.subr.bf16.mxu0 0
  %2005 = vmatpush1.bf16.msra.mxu0 %v526
  %2006 = vmatprep.subr.bf16.mxu0 0
  %2007 = vmatpush1.bf16.msra.mxu0 %v527
  %2008 = vmatprep.subr.bf16.mxu0 0
  %2009 = vmatpush1.bf16.msra.mxu0 %v528
  %2010 = vmatprep.subr.bf16.mxu0 0
  %2011 = vmatpush1.bf16.msra.mxu0 %v529
  %2012 = vmatprep.subr.bf16.mxu0 0
  %2013 = vmatpush1.bf16.msra.mxu0 %v530
  %2014 = vmatprep.mubr.bf16.mxu0 %v1895
  %2015 = vmatmul.mubr.bf16.gmra.mrb[0].mxu0 %v1894
  %v2016 = vpop.f32.mrb[0].mxu0
  %v2017 = vadd.f32 0.0, %v2016
  %v2018 = vpop.f32.mrb[0].mxu0
  %v2019 = vpop.f32.mrb[0].mxu0
  %v2020 = vadd.f32 0.0, %v2019
  %v2021 = vpop.f32.mrb[0].mxu0
  %2022 = vmatprep.mubr.bf16.mxu0 %v1899
  %2023 = vmatmul.mubr.bf16.gmra.mrb[0].mxu0 %v1898
  %v2024 = vpop.f32.mrb[0].mxu0
  %v2025 = vadd.f32 0.0, %v2024
  %v2026 = vpop.f32.mrb[0].mxu0
  %v2027 = vpop.f32.mrb[0].mxu0
  %v2028 = vadd.f32 0.0, %v2027
  %v2029 = vpop.f32.mrb[0].mxu0
  %2030 = vmatprep.mubr.bf16.mxu0 %v1903
  %2031 = vmatmul.mubr.bf16.gmra.mrb[0].mxu0 %v1902
  %v2032 = vpop.f32.mrb[0].mxu0
  %v2033 = vadd.f32 0.0, %v2032
  %v2034 = vpop.f32.mrb[0].mxu0
  %v2035 = vpop.f32.mrb[0].mxu0
  %v2036 = vadd.f32 0.0, %v2035
  %v2037 = vpop.f32.mrb[0].mxu0
  %2038 = vmatprep.mubr.bf16.mxu0 %v1907
  %2039 = vmatmul.mubr.bf16.gmra.mrb[0].mxu0 %v1906
  %v2040 = vpop.f32.mrb[0].mxu0
  %v2041 = vadd.f32 0.0, %v2040
  %v2042 = vpop.f32.mrb[0].mxu0
  %v2043 = vpop.f32.mrb[0].mxu0
  %v2044 = vadd.f32 0.0, %v2043
  %v2045 = vpop.f32.mrb[0].mxu0
  %2046 = vmatprep.mubr.bf16.mxu0 %v1911
  %2047 = vmatmul.mubr.bf16.gmra.mrb[0].mxu0 %v1910
  %v2048 = vpop.f32.mrb[0].mxu0
  %v2049 = vadd.f32 0.0, %v2048
  %v2050 = vpop.f32.mrb[0].mxu0
  %v2051 = vpop.f32.mrb[0].mxu0
  %v2052 = vadd.f32 0.0, %v2051
  %v2053 = vpop.f32.mrb[0].mxu0
  %2054 = vmatprep.mubr.bf16.mxu0 %v1915
  %2055 = vmatmul.mubr.bf16.gmra.mrb[0].mxu0 %v1914
  %v2056 = vpop.f32.mrb[0].mxu0
  %v2057 = vadd.f32 0.0, %v2056
  %v2058 = vpop.f32.mrb[0].mxu0
  %v2059 = vpop.f32.mrb[0].mxu0
  %v2060 = vadd.f32 0.0, %v2059
  %v2061 = vpop.f32.mrb[0].mxu0
  %2062 = vmatprep.mubr.bf16.mxu0 %v1919
  %2063 = vmatmul.mubr.bf16.gmra.mrb[0].mxu0 %v1918
  %v2064 = vpop.f32.mrb[0].mxu0
  %v2065 = vadd.f32 0.0, %v2064
  %v2066 = vpop.f32.mrb[0].mxu0
  %v2067 = vpop.f32.mrb[0].mxu0
  %v2068 = vadd.f32 0.0, %v2067
  %v2069 = vpop.f32.mrb[0].mxu0
  %2070 = vmatprep.mubr.bf16.mxu0 %v1923
  %2071 = vmatmul.mubr.bf16.gmra.mrb[0].mxu0 %v1922
  %v2072 = vpop.f32.mrb[0].mxu0
  %v2073 = vadd.f32 0.0, %v2072
  %v2074 = vpop.f32.mrb[0].mxu0
  %v2075 = vpop.f32.mrb[0].mxu0
  %v2076 = vadd.f32 0.0, %v2075
  %v2077 = vpop.f32.mrb[0].mxu0
  %2078 = vmatprep.mubr.bf16.mxu0 %v1927
  %2079 = vmatmul.mubr.bf16.gmra.mrb[0].mxu0 %v1926
  %v2080 = vpop.f32.mrb[0].mxu0
  %v2081 = vadd.f32 0.0, %v2080
  %v2082 = vpop.f32.mrb[0].mxu0
  %v2083 = vpop.f32.mrb[0].mxu0
  %v2084 = vadd.f32 0.0, %v2083
  %v2085 = vpop.f32.mrb[0].mxu0
  %2086 = vmatprep.mubr.bf16.mxu0 %v1931
  %2087 = vmatmul.mubr.bf16.gmra.mrb[0].mxu0 %v1930
  %v2088 = vpop.f32.mrb[0].mxu0
  %v2089 = vadd.f32 0.0, %v2088
  %v2090 = vpop.f32.mrb[0].mxu0
  %v2091 = vpop.f32.mrb[0].mxu0
  %v2092 = vadd.f32 0.0, %v2091
  %v2093 = vpop.f32.mrb[0].mxu0
  %2094 = vmatprep.mubr.bf16.mxu0 %v1935
  %2095 = vmatmul.mubr.bf16.gmra.mrb[0].mxu0 %v1934
  %v2096 = vpop.f32.mrb[0].mxu0
  %v2097 = vadd.f32 0.0, %v2096
  %v2098 = vpop.f32.mrb[0].mxu0
  %v2099 = vpop.f32.mrb[0].mxu0
  %v2100 = vpop.f32.mrb[0].mxu0
  %2101 = vdwg.mxu0
  %2102 = vmatprep.subr.bf16.mxu0 0
  %2103 = vmatpush1.bf16.msra.mxu0 %v531
  %2104 = vmatprep.subr.bf16.mxu0 0
  %2105 = vmatpush1.bf16.msra.mxu0 %v532
  %2106 = vmatprep.subr.bf16.mxu0 0
  %2107 = vmatpush1.bf16.msra.mxu0 %v533
  %2108 = vmatprep.subr.bf16.mxu0 0
  %2109 = vmatpush1.bf16.msra.mxu0 %v534
  %2110 = vmatprep.subr.bf16.mxu0 0
  %2111 = vmatpush1.bf16.msra.mxu0 %v535
  %2112 = vmatprep.subr.bf16.mxu0 0
  %2113 = vmatpush1.bf16.msra.mxu0 %v536
  %2114 = vmatprep.subr.bf16.mxu0 0
  %2115 = vmatpush1.bf16.msra.mxu0 %v537
  %2116 = vmatprep.subr.bf16.mxu0 0
  %2117 = vmatpush1.bf16.msra.mxu0 %v538
  %2118 = vmatprep.subr.bf16.mxu0 0
  %2119 = vmatpush1.bf16.msra.mxu0 %v539
  %2120 = vmatprep.subr.bf16.mxu0 0
  %2121 = vmatpush1.bf16.msra.mxu0 %v540
  %2122 = vmatprep.subr.bf16.mxu0 0
  %2123 = vmatpush1.bf16.msra.mxu0 %v541
  %2124 = vmatprep.subr.bf16.mxu0 0
  %2125 = vmatpush1.bf16.msra.mxu0 %v542
  %2126 = vmatprep.subr.bf16.mxu0 0
  %2127 = vmatpush1.bf16.msra.mxu0 %v543
  %2128 = vmatprep.subr.bf16.mxu0 0
  %2129 = vmatpush1.bf16.msra.mxu0 %v544
  %2130 = vmatprep.subr.bf16.mxu0 0
  %2131 = vmatpush1.bf16.msra.mxu0 %v545
  %2132 = vmatprep.subr.bf16.mxu0 0
  %2133 = vmatpush1.bf16.msra.mxu0 %v546
  %2134 = vmatprep.mubr.bf16.mxu0 %v1897
  %2135 = vmatmul.mubr.bf16.gmra.mrb[0].mxu0 %v1896
  %v2136 = vpop.f32.mrb[0].mxu0
  %v2137 = vadd.f32 %v2017, %v2136
  %v2138 = vpop.f32.mrb[0].mxu0
  %v2139 = vpop.f32.mrb[0].mxu0
  %v2140 = vadd.f32 %v2020, %v2139
  %v2141 = vpop.f32.mrb[0].mxu0
  %2142 = vmatprep.mubr.bf16.mxu0 %v1901
  %2143 = vmatmul.mubr.bf16.gmra.mrb[0].mxu0 %v1900
  %v2144 = vpop.f32.mrb[0].mxu0
  %v2145 = vadd.f32 %v2025, %v2144
  %v2146 = vpop.f32.mrb[0].mxu0
  %v2147 = vpop.f32.mrb[0].mxu0
  %v2148 = vadd.f32 %v2028, %v2147
  %v2149 = vpop.f32.mrb[0].mxu0
  %2150 = vmatprep.mubr.bf16.mxu0 %v1905
  %2151 = vmatmul.mubr.bf16.gmra.mrb[0].mxu0 %v1904
  %v2152 = vpop.f32.mrb[0].mxu0
  %v2153 = vadd.f32 %v2033, %v2152
  %v2154 = vpop.f32.mrb[0].mxu0
  %v2155 = vpop.f32.mrb[0].mxu0
  %v2156 = vadd.f32 %v2036, %v2155
  %v2157 = vpop.f32.mrb[0].mxu0
  %2158 = vmatprep.mubr.bf16.mxu0 %v1909
  %2159 = vmatmul.mubr.bf16.gmra.mrb[0].mxu0 %v1908
  %v2160 = vpop.f32.mrb[0].mxu0
  %v2161 = vadd.f32 %v2041, %v2160
  %v2162 = vpop.f32.mrb[0].mxu0
  %v2163 = vpop.f32.mrb[0].mxu0
  %v2164 = vadd.f32 %v2044, %v2163
  %v2165 = vpop.f32.mrb[0].mxu0
  %2166 = vmatprep.mubr.bf16.mxu0 %v1913
  %2167 = vmatmul.mubr.bf16.gmra.mrb[0].mxu0 %v1912
  %v2168 = vpop.f32.mrb[0].mxu0
  %v2169 = vadd.f32 %v2049, %v2168
  %v2170 = vpop.f32.mrb[0].mxu0
  %v2171 = vpop.f32.mrb[0].mxu0
  %v2172 = vadd.f32 %v2052, %v2171
  %v2173 = vpop.f32.mrb[0].mxu0
  %2174 = vmatprep.mubr.bf16.mxu0 %v1917
  %2175 = vmatmul.mubr.bf16.gmra.mrb[0].mxu0 %v1916
  %v2176 = vpop.f32.mrb[0].mxu0
  %v2177 = vadd.f32 %v2057, %v2176
  %v2178 = vpop.f32.mrb[0].mxu0
  %v2179 = vpop.f32.mrb[0].mxu0
  %v2180 = vadd.f32 %v2060, %v2179
  %v2181 = vpop.f32.mrb[0].mxu0
  %2182 = vmatprep.mubr.bf16.mxu0 %v1921
  %2183 = vmatmul.mubr.bf16.gmra.mrb[0].mxu0 %v1920
  %v2184 = vpop.f32.mrb[0].mxu0
  %v2185 = vadd.f32 %v2065, %v2184
  %v2186 = vpop.f32.mrb[0].mxu0
  %v2187 = vpop.f32.mrb[0].mxu0
  %v2188 = vadd.f32 %v2068, %v2187
  %v2189 = vpop.f32.mrb[0].mxu0
  %2190 = vmatprep.mubr.bf16.mxu0 %v1925
  %2191 = vmatmul.mubr.bf16.gmra.mrb[0].mxu0 %v1924
  %v2192 = vpop.f32.mrb[0].mxu0
  %v2193 = vadd.f32 %v2073, %v2192
  %v2194 = vpop.f32.mrb[0].mxu0
  %v2195 = vpop.f32.mrb[0].mxu0
  %v2196 = vadd.f32 %v2076, %v2195
  %v2197 = vpop.f32.mrb[0].mxu0
  %2198 = vmatprep.mubr.bf16.mxu0 %v1929
  %2199 = vmatmul.mubr.bf16.gmra.mrb[0].mxu0 %v1928
  %v2200 = vpop.f32.mrb[0].mxu0
  %v2201 = vadd.f32 %v2081, %v2200
  %v2202 = vpop.f32.mrb[0].mxu0
  %v2203 = vpop.f32.mrb[0].mxu0
  %v2204 = vadd.f32 %v2084, %v2203
  %v2205 = vpop.f32.mrb[0].mxu0
  %2206 = vmatprep.mubr.bf16.mxu0 %v1933
  %2207 = vmatmul.mubr.bf16.gmra.mrb[0].mxu0 %v1932
  %v2208 = vpop.f32.mrb[0].mxu0
  %v2209 = vadd.f32 %v2089, %v2208
  %v2210 = vpop.f32.mrb[0].mxu0
  %v2211 = vpop.f32.mrb[0].mxu0
  %v2212 = vadd.f32 %v2092, %v2211
  %v2213 = vpop.f32.mrb[0].mxu0
  %2214 = vmatprep.mubr.bf16.mxu0 %v1937
  %2215 = vmatmul.mubr.bf16.gmra.mrb[0].mxu0 %v1936
  %v2216 = vpop.f32.mrb[0].mxu0
  %v2217 = vadd.f32 %v2097, %v2216
  %v2218 = vpop.f32.mrb[0].mxu0
  %v2219 = vpop.f32.mrb[0].mxu0
  %v2220 = vpop.f32.mrb[0].mxu0
  %2221 = vdwg.mxu0
  %v2222 = vpack.c.bf16 %v2140, %v2137
  %v2223 = vpack.c.bf16 %v2148, %v2145
  %v2224 = vpack.c.bf16 %v2156, %v2153
  %v2225 = vpack.c.bf16 %v2164, %v2161
  %v2226 = vpack.c.bf16 %v2172, %v2169
  %v2227 = vpack.c.bf16 %v2180, %v2177
  %v2228 = vpack.c.bf16 %v2188, %v2185
  %v2229 = vpack.c.bf16 %v2196, %v2193
  %v2230 = vpack.c.bf16 %v2204, %v2201
  %v2231 = vpack.c.bf16 %v2212, %v2209
  %v2232 = vpack.c.bf16 %v2217, %v2217
  %s2233 = scalar_lea.vmem %s5, 24
  %v2234 = vld [vmem:[%s2233] sm:$0xf]
  %v2235 = vld [vmem:[%s2233 + $0x4] sm:$0xf]
  %v2236 = vld [vmem:[%s2233 + $0x8] sm:$0xf]
  %v2240 = vunpack.c.l.b16 %v2234
  %v2241 = vunpack.c.l.b16 %v2235
  %v2242 = vunpack.c.l.b16 %v2236
  %v2243 = vpack.c.b16 %v2241, %v2240
  %v2244 = vpack.c.b16 %v2242, %v2242
  %v2247 = vsel %vm842, %v2222, 0
  %v2250 = vsel %vm842, %v2223, 0
  %v2253 = vsel %vm842, %v2224, 0
  %v2256 = vsel %vm842, %v2225, 0
  %v2259 = vsel %vm842, %v2226, 0
  %v2262 = vsel %vm842, %v2227, 0
  %v2265 = vsel %vm842, %v2228, 0
  %v2268 = vsel %vm842, %v2229, 0
  %v2271 = vsel %vm842, %v2230, 0
  %v2274 = vsel %vm842, %v2231, 0
  %v2277 = vsel %vm842, %v2232, 0
  %v2280 = vsel %vm876, %v2244, 0
  %2282 = vmatprep.subr.bf16.mxu0 0
  %2283 = vmatpush1.bf16.msra.mxu0 %v2243
  %2284 = vmatprep.subr.bf16.mxu0 0
  %2285 = vmatpush1.bf16.msra.mxu0 %v2280
  %2286 = vmatprep.subr.bf16.mxu0 0
  %2287 = vmatpush1.bf16.msra.mxu0 0
  %2288 = vmatprep.subr.bf16.mxu0 0
  %2289 = vmatpush1.bf16.msra.mxu0 0
  %2290 = vmatprep.subr.bf16.mxu0 0
  %2291 = vmatpush1.bf16.msra.mxu0 0
  %2292 = vmatprep.subr.bf16.mxu0 0
  %2293 = vmatpush1.bf16.msra.mxu0 0
  %2294 = vmatprep.subr.bf16.mxu0 0
  %2295 = vmatpush1.bf16.msra.mxu0 0
  %2296 = vmatprep.subr.bf16.mxu0 0
  %2297 = vmatpush1.bf16.msra.mxu0 0
  %2298 = vmatprep.subr.bf16.mxu0 0
  %2299 = vmatpush1.bf16.msra.mxu0 0
  %2300 = vmatprep.subr.bf16.mxu0 0
  %2301 = vmatpush1.bf16.msra.mxu0 0
  %2302 = vmatprep.subr.bf16.mxu0 0
  %2303 = vmatpush1.bf16.msra.mxu0 0
  %2304 = vmatprep.subr.bf16.mxu0 0
  %2305 = vmatpush1.bf16.msra.mxu0 0
  %2306 = vmatprep.subr.bf16.mxu0 0
  %2307 = vmatpush1.bf16.msra.mxu0 0
  %2308 = vmatprep.subr.bf16.mxu0 0
  %2309 = vmatpush1.bf16.msra.mxu0 0
  %2310 = vmatprep.subr.bf16.mxu0 0
  %2311 = vmatpush1.bf16.msra.mxu0 0
  %2312 = vmatprep.subr.bf16.mxu0 0
  %2313 = vmatpush1.bf16.msra.mxu0 0
  %2314 = vmatprep.mubr.bf16.mxu0 0
  %2315 = vmatmul.mubr.bf16.gmra.mrb[0].mxu0 %v2247
  %v2316 = vpop.f32.mrb[0].mxu0
  %v2317 = vadd.f32 0.0, %v2316
  %v2318 = vpop.f32.mrb[0].mxu0
  %v2319 = vpop.f32.mrb[0].mxu0
  %v2320 = vadd.f32 0.0, %v2319
  %v2321 = vpop.f32.mrb[0].mxu0
  %2322 = vmatprep.mubr.bf16.mxu0 0
  %2323 = vmatmul.mubr.bf16.gmra.mrb[0].mxu0 %v2250
  %v2324 = vpop.f32.mrb[0].mxu0
  %v2325 = vadd.f32 0.0, %v2324
  %v2326 = vpop.f32.mrb[0].mxu0
  %v2327 = vpop.f32.mrb[0].mxu0
  %v2328 = vadd.f32 0.0, %v2327
  %v2329 = vpop.f32.mrb[0].mxu0
  %2330 = vmatprep.mubr.bf16.mxu0 0
  %2331 = vmatmul.mubr.bf16.gmra.mrb[0].mxu0 %v2253
  %v2332 = vpop.f32.mrb[0].mxu0
  %v2333 = vadd.f32 0.0, %v2332
  %v2334 = vpop.f32.mrb[0].mxu0
  %v2335 = vpop.f32.mrb[0].mxu0
  %v2336 = vadd.f32 0.0, %v2335
  %v2337 = vpop.f32.mrb[0].mxu0
  %2338 = vmatprep.mubr.bf16.mxu0 0
  %2339 = vmatmul.mubr.bf16.gmra.mrb[0].mxu0 %v2256
  %v2340 = vpop.f32.mrb[0].mxu0
  %v2341 = vadd.f32 0.0, %v2340
  %v2342 = vpop.f32.mrb[0].mxu0
  %v2343 = vpop.f32.mrb[0].mxu0
  %v2344 = vadd.f32 0.0, %v2343
  %v2345 = vpop.f32.mrb[0].mxu0
  %2346 = vmatprep.mubr.bf16.mxu0 0
  %2347 = vmatmul.mubr.bf16.gmra.mrb[0].mxu0 %v2259
  %v2348 = vpop.f32.mrb[0].mxu0
  %v2349 = vadd.f32 0.0, %v2348
  %v2350 = vpop.f32.mrb[0].mxu0
  %v2351 = vpop.f32.mrb[0].mxu0
  %v2352 = vadd.f32 0.0, %v2351
  %v2353 = vpop.f32.mrb[0].mxu0
  %2354 = vmatprep.mubr.bf16.mxu0 0
  %2355 = vmatmul.mubr.bf16.gmra.mrb[0].mxu0 %v2262
  %v2356 = vpop.f32.mrb[0].mxu0
  %v2357 = vadd.f32 0.0, %v2356
  %v2358 = vpop.f32.mrb[0].mxu0
  %v2359 = vpop.f32.mrb[0].mxu0
  %v2360 = vadd.f32 0.0, %v2359
  %v2361 = vpop.f32.mrb[0].mxu0
  %2362 = vmatprep.mubr.bf16.mxu0 0
  %2363 = vmatmul.mubr.bf16.gmra.mrb[0].mxu0 %v2265
  %v2364 = vpop.f32.mrb[0].mxu0
  %v2365 = vadd.f32 0.0, %v2364
  %v2366 = vpop.f32.mrb[0].mxu0
  %v2367 = vpop.f32.mrb[0].mxu0
  %v2368 = vadd.f32 0.0, %v2367
  %v2369 = vpop.f32.mrb[0].mxu0
  %2370 = vmatprep.mubr.bf16.mxu0 0
  %2371 = vmatmul.mubr.bf16.gmra.mrb[0].mxu0 %v2268
  %v2372 = vpop.f32.mrb[0].mxu0
  %v2373 = vadd.f32 0.0, %v2372
  %v2374 = vpop.f32.mrb[0].mxu0
  %v2375 = vpop.f32.mrb[0].mxu0
  %v2376 = vadd.f32 0.0, %v2375
  %v2377 = vpop.f32.mrb[0].mxu0
  %2378 = vmatprep.mubr.bf16.mxu0 0
  %2379 = vmatmul.mubr.bf16.gmra.mrb[0].mxu0 %v2271
  %v2380 = vpop.f32.mrb[0].mxu0
  %v2381 = vadd.f32 0.0, %v2380
  %v2382 = vpop.f32.mrb[0].mxu0
  %v2383 = vpop.f32.mrb[0].mxu0
  %v2384 = vadd.f32 0.0, %v2383
  %v2385 = vpop.f32.mrb[0].mxu0
  %2386 = vmatprep.mubr.bf16.mxu0 0
  %2387 = vmatmul.mubr.bf16.gmra.mrb[0].mxu0 %v2274
  %v2388 = vpop.f32.mrb[0].mxu0
  %v2389 = vadd.f32 0.0, %v2388
  %v2390 = vpop.f32.mrb[0].mxu0
  %v2391 = vpop.f32.mrb[0].mxu0
  %v2392 = vadd.f32 0.0, %v2391
  %v2393 = vpop.f32.mrb[0].mxu0
  %2394 = vmatprep.mubr.bf16.mxu0 0
  %2395 = vmatmul.mubr.bf16.gmra.mrb[0].mxu0 %v2277
  %v2396 = vpop.f32.mrb[0].mxu0
  %v2397 = vadd.f32 0.0, %v2396
  %v2398 = vpop.f32.mrb[0].mxu0
  %v2399 = vpop.f32.mrb[0].mxu0
  %v2400 = vpop.f32.mrb[0].mxu0
  %2401 = vdwg.mxu0
  %v2402 = vadd.f32 %v1704, %v2317
  %v2403 = vadd.f32 %v1705, %v2320
  %v2404 = vadd.f32 %v1706, %v2325
  %v2405 = vadd.f32 %v1707, %v2328
  %v2406 = vadd.f32 %v1708, %v2333
  %v2407 = vadd.f32 %v1709, %v2336
  %v2408 = vadd.f32 %v1710, %v2341
  %v2409 = vadd.f32 %v1711, %v2344
  %v2410 = vadd.f32 %v1712, %v2349
  %v2411 = vadd.f32 %v1713, %v2352
  %v2412 = vadd.f32 %v1714, %v2357
  %v2413 = vadd.f32 %v1715, %v2360
  %v2414 = vadd.f32 %v1716, %v2365
  %v2415 = vadd.f32 %v1717, %v2368
  %v2416 = vadd.f32 %v1718, %v2373
  %v2417 = vadd.f32 %v1719, %v2376
  %v2418 = vadd.f32 %v1720, %v2381
  %v2419 = vadd.f32 %v1721, %v2384
  %v2420 = vadd.f32 %v1722, %v2389
  %v2421 = vadd.f32 %v1723, %v2392
  %v2422 = vadd.f32 %v1724, %v2397
  %s2423 = scalar_lea.vmem %s1, 1008
  %v2424 = vld [vmem:[%s2423] sm:$0xff]
  %v2425 = vld [vmem:[%s2423 + $0x8] sm:$0xff]
  %v2426 = vld [vmem:[%s2423 + $0x10] sm:$0xff]
  %v2427 = vld [vmem:[%s2423 + $0x18] sm:$0xff]
  %v2428 = vld [vmem:[%s2423 + $0x20] sm:$0xff]
  %v2429 = vld [vmem:[%s2423 + $0x28] sm:$0xff]
  %v2430 = vld [vmem:[%s2423 + $0x30] sm:$0xff]
  %v2431 = vld [vmem:[%s2423 + $0x38] sm:$0xff]
  %v2432 = vld [vmem:[%s2423 + $0x40] sm:$0xff]
  %v2433 = vld [vmem:[%s2423 + $0x48] sm:$0xff]
  %v2434 = vld [vmem:[%s2423 + $0x50] sm:$0xff]
  %v2435 = vld [vmem:[%s2423 + $0x58] sm:$0xff]
  %v2436 = vld [vmem:[%s2423 + $0x60] sm:$0xff]
  %v2437 = vld [vmem:[%s2423 + $0x68] sm:$0xff]
  %v2438 = vld [vmem:[%s2423 + $0x70] sm:$0xff]
  %v2439 = vld [vmem:[%s2423 + $0x78] sm:$0xff]
  %v2440 = vld [vmem:[%s2423 + $0x80] sm:$0xff]
  %v2441 = vld [vmem:[%s2423 + $0x88] sm:$0xff]
  %v2442 = vld [vmem:[%s2423 + $0x90] sm:$0xff]
  %v2443 = vld [vmem:[%s2423 + $0x98] sm:$0xff]
  %v2444 = vld [vmem:[%s2423 + $0xa0] sm:$0xff]
  %v2445 = vld [vmem:[%s2423 + $0xa8] sm:$0xff]
  %v2446 = vld [vmem:[%s2423 + $0xb0] sm:$0xff]
  %v2447 = vld [vmem:[%s2423 + $0xb8] sm:$0xff]
  %v2448 = vld [vmem:[%s2423 + $0xc0] sm:$0xff]
  %v2449 = vld [vmem:[%s2423 + $0xc8] sm:$0xff]
  %v2450 = vld [vmem:[%s2423 + $0xd0] sm:$0xff]
  %v2451 = vld [vmem:[%s2423 + $0xd8] sm:$0xff]
  %v2452 = vld [vmem:[%s2423 + $0xe0] sm:$0xff]
  %v2453 = vld [vmem:[%s2423 + $0xe8] sm:$0xff]
  %v2454 = vld [vmem:[%s2423 + $0xf0] sm:$0xff]
  %v2455 = vld [vmem:[%s2423 + $0xf8] sm:$0xff]
  %v2456 = vld [vmem:[%s2423 + $0x100] sm:$0xff]
  %v2457 = vld [vmem:[%s2423 + $0x108] sm:$0xff]
  %v2458 = vld [vmem:[%s2423 + $0x110] sm:$0xff]
  %v2459 = vld [vmem:[%s2423 + $0x118] sm:$0xff]
  %v2460 = vld [vmem:[%s2423 + $0x120] sm:$0xff]
  %v2461 = vld [vmem:[%s2423 + $0x128] sm:$0xff]
  %v2462 = vld [vmem:[%s2423 + $0x130] sm:$0xff]
  %v2463 = vld [vmem:[%s2423 + $0x138] sm:$0xff]
  %v2464 = vld [vmem:[%s2423 + $0x140] sm:$0x11]
  %v2465 = vld [vmem:[%s2423 + $0x148] sm:$0x11]
  %v2508 = vunpack.c.l.b16 %v2424
  %v2509 = vunpack.c.h.b16 %v2424
  %v2510 = vunpack.c.l.b16 %v2425
  %v2511 = vunpack.c.h.b16 %v2425
  %v2512 = vunpack.c.l.b16 %v2426
  %v2513 = vunpack.c.h.b16 %v2426
  %v2514 = vunpack.c.l.b16 %v2427
  %v2515 = vunpack.c.h.b16 %v2427
  %v2516 = vunpack.c.l.b16 %v2428
  %v2517 = vunpack.c.h.b16 %v2428
  %v2518 = vunpack.c.l.b16 %v2429
  %v2519 = vunpack.c.h.b16 %v2429
  %v2520 = vunpack.c.l.b16 %v2430
  %v2521 = vunpack.c.h.b16 %v2430
  %v2522 = vunpack.c.l.b16 %v2431
  %v2523 = vunpack.c.h.b16 %v2431
  %v2524 = vunpack.c.l.b16 %v2432
  %v2525 = vunpack.c.h.b16 %v2432
  %v2526 = vunpack.c.l.b16 %v2433
  %v2527 = vunpack.c.h.b16 %v2433
  %v2528 = vunpack.c.l.b16 %v2434
  %v2529 = vunpack.c.h.b16 %v2434
  %v2530 = vunpack.c.l.b16 %v2435
  %v2531 = vunpack.c.h.b16 %v2435
  %v2532 = vunpack.c.l.b16 %v2436
  %v2533 = vunpack.c.h.b16 %v2436
  %v2534 = vunpack.c.l.b16 %v2437
  %v2535 = vunpack.c.h.b16 %v2437
  %v2536 = vunpack.c.l.b16 %v2438
  %v2537 = vunpack.c.h.b16 %v2438
  %v2538 = vunpack.c.l.b16 %v2439
  %v2539 = vunpack.c.h.b16 %v2439
  %v2540 = vunpack.c.l.b16 %v2440
  %v2541 = vunpack.c.h.b16 %v2440
  %v2542 = vunpack.c.l.b16 %v2441
  %v2543 = vunpack.c.h.b16 %v2441
  %v2544 = vunpack.c.l.b16 %v2442
  %v2545 = vunpack.c.h.b16 %v2442
  %v2546 = vunpack.c.l.b16 %v2443
  %v2547 = vunpack.c.h.b16 %v2443
  %v2548 = vunpack.c.l.b16 %v2444
  %v2549 = vunpack.c.h.b16 %v2444
  %v2550 = vunpack.c.l.b16 %v2445
  %v2551 = vunpack.c.h.b16 %v2445
  %v2552 = vunpack.c.l.b16 %v2446
  %v2553 = vunpack.c.h.b16 %v2446
  %v2554 = vunpack.c.l.b16 %v2447
  %v2555 = vunpack.c.h.b16 %v2447
  %v2556 = vunpack.c.l.b16 %v2448
  %v2557 = vunpack.c.h.b16 %v2448
  %v2558 = vunpack.c.l.b16 %v2449
  %v2559 = vunpack.c.h.b16 %v2449
  %v2560 = vunpack.c.l.b16 %v2450
  %v2561 = vunpack.c.h.b16 %v2450
  %v2562 = vunpack.c.l.b16 %v2451
  %v2563 = vunpack.c.h.b16 %v2451
  %v2564 = vunpack.c.l.b16 %v2452
  %v2565 = vunpack.c.h.b16 %v2452
  %v2566 = vunpack.c.l.b16 %v2453
  %v2567 = vunpack.c.h.b16 %v2453
  %v2568 = vunpack.c.l.b16 %v2454
  %v2569 = vunpack.c.h.b16 %v2454
  %v2570 = vunpack.c.l.b16 %v2455
  %v2571 = vunpack.c.h.b16 %v2455
  %v2572 = vunpack.c.l.b16 %v2456
  %v2573 = vunpack.c.h.b16 %v2456
  %v2574 = vunpack.c.l.b16 %v2457
  %v2575 = vunpack.c.h.b16 %v2457
  %v2576 = vunpack.c.l.b16 %v2458
  %v2577 = vunpack.c.h.b16 %v2458
  %v2578 = vunpack.c.l.b16 %v2459
  %v2579 = vunpack.c.h.b16 %v2459
  %v2580 = vunpack.c.l.b16 %v2460
  %v2581 = vunpack.c.h.b16 %v2460
  %v2582 = vunpack.c.l.b16 %v2461
  %v2583 = vunpack.c.h.b16 %v2461
  %v2584 = vunpack.c.l.b16 %v2462
  %v2585 = vunpack.c.h.b16 %v2462
  %v2586 = vunpack.c.l.b16 %v2463
  %v2587 = vunpack.c.h.b16 %v2463
  %v2588 = vunpack.c.l.b16 %v2464
  %v2589 = vunpack.c.h.b16 %v2464
  %v2590 = vunpack.c.l.b16 %v2465
  %v2591 = vunpack.c.h.b16 %v2465
  %v2592 = vpack.c.b16 %v2512, %v2508
  %v2593 = vpack.c.b16 %v2513, %v2509
  %v2594 = vpack.c.b16 %v2514, %v2510
  %v2595 = vpack.c.b16 %v2515, %v2511
  %v2596 = vpack.c.b16 %v2520, %v2516
  %v2597 = vpack.c.b16 %v2521, %v2517
  %v2598 = vpack.c.b16 %v2522, %v2518
  %v2599 = vpack.c.b16 %v2523, %v2519
  %v2600 = vpack.c.b16 %v2528, %v2524
  %v2601 = vpack.c.b16 %v2529, %v2525
  %v2602 = vpack.c.b16 %v2530, %v2526
  %v2603 = vpack.c.b16 %v2531, %v2527
  %v2604 = vpack.c.b16 %v2536, %v2532
  %v2605 = vpack.c.b16 %v2537, %v2533
  %v2606 = vpack.c.b16 %v2538, %v2534
  %v2607 = vpack.c.b16 %v2539, %v2535
  %v2608 = vpack.c.b16 %v2544, %v2540
  %v2609 = vpack.c.b16 %v2545, %v2541
  %v2610 = vpack.c.b16 %v2546, %v2542
  %v2611 = vpack.c.b16 %v2547, %v2543
  %v2612 = vpack.c.b16 %v2552, %v2548
  %v2613 = vpack.c.b16 %v2553, %v2549
  %v2614 = vpack.c.b16 %v2554, %v2550
  %v2615 = vpack.c.b16 %v2555, %v2551
  %v2616 = vpack.c.b16 %v2560, %v2556
  %v2617 = vpack.c.b16 %v2561, %v2557
  %v2618 = vpack.c.b16 %v2562, %v2558
  %v2619 = vpack.c.b16 %v2563, %v2559
  %v2620 = vpack.c.b16 %v2568, %v2564
  %v2621 = vpack.c.b16 %v2569, %v2565
  %v2622 = vpack.c.b16 %v2570, %v2566
  %v2623 = vpack.c.b16 %v2571, %v2567
  %v2624 = vpack.c.b16 %v2576, %v2572
  %v2625 = vpack.c.b16 %v2577, %v2573
  %v2626 = vpack.c.b16 %v2578, %v2574
  %v2627 = vpack.c.b16 %v2579, %v2575
  %v2628 = vpack.c.b16 %v2584, %v2580
  %v2629 = vpack.c.b16 %v2585, %v2581
  %v2630 = vpack.c.b16 %v2586, %v2582
  %v2631 = vpack.c.b16 %v2587, %v2583
  %v2632 = vpack.c.b16 %v2588, %v2588
  %v2633 = vpack.c.b16 %v2589, %v2589
  %v2634 = vpack.c.b16 %v2590, %v2590
  %v2635 = vpack.c.b16 %v2591, %v2591
  %2680 = vmatprep.subr.bf16.mxu0 0
  %2681 = vmatpush1.bf16.msra.mxu0 %v515
  %2682 = vmatprep.subr.bf16.mxu0 0
  %2683 = vmatpush1.bf16.msra.mxu0 %v516
  %2684 = vmatprep.subr.bf16.mxu0 0
  %2685 = vmatpush1.bf16.msra.mxu0 %v517
  %2686 = vmatprep.subr.bf16.mxu0 0
  %2687 = vmatpush1.bf16.msra.mxu0 %v518
  %2688 = vmatprep.subr.bf16.mxu0 0
  %2689 = vmatpush1.bf16.msra.mxu0 %v519
  %2690 = vmatprep.subr.bf16.mxu0 0
  %2691 = vmatpush1.bf16.msra.mxu0 %v520
  %2692 = vmatprep.subr.bf16.mxu0 0
  %2693 = vmatpush1.bf16.msra.mxu0 %v521
  %2694 = vmatprep.subr.bf16.mxu0 0
  %2695 = vmatpush1.bf16.msra.mxu0 %v522
  %2696 = vmatprep.subr.bf16.mxu0 0
  %2697 = vmatpush1.bf16.msra.mxu0 %v523
  %2698 = vmatprep.subr.bf16.mxu0 0
  %2699 = vmatpush1.bf16.msra.mxu0 %v524
  %2700 = vmatprep.subr.bf16.mxu0 0
  %2701 = vmatpush1.bf16.msra.mxu0 %v525
  %2702 = vmatprep.subr.bf16.mxu0 0
  %2703 = vmatpush1.bf16.msra.mxu0 %v526
  %2704 = vmatprep.subr.bf16.mxu0 0
  %2705 = vmatpush1.bf16.msra.mxu0 %v527
  %2706 = vmatprep.subr.bf16.mxu0 0
  %2707 = vmatpush1.bf16.msra.mxu0 %v528
  %2708 = vmatprep.subr.bf16.mxu0 0
  %2709 = vmatpush1.bf16.msra.mxu0 %v529
  %2710 = vmatprep.subr.bf16.mxu0 0
  %2711 = vmatpush1.bf16.msra.mxu0 %v530
  %2712 = vmatprep.mubr.bf16.mxu0 %v2593
  %2713 = vmatmul.mubr.bf16.gmra.mrb[0].mxu0 %v2592
  %v2714 = vpop.f32.mrb[0].mxu0
  %v2715 = vadd.f32 0.0, %v2714
  %v2716 = vpop.f32.mrb[0].mxu0
  %v2717 = vpop.f32.mrb[0].mxu0
  %v2718 = vadd.f32 0.0, %v2717
  %v2719 = vpop.f32.mrb[0].mxu0
  %2720 = vmatprep.mubr.bf16.mxu0 %v2597
  %2721 = vmatmul.mubr.bf16.gmra.mrb[0].mxu0 %v2596
  %v2722 = vpop.f32.mrb[0].mxu0
  %v2723 = vadd.f32 0.0, %v2722
  %v2724 = vpop.f32.mrb[0].mxu0
  %v2725 = vpop.f32.mrb[0].mxu0
  %v2726 = vadd.f32 0.0, %v2725
  %v2727 = vpop.f32.mrb[0].mxu0
  %2728 = vmatprep.mubr.bf16.mxu0 %v2601
  %2729 = vmatmul.mubr.bf16.gmra.mrb[0].mxu0 %v2600
  %v2730 = vpop.f32.mrb[0].mxu0
  %v2731 = vadd.f32 0.0, %v2730
  %v2732 = vpop.f32.mrb[0].mxu0
  %v2733 = vpop.f32.mrb[0].mxu0
  %v2734 = vadd.f32 0.0, %v2733
  %v2735 = vpop.f32.mrb[0].mxu0
  %2736 = vmatprep.mubr.bf16.mxu0 %v2605
  %2737 = vmatmul.mubr.bf16.gmra.mrb[0].mxu0 %v2604
  %v2738 = vpop.f32.mrb[0].mxu0
  %v2739 = vadd.f32 0.0, %v2738
  %v2740 = vpop.f32.mrb[0].mxu0
  %v2741 = vpop.f32.mrb[0].mxu0
  %v2742 = vadd.f32 0.0, %v2741
  %v2743 = vpop.f32.mrb[0].mxu0
  %2744 = vmatprep.mubr.bf16.mxu0 %v2609
  %2745 = vmatmul.mubr.bf16.gmra.mrb[0].mxu0 %v2608
  %v2746 = vpop.f32.mrb[0].mxu0
  %v2747 = vadd.f32 0.0, %v2746
  %v2748 = vpop.f32.mrb[0].mxu0
  %v2749 = vpop.f32.mrb[0].mxu0
  %v2750 = vadd.f32 0.0, %v2749
  %v2751 = vpop.f32.mrb[0].mxu0
  %2752 = vmatprep.mubr.bf16.mxu0 %v2613
  %2753 = vmatmul.mubr.bf16.gmra.mrb[0].mxu0 %v2612
  %v2754 = vpop.f32.mrb[0].mxu0
  %v2755 = vadd.f32 0.0, %v2754
  %v2756 = vpop.f32.mrb[0].mxu0
  %v2757 = vpop.f32.mrb[0].mxu0
  %v2758 = vadd.f32 0.0, %v2757
  %v2759 = vpop.f32.mrb[0].mxu0
  %2760 = vmatprep.mubr.bf16.mxu0 %v2617
  %2761 = vmatmul.mubr.bf16.gmra.mrb[0].mxu0 %v2616
  %v2762 = vpop.f32.mrb[0].mxu0
  %v2763 = vadd.f32 0.0, %v2762
  %v2764 = vpop.f32.mrb[0].mxu0
  %v2765 = vpop.f32.mrb[0].mxu0
  %v2766 = vadd.f32 0.0, %v2765
  %v2767 = vpop.f32.mrb[0].mxu0
  %2768 = vmatprep.mubr.bf16.mxu0 %v2621
  %2769 = vmatmul.mubr.bf16.gmra.mrb[0].mxu0 %v2620
  %v2770 = vpop.f32.mrb[0].mxu0
  %v2771 = vadd.f32 0.0, %v2770
  %v2772 = vpop.f32.mrb[0].mxu0
  %v2773 = vpop.f32.mrb[0].mxu0
  %v2774 = vadd.f32 0.0, %v2773
  %v2775 = vpop.f32.mrb[0].mxu0
  %2776 = vmatprep.mubr.bf16.mxu0 %v2625
  %2777 = vmatmul.mubr.bf16.gmra.mrb[0].mxu0 %v2624
  %v2778 = vpop.f32.mrb[0].mxu0
  %v2779 = vadd.f32 0.0, %v2778
  %v2780 = vpop.f32.mrb[0].mxu0
  %v2781 = vpop.f32.mrb[0].mxu0
  %v2782 = vadd.f32 0.0, %v2781
  %v2783 = vpop.f32.mrb[0].mxu0
  %2784 = vmatprep.mubr.bf16.mxu0 %v2629
  %2785 = vmatmul.mubr.bf16.gmra.mrb[0].mxu0 %v2628
  %v2786 = vpop.f32.mrb[0].mxu0
  %v2787 = vadd.f32 0.0, %v2786
  %v2788 = vpop.f32.mrb[0].mxu0
  %v2789 = vpop.f32.mrb[0].mxu0
  %v2790 = vadd.f32 0.0, %v2789
  %v2791 = vpop.f32.mrb[0].mxu0
  %2792 = vmatprep.mubr.bf16.mxu0 %v2633
  %2793 = vmatmul.mubr.bf16.gmra.mrb[0].mxu0 %v2632
  %v2794 = vpop.f32.mrb[0].mxu0
  %v2795 = vadd.f32 0.0, %v2794
  %v2796 = vpop.f32.mrb[0].mxu0
  %v2797 = vpop.f32.mrb[0].mxu0
  %v2798 = vpop.f32.mrb[0].mxu0
  %2799 = vdwg.mxu0
  %2800 = vmatprep.subr.bf16.mxu0 0
  %2801 = vmatpush1.bf16.msra.mxu0 %v531
  %2802 = vmatprep.subr.bf16.mxu0 0
  %2803 = vmatpush1.bf16.msra.mxu0 %v532
  %2804 = vmatprep.subr.bf16.mxu0 0
  %2805 = vmatpush1.bf16.msra.mxu0 %v533
  %2806 = vmatprep.subr.bf16.mxu0 0
  %2807 = vmatpush1.bf16.msra.mxu0 %v534
  %2808 = vmatprep.subr.bf16.mxu0 0
  %2809 = vmatpush1.bf16.msra.mxu0 %v535
  %2810 = vmatprep.subr.bf16.mxu0 0
  %2811 = vmatpush1.bf16.msra.mxu0 %v536
  %2812 = vmatprep.subr.bf16.mxu0 0
  %2813 = vmatpush1.bf16.msra.mxu0 %v537
  %2814 = vmatprep.subr.bf16.mxu0 0
  %2815 = vmatpush1.bf16.msra.mxu0 %v538
  %2816 = vmatprep.subr.bf16.mxu0 0
  %2817 = vmatpush1.bf16.msra.mxu0 %v539
  %2818 = vmatprep.subr.bf16.mxu0 0
  %2819 = vmatpush1.bf16.msra.mxu0 %v540
  %2820 = vmatprep.subr.bf16.mxu0 0
  %2821 = vmatpush1.bf16.msra.mxu0 %v541
  %2822 = vmatprep.subr.bf16.mxu0 0
  %2823 = vmatpush1.bf16.msra.mxu0 %v542
  %2824 = vmatprep.subr.bf16.mxu0 0
  %2825 = vmatpush1.bf16.msra.mxu0 %v543
  %2826 = vmatprep.subr.bf16.mxu0 0
  %2827 = vmatpush1.bf16.msra.mxu0 %v544
  %2828 = vmatprep.subr.bf16.mxu0 0
  %2829 = vmatpush1.bf16.msra.mxu0 %v545
  %2830 = vmatprep.subr.bf16.mxu0 0
  %2831 = vmatpush1.bf16.msra.mxu0 %v546
  %2832 = vmatprep.mubr.bf16.mxu0 %v2595
  %2833 = vmatmul.mubr.bf16.gmra.mrb[0].mxu0 %v2594
  %v2834 = vpop.f32.mrb[0].mxu0
  %v2835 = vadd.f32 %v2715, %v2834
  %v2836 = vpop.f32.mrb[0].mxu0
  %v2837 = vpop.f32.mrb[0].mxu0
  %v2838 = vadd.f32 %v2718, %v2837
  %v2839 = vpop.f32.mrb[0].mxu0
  %2840 = vmatprep.mubr.bf16.mxu0 %v2599
  %2841 = vmatmul.mubr.bf16.gmra.mrb[0].mxu0 %v2598
  %v2842 = vpop.f32.mrb[0].mxu0
  %v2843 = vadd.f32 %v2723, %v2842
  %v2844 = vpop.f32.mrb[0].mxu0
  %v2845 = vpop.f32.mrb[0].mxu0
  %v2846 = vadd.f32 %v2726, %v2845
  %v2847 = vpop.f32.mrb[0].mxu0
  %2848 = vmatprep.mubr.bf16.mxu0 %v2603
  %2849 = vmatmul.mubr.bf16.gmra.mrb[0].mxu0 %v2602
  %v2850 = vpop.f32.mrb[0].mxu0
  %v2851 = vadd.f32 %v2731, %v2850
  %v2852 = vpop.f32.mrb[0].mxu0
  %v2853 = vpop.f32.mrb[0].mxu0
  %v2854 = vadd.f32 %v2734, %v2853
  %v2855 = vpop.f32.mrb[0].mxu0
  %2856 = vmatprep.mubr.bf16.mxu0 %v2607
  %2857 = vmatmul.mubr.bf16.gmra.mrb[0].mxu0 %v2606
  %v2858 = vpop.f32.mrb[0].mxu0
  %v2859 = vadd.f32 %v2739, %v2858
  %v2860 = vpop.f32.mrb[0].mxu0
  %v2861 = vpop.f32.mrb[0].mxu0
  %v2862 = vadd.f32 %v2742, %v2861
  %v2863 = vpop.f32.mrb[0].mxu0
  %2864 = vmatprep.mubr.bf16.mxu0 %v2611
  %2865 = vmatmul.mubr.bf16.gmra.mrb[0].mxu0 %v2610
  %v2866 = vpop.f32.mrb[0].mxu0
  %v2867 = vadd.f32 %v2747, %v2866
  %v2868 = vpop.f32.mrb[0].mxu0
  %v2869 = vpop.f32.mrb[0].mxu0
  %v2870 = vadd.f32 %v2750, %v2869
  %v2871 = vpop.f32.mrb[0].mxu0
  %2872 = vmatprep.mubr.bf16.mxu0 %v2615
  %2873 = vmatmul.mubr.bf16.gmra.mrb[0].mxu0 %v2614
  %v2874 = vpop.f32.mrb[0].mxu0
  %v2875 = vadd.f32 %v2755, %v2874
  %v2876 = vpop.f32.mrb[0].mxu0
  %v2877 = vpop.f32.mrb[0].mxu0
  %v2878 = vadd.f32 %v2758, %v2877
  %v2879 = vpop.f32.mrb[0].mxu0
  %2880 = vmatprep.mubr.bf16.mxu0 %v2619
  %2881 = vmatmul.mubr.bf16.gmra.mrb[0].mxu0 %v2618
  %v2882 = vpop.f32.mrb[0].mxu0
  %v2883 = vadd.f32 %v2763, %v2882
  %v2884 = vpop.f32.mrb[0].mxu0
  %v2885 = vpop.f32.mrb[0].mxu0
  %v2886 = vadd.f32 %v2766, %v2885
  %v2887 = vpop.f32.mrb[0].mxu0
  %2888 = vmatprep.mubr.bf16.mxu0 %v2623
  %2889 = vmatmul.mubr.bf16.gmra.mrb[0].mxu0 %v2622
  %v2890 = vpop.f32.mrb[0].mxu0
  %v2891 = vadd.f32 %v2771, %v2890
  %v2892 = vpop.f32.mrb[0].mxu0
  %v2893 = vpop.f32.mrb[0].mxu0
  %v2894 = vadd.f32 %v2774, %v2893
  %v2895 = vpop.f32.mrb[0].mxu0
  %2896 = vmatprep.mubr.bf16.mxu0 %v2627
  %2897 = vmatmul.mubr.bf16.gmra.mrb[0].mxu0 %v2626
  %v2898 = vpop.f32.mrb[0].mxu0
  %v2899 = vadd.f32 %v2779, %v2898
  %v2900 = vpop.f32.mrb[0].mxu0
  %v2901 = vpop.f32.mrb[0].mxu0
  %v2902 = vadd.f32 %v2782, %v2901
  %v2903 = vpop.f32.mrb[0].mxu0
  %2904 = vmatprep.mubr.bf16.mxu0 %v2631
  %2905 = vmatmul.mubr.bf16.gmra.mrb[0].mxu0 %v2630
  %v2906 = vpop.f32.mrb[0].mxu0
  %v2907 = vadd.f32 %v2787, %v2906
  %v2908 = vpop.f32.mrb[0].mxu0
  %v2909 = vpop.f32.mrb[0].mxu0
  %v2910 = vadd.f32 %v2790, %v2909
  %v2911 = vpop.f32.mrb[0].mxu0
  %2912 = vmatprep.mubr.bf16.mxu0 %v2635
  %2913 = vmatmul.mubr.bf16.gmra.mrb[0].mxu0 %v2634
  %v2914 = vpop.f32.mrb[0].mxu0
  %v2915 = vadd.f32 %v2795, %v2914
  %v2916 = vpop.f32.mrb[0].mxu0
  %v2917 = vpop.f32.mrb[0].mxu0
  %v2918 = vpop.f32.mrb[0].mxu0
  %2919 = vdwg.mxu0
  %v2920 = vpack.c.bf16 %v2838, %v2835
  %v2921 = vpack.c.bf16 %v2846, %v2843
  %v2922 = vpack.c.bf16 %v2854, %v2851
  %v2923 = vpack.c.bf16 %v2862, %v2859
  %v2924 = vpack.c.bf16 %v2870, %v2867
  %v2925 = vpack.c.bf16 %v2878, %v2875
  %v2926 = vpack.c.bf16 %v2886, %v2883
  %v2927 = vpack.c.bf16 %v2894, %v2891
  %v2928 = vpack.c.bf16 %v2902, %v2899
  %v2929 = vpack.c.bf16 %v2910, %v2907
  %v2930 = vpack.c.bf16 %v2915, %v2915
  %s2931 = scalar_lea.vmem %s5, 36
  %v2932 = vld [vmem:[%s2931] sm:$0xf]
  %v2933 = vld [vmem:[%s2931 + $0x4] sm:$0xf]
  %v2934 = vld [vmem:[%s2931 + $0x8] sm:$0xf]
  %v2938 = vunpack.c.l.b16 %v2932
  %v2939 = vunpack.c.l.b16 %v2933
  %v2940 = vunpack.c.l.b16 %v2934
  %v2941 = vpack.c.b16 %v2939, %v2938
  %v2942 = vpack.c.b16 %v2940, %v2940
  %v2945 = vsel %vm842, %v2920, 0
  %v2948 = vsel %vm842, %v2921, 0
  %v2951 = vsel %vm842, %v2922, 0
  %v2954 = vsel %vm842, %v2923, 0
  %v2957 = vsel %vm842, %v2924, 0
  %v2960 = vsel %vm842, %v2925, 0
  %v2963 = vsel %vm842, %v2926, 0
  %v2966 = vsel %vm842, %v2927, 0
  %v2969 = vsel %vm842, %v2928, 0
  %v2972 = vsel %vm842, %v2929, 0
  %v2975 = vsel %vm842, %v2930, 0
  %v2978 = vsel %vm876, %v2942, 0
  %2980 = vmatprep.subr.bf16.mxu0 0
  %2981 = vmatpush1.bf16.msra.mxu0 %v2941
  %2982 = vmatprep.subr.bf16.mxu0 0
  %2983 = vmatpush1.bf16.msra.mxu0 %v2978
  %2984 = vmatprep.subr.bf16.mxu0 0
  %2985 = vmatpush1.bf16.msra.mxu0 0
  %2986 = vmatprep.subr.bf16.mxu0 0
  %2987 = vmatpush1.bf16.msra.mxu0 0
  %2988 = vmatprep.subr.bf16.mxu0 0
  %2989 = vmatpush1.bf16.msra.mxu0 0
  %2990 = vmatprep.subr.bf16.mxu0 0
  %2991 = vmatpush1.bf16.msra.mxu0 0
  %2992 = vmatprep.subr.bf16.mxu0 0
  %2993 = vmatpush1.bf16.msra.mxu0 0
  %2994 = vmatprep.subr.bf16.mxu0 0
  %2995 = vmatpush1.bf16.msra.mxu0 0
  %2996 = vmatprep.subr.bf16.mxu0 0
  %2997 = vmatpush1.bf16.msra.mxu0 0
  %2998 = vmatprep.subr.bf16.mxu0 0
  %2999 = vmatpush1.bf16.msra.mxu0 0
  %3000 = vmatprep.subr.bf16.mxu0 0
  %3001 = vmatpush1.bf16.msra.mxu0 0
  %3002 = vmatprep.subr.bf16.mxu0 0
  %3003 = vmatpush1.bf16.msra.mxu0 0
  %3004 = vmatprep.subr.bf16.mxu0 0
  %3005 = vmatpush1.bf16.msra.mxu0 0
  %3006 = vmatprep.subr.bf16.mxu0 0
  %3007 = vmatpush1.bf16.msra.mxu0 0
  %3008 = vmatprep.subr.bf16.mxu0 0
  %3009 = vmatpush1.bf16.msra.mxu0 0
  %3010 = vmatprep.subr.bf16.mxu0 0
  %3011 = vmatpush1.bf16.msra.mxu0 0
  %3012 = vmatprep.mubr.bf16.mxu0 0
  %3013 = vmatmul.mubr.bf16.gmra.mrb[0].mxu0 %v2945
  %v3014 = vpop.f32.mrb[0].mxu0
  %v3015 = vadd.f32 0.0, %v3014
  %v3016 = vpop.f32.mrb[0].mxu0
  %v3017 = vpop.f32.mrb[0].mxu0
  %v3018 = vadd.f32 0.0, %v3017
  %v3019 = vpop.f32.mrb[0].mxu0
  %3020 = vmatprep.mubr.bf16.mxu0 0
  %3021 = vmatmul.mubr.bf16.gmra.mrb[0].mxu0 %v2948
  %v3022 = vpop.f32.mrb[0].mxu0
  %v3023 = vadd.f32 0.0, %v3022
  %v3024 = vpop.f32.mrb[0].mxu0
  %v3025 = vpop.f32.mrb[0].mxu0
  %v3026 = vadd.f32 0.0, %v3025
  %v3027 = vpop.f32.mrb[0].mxu0
  %3028 = vmatprep.mubr.bf16.mxu0 0
  %3029 = vmatmul.mubr.bf16.gmra.mrb[0].mxu0 %v2951
  %v3030 = vpop.f32.mrb[0].mxu0
  %v3031 = vadd.f32 0.0, %v3030
  %v3032 = vpop.f32.mrb[0].mxu0
  %v3033 = vpop.f32.mrb[0].mxu0
  %v3034 = vadd.f32 0.0, %v3033
  %v3035 = vpop.f32.mrb[0].mxu0
  %3036 = vmatprep.mubr.bf16.mxu0 0
  %3037 = vmatmul.mubr.bf16.gmra.mrb[0].mxu0 %v2954
  %v3038 = vpop.f32.mrb[0].mxu0
  %v3039 = vadd.f32 0.0, %v3038
  %v3040 = vpop.f32.mrb[0].mxu0
  %v3041 = vpop.f32.mrb[0].mxu0
  %v3042 = vadd.f32 0.0, %v3041
  %v3043 = vpop.f32.mrb[0].mxu0
  %3044 = vmatprep.mubr.bf16.mxu0 0
  %3045 = vmatmul.mubr.bf16.gmra.mrb[0].mxu0 %v2957
  %v3046 = vpop.f32.mrb[0].mxu0
  %v3047 = vadd.f32 0.0, %v3046
  %v3048 = vpop.f32.mrb[0].mxu0
  %v3049 = vpop.f32.mrb[0].mxu0
  %v3050 = vadd.f32 0.0, %v3049
  %v3051 = vpop.f32.mrb[0].mxu0
  %3052 = vmatprep.mubr.bf16.mxu0 0
  %3053 = vmatmul.mubr.bf16.gmra.mrb[0].mxu0 %v2960
  %v3054 = vpop.f32.mrb[0].mxu0
  %v3055 = vadd.f32 0.0, %v3054
  %v3056 = vpop.f32.mrb[0].mxu0
  %v3057 = vpop.f32.mrb[0].mxu0
  %v3058 = vadd.f32 0.0, %v3057
  %v3059 = vpop.f32.mrb[0].mxu0
  %3060 = vmatprep.mubr.bf16.mxu0 0
  %3061 = vmatmul.mubr.bf16.gmra.mrb[0].mxu0 %v2963
  %v3062 = vpop.f32.mrb[0].mxu0
  %v3063 = vadd.f32 0.0, %v3062
  %v3064 = vpop.f32.mrb[0].mxu0
  %v3065 = vpop.f32.mrb[0].mxu0
  %v3066 = vadd.f32 0.0, %v3065
  %v3067 = vpop.f32.mrb[0].mxu0
  %3068 = vmatprep.mubr.bf16.mxu0 0
  %3069 = vmatmul.mubr.bf16.gmra.mrb[0].mxu0 %v2966
  %v3070 = vpop.f32.mrb[0].mxu0
  %v3071 = vadd.f32 0.0, %v3070
  %v3072 = vpop.f32.mrb[0].mxu0
  %v3073 = vpop.f32.mrb[0].mxu0
  %v3074 = vadd.f32 0.0, %v3073
  %v3075 = vpop.f32.mrb[0].mxu0
  %3076 = vmatprep.mubr.bf16.mxu0 0
  %3077 = vmatmul.mubr.bf16.gmra.mrb[0].mxu0 %v2969
  %v3078 = vpop.f32.mrb[0].mxu0
  %v3079 = vadd.f32 0.0, %v3078
  %v3080 = vpop.f32.mrb[0].mxu0
  %v3081 = vpop.f32.mrb[0].mxu0
  %v3082 = vadd.f32 0.0, %v3081
  %v3083 = vpop.f32.mrb[0].mxu0
  %3084 = vmatprep.mubr.bf16.mxu0 0
  %3085 = vmatmul.mubr.bf16.gmra.mrb[0].mxu0 %v2972
  %v3086 = vpop.f32.mrb[0].mxu0
  %v3087 = vadd.f32 0.0, %v3086
  %v3088 = vpop.f32.mrb[0].mxu0
  %v3089 = vpop.f32.mrb[0].mxu0
  %v3090 = vadd.f32 0.0, %v3089
  %v3091 = vpop.f32.mrb[0].mxu0
  %3092 = vmatprep.mubr.bf16.mxu0 0
  %3093 = vmatmul.mubr.bf16.gmra.mrb[0].mxu0 %v2975
  %v3094 = vpop.f32.mrb[0].mxu0
  %v3095 = vadd.f32 0.0, %v3094
  %v3096 = vpop.f32.mrb[0].mxu0
  %v3097 = vpop.f32.mrb[0].mxu0
  %v3098 = vpop.f32.mrb[0].mxu0
  %3099 = vdwg.mxu0
  %v3100 = vadd.f32 %v2402, %v3015
  %v3101 = vadd.f32 %v2403, %v3018
  %v3102 = vadd.f32 %v2404, %v3023
  %v3103 = vadd.f32 %v2405, %v3026
  %v3104 = vadd.f32 %v2406, %v3031
  %v3105 = vadd.f32 %v2407, %v3034
  %v3106 = vadd.f32 %v2408, %v3039
  %v3107 = vadd.f32 %v2409, %v3042
  %v3108 = vadd.f32 %v2410, %v3047
  %v3109 = vadd.f32 %v2411, %v3050
  %v3110 = vadd.f32 %v2412, %v3055
  %v3111 = vadd.f32 %v2413, %v3058
  %v3112 = vadd.f32 %v2414, %v3063
  %v3113 = vadd.f32 %v2415, %v3066
  %v3114 = vadd.f32 %v2416, %v3071
  %v3115 = vadd.f32 %v2417, %v3074
  %v3116 = vadd.f32 %v2418, %v3079
  %v3117 = vadd.f32 %v2419, %v3082
  %v3118 = vadd.f32 %v2420, %v3087
  %v3119 = vadd.f32 %v2421, %v3090
  %v3120 = vadd.f32 %v2422, %v3095
  %v3121 = vmax.f32 %v3100, 0.0
  %v3122 = vmax.f32 %v3101, 0.0
  %v3123 = vmax.f32 %v3102, 0.0
  %v3124 = vmax.f32 %v3103, 0.0
  %v3125 = vmax.f32 %v3104, 0.0
  %v3126 = vmax.f32 %v3105, 0.0
  %v3127 = vmax.f32 %v3106, 0.0
  %v3128 = vmax.f32 %v3107, 0.0
  %v3129 = vmax.f32 %v3108, 0.0
  %v3130 = vmax.f32 %v3109, 0.0
  %v3131 = vmax.f32 %v3110, 0.0
  %v3132 = vmax.f32 %v3111, 0.0
  %v3133 = vmax.f32 %v3112, 0.0
  %v3134 = vmax.f32 %v3113, 0.0
  %v3135 = vmax.f32 %v3114, 0.0
  %v3136 = vmax.f32 %v3115, 0.0
  %v3137 = vmax.f32 %v3116, 0.0
  %v3138 = vmax.f32 %v3117, 0.0
  %v3139 = vmax.f32 %v3118, 0.0
  %v3140 = vmax.f32 %v3119, 0.0
  %v3141 = vmax.f32 %v3120, 0.0
  %v3142 = vpack.c.bf16 %v3122, %v3121
  %v3143 = vpack.c.bf16 %v3124, %v3123
  %v3144 = vpack.c.bf16 %v3126, %v3125
  %v3145 = vpack.c.bf16 %v3128, %v3127
  %v3146 = vpack.c.bf16 %v3130, %v3129
  %v3147 = vpack.c.bf16 %v3132, %v3131
  %v3148 = vpack.c.bf16 %v3134, %v3133
  %v3149 = vpack.c.bf16 %v3136, %v3135
  %v3150 = vpack.c.bf16 %v3138, %v3137
  %v3151 = vpack.c.bf16 %v3140, %v3139
  %v3152 = vpack.c.bf16 %v3141, %v3141
  %v3153 = vld [vmem:[%s10] sm:$0x1]
  %v3154 = vld [vmem:[%s2] sm:$0xff]
  %v3155 = vld [vmem:[%s2 + $0x8] sm:$0xff]
  %v3156 = vld [vmem:[%s2 + $0x10] sm:$0xff]
  %v3157 = vld [vmem:[%s2 + $0x18] sm:$0xff]
  %v3158 = vld [vmem:[%s2 + $0x20] sm:$0xff]
  %v3159 = vld [vmem:[%s2 + $0x28] sm:$0xff]
  %v3160 = vld [vmem:[%s2 + $0x30] sm:$0x11]
  %v3168 = vunpack.c.l.b16 %v3154
  %v3169 = vunpack.c.h.b16 %v3154
  %v3170 = vunpack.c.l.b16 %v3155
  %v3171 = vunpack.c.h.b16 %v3155
  %v3172 = vunpack.c.l.b16 %v3156
  %v3173 = vunpack.c.h.b16 %v3156
  %v3174 = vunpack.c.l.b16 %v3157
  %v3175 = vunpack.c.h.b16 %v3157
  %v3176 = vunpack.c.l.b16 %v3158
  %v3177 = vunpack.c.h.b16 %v3158
  %v3178 = vunpack.c.l.b16 %v3159
  %v3179 = vunpack.c.h.b16 %v3159
  %v3180 = vunpack.c.l.b16 %v3160
  %v3181 = vunpack.c.h.b16 %v3160
  %v3182 = vpack.c.b16 %v3170, %v3168
  %v3183 = vpack.c.b16 %v3171, %v3169
  %v3184 = vpack.c.b16 %v3174, %v3172
  %v3185 = vpack.c.b16 %v3175, %v3173
  %v3186 = vpack.c.b16 %v3178, %v3176
  %v3187 = vpack.c.b16 %v3179, %v3177
  %v3188 = vpack.c.b16 %v3180, %v3180
  %v3189 = vpack.c.b16 %v3181, %v3181
  %vm3194 = vcmask 277504
  %v3196 = vsel %vm3194, %v3183, 0
  %v3199 = vsel %vm3194, %v3185, 0
  %v3202 = vsel %vm3194, %v3187, 0
  %v3205 = vsel %vm3194, %v3189, 0
  %vm3207 = vcmask 1040384
  %v3209 = vsel %vm3207, %v3152, 0
  %3211 = vmatprep.subr.bf16.mxu0 0
  %3212 = vmatpush1.bf16.msra.mxu0 %v3142
  %3213 = vmatprep.subr.bf16.mxu0 0
  %3214 = vmatpush1.bf16.msra.mxu0 %v3143
  %3215 = vmatprep.subr.bf16.mxu0 0
  %3216 = vmatpush1.bf16.msra.mxu0 %v3144
  %3217 = vmatprep.subr.bf16.mxu0 0
  %3218 = vmatpush1.bf16.msra.mxu0 %v3145
  %3219 = vmatprep.subr.bf16.mxu0 0
  %3220 = vmatpush1.bf16.msra.mxu0 %v3146
  %3221 = vmatprep.subr.bf16.mxu0 0
  %3222 = vmatpush1.bf16.msra.mxu0 %v3147
  %3223 = vmatprep.subr.bf16.mxu0 0
  %3224 = vmatpush1.bf16.msra.mxu0 %v3148
  %3225 = vmatprep.subr.bf16.mxu0 0
  %3226 = vmatpush1.bf16.msra.mxu0 %v3149
  %3227 = vmatprep.subr.bf16.mxu0 0
  %3228 = vmatpush1.bf16.msra.mxu0 %v3150
  %3229 = vmatprep.subr.bf16.mxu0 0
  %3230 = vmatpush1.bf16.msra.mxu0 %v3151
  %3231 = vmatprep.subr.bf16.mxu0 0
  %3232 = vmatpush1.bf16.msra.mxu0 %v3209
  %3233 = vmatprep.subr.bf16.mxu0 0
  %3234 = vmatpush1.bf16.msra.mxu0 0
  %3235 = vmatprep.subr.bf16.mxu0 0
  %3236 = vmatpush1.bf16.msra.mxu0 0
  %3237 = vmatprep.subr.bf16.mxu0 0
  %3238 = vmatpush1.bf16.msra.mxu0 0
  %3239 = vmatprep.subr.bf16.mxu0 0
  %3240 = vmatpush1.bf16.msra.mxu0 0
  %3241 = vmatprep.subr.bf16.mxu0 0
  %3242 = vmatpush1.bf16.msra.mxu0 0
  %3243 = vmatprep.mubr.bf16.mxu0 %v3196
  %3244 = vmatmul.mubr.bf16.gmra.mrb[0].mxu0 %v3182
  %v3245 = vpop.f32.mrb[0].mxu0
  %v3246 = vadd.f32 0.0, %v3245
  %v3247 = vpop.f32.mrb[0].mxu0
  %v3248 = vpop.f32.mrb[0].mxu0
  %v3249 = vadd.f32 0.0, %v3248
  %v3250 = vpop.f32.mrb[0].mxu0
  %3251 = vmatprep.mubr.bf16.mxu0 %v3199
  %3252 = vmatmul.mubr.bf16.gmra.mrb[0].mxu0 %v3184
  %v3253 = vpop.f32.mrb[0].mxu0
  %v3254 = vadd.f32 0.0, %v3253
  %v3255 = vpop.f32.mrb[0].mxu0
  %v3256 = vpop.f32.mrb[0].mxu0
  %v3257 = vadd.f32 0.0, %v3256
  %v3258 = vpop.f32.mrb[0].mxu0
  %3259 = vmatprep.mubr.bf16.mxu0 %v3202
  %3260 = vmatmul.mubr.bf16.gmra.mrb[0].mxu0 %v3186
  %v3261 = vpop.f32.mrb[0].mxu0
  %v3262 = vadd.f32 0.0, %v3261
  %v3263 = vpop.f32.mrb[0].mxu0
  %v3264 = vpop.f32.mrb[0].mxu0
  %v3265 = vadd.f32 0.0, %v3264
  %v3266 = vpop.f32.mrb[0].mxu0
  %3267 = vmatprep.mubr.bf16.mxu0 %v3205
  %3268 = vmatmul.mubr.bf16.gmra.mrb[0].mxu0 %v3188
  %v3269 = vpop.f32.mrb[0].mxu0
  %v3270 = vadd.f32 0.0, %v3269
  %v3271 = vpop.f32.mrb[0].mxu0
  %v3272 = vpop.f32.mrb[0].mxu0
  %v3273 = vpop.f32.mrb[0].mxu0
  %3274 = vdwg.mxu0
  %v3275 = vpack.c.bf16 %v3249, %v3246
  %v3276 = vpack.c.bf16 %v3257, %v3254
  %v3277 = vpack.c.bf16 %v3265, %v3262
  %v3278 = vpack.c.bf16 %v3270, %v3270
  %v3279 = vld [vmem:[%s6] sm:$0xf]
  %v3280 = vld [vmem:[%s6 + $0x4] sm:$0xf]
  %v3281 = vld [vmem:[%s6 + $0x8] sm:$0xf]
  %v3282 = vld [vmem:[%s6 + $0xc] sm:$0xf]
  %v3287 = vunpack.c.l.b16 %v3279
  %v3288 = vunpack.c.l.b16 %v3280
  %v3289 = vunpack.c.l.b16 %v3281
  %v3290 = vunpack.c.l.b16 %v3282
  %v3291 = vpack.c.b16 %v3288, %v3287
  %v3292 = vpack.c.b16 %v3290, %v3289
  %vm3295 = vcmask 261120
  %v3297 = vsel %vm3295, %v3275, 0
  %v3300 = vsel %vm3295, %v3276, 0
  %v3303 = vsel %vm3295, %v3277, 0
  %v3306 = vsel %vm3295, %v3278, 0
  %3308 = vmatprep.subr.bf16.mxu0 0
  %3309 = vmatpush1.bf16.msra.mxu0 %v3291
  %3310 = vmatprep.subr.bf16.mxu0 0
  %3311 = vmatpush1.bf16.msra.mxu0 %v3292
  %3312 = vmatprep.subr.bf16.mxu0 0
  %3313 = vmatpush1.bf16.msra.mxu0 0
  %3314 = vmatprep.subr.bf16.mxu0 0
  %3315 = vmatpush1.bf16.msra.mxu0 0
  %3316 = vmatprep.subr.bf16.mxu0 0
  %3317 = vmatpush1.bf16.msra.mxu0 0
  %3318 = vmatprep.subr.bf16.mxu0 0
  %3319 = vmatpush1.bf16.msra.mxu0 0
  %3320 = vmatprep.subr.bf16.mxu0 0
  %3321 = vmatpush1.bf16.msra.mxu0 0
  %3322 = vmatprep.subr.bf16.mxu0 0
  %3323 = vmatpush1.bf16.msra.mxu0 0
  %3324 = vmatprep.subr.bf16.mxu0 0
  %3325 = vmatpush1.bf16.msra.mxu0 0
  %3326 = vmatprep.subr.bf16.mxu0 0
  %3327 = vmatpush1.bf16.msra.mxu0 0
  %3328 = vmatprep.subr.bf16.mxu0 0
  %3329 = vmatpush1.bf16.msra.mxu0 0
  %3330 = vmatprep.subr.bf16.mxu0 0
  %3331 = vmatpush1.bf16.msra.mxu0 0
  %3332 = vmatprep.subr.bf16.mxu0 0
  %3333 = vmatpush1.bf16.msra.mxu0 0
  %3334 = vmatprep.subr.bf16.mxu0 0
  %3335 = vmatpush1.bf16.msra.mxu0 0
  %3336 = vmatprep.subr.bf16.mxu0 0
  %3337 = vmatpush1.bf16.msra.mxu0 0
  %3338 = vmatprep.subr.bf16.mxu0 0
  %3339 = vmatpush1.bf16.msra.mxu0 0
  %3340 = vmatprep.mubr.bf16.mxu0 0
  %3341 = vmatmul.mubr.bf16.gmra.mrb[0].mxu0 %v3297
  %v3342 = vpop.f32.mrb[0].mxu0
  %v3343 = vadd.f32 0.0, %v3342
  %v3344 = vpop.f32.mrb[0].mxu0
  %v3345 = vpop.f32.mrb[0].mxu0
  %v3346 = vadd.f32 0.0, %v3345
  %v3347 = vpop.f32.mrb[0].mxu0
  %3348 = vmatprep.mubr.bf16.mxu0 0
  %3349 = vmatmul.mubr.bf16.gmra.mrb[0].mxu0 %v3300
  %v3350 = vpop.f32.mrb[0].mxu0
  %v3351 = vadd.f32 0.0, %v3350
  %v3352 = vpop.f32.mrb[0].mxu0
  %v3353 = vpop.f32.mrb[0].mxu0
  %v3354 = vadd.f32 0.0, %v3353
  %v3355 = vpop.f32.mrb[0].mxu0
  %3356 = vmatprep.mubr.bf16.mxu0 0
  %3357 = vmatmul.mubr.bf16.gmra.mrb[0].mxu0 %v3303
  %v3358 = vpop.f32.mrb[0].mxu0
  %v3359 = vadd.f32 0.0, %v3358
  %v3360 = vpop.f32.mrb[0].mxu0
  %v3361 = vpop.f32.mrb[0].mxu0
  %v3362 = vadd.f32 0.0, %v3361
  %v3363 = vpop.f32.mrb[0].mxu0
  %3364 = vmatprep.mubr.bf16.mxu0 0
  %3365 = vmatmul.mubr.bf16.gmra.mrb[0].mxu0 %v3306
  %v3366 = vpop.f32.mrb[0].mxu0
  %v3367 = vadd.f32 0.0, %v3366
  %v3368 = vpop.f32.mrb[0].mxu0
  %v3369 = vpop.f32.mrb[0].mxu0
  %v3370 = vpop.f32.mrb[0].mxu0
  %3371 = vdwg.mxu0
  %v3373 = vlaneseq
  %v3374 = vshrl.u32 %v3373, 7
  %v3375 = vsub.s32 0, %v3374
  %v3376 = vrot.slane %v3153, %v3375
  %v3378 = vadd.f32 %v3376, %v3343
  %v3379 = vadd.f32 %v3376, %v3346
  %v3380 = vadd.f32 %v3376, %v3351
  %v3381 = vadd.f32 %v3376, %v3354
  %v3382 = vadd.f32 %v3376, %v3359
  %v3383 = vadd.f32 %v3376, %v3362
  %v3384 = vadd.f32 %v3376, %v3367
  %s3385 = scalar_lea.vmem %s2, 56
  %v3386 = vld [vmem:[%s3385] sm:$0xff]
  %v3387 = vld [vmem:[%s3385 + $0x8] sm:$0xff]
  %v3388 = vld [vmem:[%s3385 + $0x10] sm:$0xff]
  %v3389 = vld [vmem:[%s3385 + $0x18] sm:$0xff]
  %v3390 = vld [vmem:[%s3385 + $0x20] sm:$0xff]
  %v3391 = vld [vmem:[%s3385 + $0x28] sm:$0xff]
  %v3392 = vld [vmem:[%s3385 + $0x30] sm:$0x11]
  %v3400 = vunpack.c.l.b16 %v3386
  %v3401 = vunpack.c.h.b16 %v3386
  %v3402 = vunpack.c.l.b16 %v3387
  %v3403 = vunpack.c.h.b16 %v3387
  %v3404 = vunpack.c.l.b16 %v3388
  %v3405 = vunpack.c.h.b16 %v3388
  %v3406 = vunpack.c.l.b16 %v3389
  %v3407 = vunpack.c.h.b16 %v3389
  %v3408 = vunpack.c.l.b16 %v3390
  %v3409 = vunpack.c.h.b16 %v3390
  %v3410 = vunpack.c.l.b16 %v3391
  %v3411 = vunpack.c.h.b16 %v3391
  %v3412 = vunpack.c.l.b16 %v3392
  %v3413 = vunpack.c.h.b16 %v3392
  %v3414 = vpack.c.b16 %v3402, %v3400
  %v3415 = vpack.c.b16 %v3403, %v3401
  %v3416 = vpack.c.b16 %v3406, %v3404
  %v3417 = vpack.c.b16 %v3407, %v3405
  %v3418 = vpack.c.b16 %v3410, %v3408
  %v3419 = vpack.c.b16 %v3411, %v3409
  %v3420 = vpack.c.b16 %v3412, %v3412
  %v3421 = vpack.c.b16 %v3413, %v3413
  %v3427 = vsel %vm3194, %v3415, 0
  %v3430 = vsel %vm3194, %v3417, 0
  %v3433 = vsel %vm3194, %v3419, 0
  %v3436 = vsel %vm3194, %v3421, 0
  %3438 = vmatprep.subr.bf16.mxu0 0
  %3439 = vmatpush1.bf16.msra.mxu0 %v3142
  %3440 = vmatprep.subr.bf16.mxu0 0
  %3441 = vmatpush1.bf16.msra.mxu0 %v3143
  %3442 = vmatprep.subr.bf16.mxu0 0
  %3443 = vmatpush1.bf16.msra.mxu0 %v3144
  %3444 = vmatprep.subr.bf16.mxu0 0
  %3445 = vmatpush1.bf16.msra.mxu0 %v3145
  %3446 = vmatprep.subr.bf16.mxu0 0
  %3447 = vmatpush1.bf16.msra.mxu0 %v3146
  %3448 = vmatprep.subr.bf16.mxu0 0
  %3449 = vmatpush1.bf16.msra.mxu0 %v3147
  %3450 = vmatprep.subr.bf16.mxu0 0
  %3451 = vmatpush1.bf16.msra.mxu0 %v3148
  %3452 = vmatprep.subr.bf16.mxu0 0
  %3453 = vmatpush1.bf16.msra.mxu0 %v3149
  %3454 = vmatprep.subr.bf16.mxu0 0
  %3455 = vmatpush1.bf16.msra.mxu0 %v3150
  %3456 = vmatprep.subr.bf16.mxu0 0
  %3457 = vmatpush1.bf16.msra.mxu0 %v3151
  %3458 = vmatprep.subr.bf16.mxu0 0
  %3459 = vmatpush1.bf16.msra.mxu0 %v3209
  %3460 = vmatprep.subr.bf16.mxu0 0
  %3461 = vmatpush1.bf16.msra.mxu0 0
  %3462 = vmatprep.subr.bf16.mxu0 0
  %3463 = vmatpush1.bf16.msra.mxu0 0
  %3464 = vmatprep.subr.bf16.mxu0 0
  %3465 = vmatpush1.bf16.msra.mxu0 0
  %3466 = vmatprep.subr.bf16.mxu0 0
  %3467 = vmatpush1.bf16.msra.mxu0 0
  %3468 = vmatprep.subr.bf16.mxu0 0
  %3469 = vmatpush1.bf16.msra.mxu0 0
  %3470 = vmatprep.mubr.bf16.mxu0 %v3427
  %3471 = vmatmul.mubr.bf16.gmra.mrb[0].mxu0 %v3414
  %v3472 = vpop.f32.mrb[0].mxu0
  %v3473 = vadd.f32 0.0, %v3472
  %v3474 = vpop.f32.mrb[0].mxu0
  %v3475 = vpop.f32.mrb[0].mxu0
  %v3476 = vadd.f32 0.0, %v3475
  %v3477 = vpop.f32.mrb[0].mxu0
  %3478 = vmatprep.mubr.bf16.mxu0 %v3430
  %3479 = vmatmul.mubr.bf16.gmra.mrb[0].mxu0 %v3416
  %v3480 = vpop.f32.mrb[0].mxu0
  %v3481 = vadd.f32 0.0, %v3480
  %v3482 = vpop.f32.mrb[0].mxu0
  %v3483 = vpop.f32.mrb[0].mxu0
  %v3484 = vadd.f32 0.0, %v3483
  %v3485 = vpop.f32.mrb[0].mxu0
  %3486 = vmatprep.mubr.bf16.mxu0 %v3433
  %3487 = vmatmul.mubr.bf16.gmra.mrb[0].mxu0 %v3418
  %v3488 = vpop.f32.mrb[0].mxu0
  %v3489 = vadd.f32 0.0, %v3488
  %v3490 = vpop.f32.mrb[0].mxu0
  %v3491 = vpop.f32.mrb[0].mxu0
  %v3492 = vadd.f32 0.0, %v3491
  %v3493 = vpop.f32.mrb[0].mxu0
  %3494 = vmatprep.mubr.bf16.mxu0 %v3436
  %3495 = vmatmul.mubr.bf16.gmra.mrb[0].mxu0 %v3420
  %v3496 = vpop.f32.mrb[0].mxu0
  %v3497 = vadd.f32 0.0, %v3496
  %v3498 = vpop.f32.mrb[0].mxu0
  %v3499 = vpop.f32.mrb[0].mxu0
  %v3500 = vpop.f32.mrb[0].mxu0
  %3501 = vdwg.mxu0
  %v3502 = vpack.c.bf16 %v3476, %v3473
  %v3503 = vpack.c.bf16 %v3484, %v3481
  %v3504 = vpack.c.bf16 %v3492, %v3489
  %v3505 = vpack.c.bf16 %v3497, %v3497
  %s3506 = scalar_lea.vmem %s6, 16
  %v3507 = vld [vmem:[%s3506] sm:$0xf]
  %v3508 = vld [vmem:[%s3506 + $0x4] sm:$0xf]
  %v3509 = vld [vmem:[%s3506 + $0x8] sm:$0xf]
  %v3510 = vld [vmem:[%s3506 + $0xc] sm:$0xf]
  %v3515 = vunpack.c.l.b16 %v3507
  %v3516 = vunpack.c.l.b16 %v3508
  %v3517 = vunpack.c.l.b16 %v3509
  %v3518 = vunpack.c.l.b16 %v3510
  %v3519 = vpack.c.b16 %v3516, %v3515
  %v3520 = vpack.c.b16 %v3518, %v3517
  %v3524 = vsel %vm3295, %v3502, 0
  %v3527 = vsel %vm3295, %v3503, 0
  %v3530 = vsel %vm3295, %v3504, 0
  %v3533 = vsel %vm3295, %v3505, 0
  %3535 = vmatprep.subr.bf16.mxu0 0
  %3536 = vmatpush1.bf16.msra.mxu0 %v3519
  %3537 = vmatprep.subr.bf16.mxu0 0
  %3538 = vmatpush1.bf16.msra.mxu0 %v3520
  %3539 = vmatprep.subr.bf16.mxu0 0
  %3540 = vmatpush1.bf16.msra.mxu0 0
  %3541 = vmatprep.subr.bf16.mxu0 0
  %3542 = vmatpush1.bf16.msra.mxu0 0
  %3543 = vmatprep.subr.bf16.mxu0 0
  %3544 = vmatpush1.bf16.msra.mxu0 0
  %3545 = vmatprep.subr.bf16.mxu0 0
  %3546 = vmatpush1.bf16.msra.mxu0 0
  %3547 = vmatprep.subr.bf16.mxu0 0
  %3548 = vmatpush1.bf16.msra.mxu0 0
  %3549 = vmatprep.subr.bf16.mxu0 0
  %3550 = vmatpush1.bf16.msra.mxu0 0
  %3551 = vmatprep.subr.bf16.mxu0 0
  %3552 = vmatpush1.bf16.msra.mxu0 0
  %3553 = vmatprep.subr.bf16.mxu0 0
  %3554 = vmatpush1.bf16.msra.mxu0 0
  %3555 = vmatprep.subr.bf16.mxu0 0
  %3556 = vmatpush1.bf16.msra.mxu0 0
  %3557 = vmatprep.subr.bf16.mxu0 0
  %3558 = vmatpush1.bf16.msra.mxu0 0
  %3559 = vmatprep.subr.bf16.mxu0 0
  %3560 = vmatpush1.bf16.msra.mxu0 0
  %3561 = vmatprep.subr.bf16.mxu0 0
  %3562 = vmatpush1.bf16.msra.mxu0 0
  %3563 = vmatprep.subr.bf16.mxu0 0
  %3564 = vmatpush1.bf16.msra.mxu0 0
  %3565 = vmatprep.subr.bf16.mxu0 0
  %3566 = vmatpush1.bf16.msra.mxu0 0
  %3567 = vmatprep.mubr.bf16.mxu0 0
  %3568 = vmatmul.mubr.bf16.gmra.mrb[0].mxu0 %v3524
  %v3569 = vpop.f32.mrb[0].mxu0
  %v3570 = vadd.f32 0.0, %v3569
  %v3571 = vpop.f32.mrb[0].mxu0
  %v3572 = vpop.f32.mrb[0].mxu0
  %v3573 = vadd.f32 0.0, %v3572
  %v3574 = vpop.f32.mrb[0].mxu0
  %3575 = vmatprep.mubr.bf16.mxu0 0
  %3576 = vmatmul.mubr.bf16.gmra.mrb[0].mxu0 %v3527
  %v3577 = vpop.f32.mrb[0].mxu0
  %v3578 = vadd.f32 0.0, %v3577
  %v3579 = vpop.f32.mrb[0].mxu0
  %v3580 = vpop.f32.mrb[0].mxu0
  %v3581 = vadd.f32 0.0, %v3580
  %v3582 = vpop.f32.mrb[0].mxu0
  %3583 = vmatprep.mubr.bf16.mxu0 0
  %3584 = vmatmul.mubr.bf16.gmra.mrb[0].mxu0 %v3530
  %v3585 = vpop.f32.mrb[0].mxu0
  %v3586 = vadd.f32 0.0, %v3585
  %v3587 = vpop.f32.mrb[0].mxu0
  %v3588 = vpop.f32.mrb[0].mxu0
  %v3589 = vadd.f32 0.0, %v3588
  %v3590 = vpop.f32.mrb[0].mxu0
  %3591 = vmatprep.mubr.bf16.mxu0 0
  %3592 = vmatmul.mubr.bf16.gmra.mrb[0].mxu0 %v3533
  %v3593 = vpop.f32.mrb[0].mxu0
  %v3594 = vadd.f32 0.0, %v3593
  %v3595 = vpop.f32.mrb[0].mxu0
  %v3596 = vpop.f32.mrb[0].mxu0
  %v3597 = vpop.f32.mrb[0].mxu0
  %3598 = vdwg.mxu0
  %v3599 = vadd.f32 %v3378, %v3570
  %v3600 = vadd.f32 %v3379, %v3573
  %v3601 = vadd.f32 %v3380, %v3578
  %v3602 = vadd.f32 %v3381, %v3581
  %v3603 = vadd.f32 %v3382, %v3586
  %v3604 = vadd.f32 %v3383, %v3589
  %v3605 = vadd.f32 %v3384, %v3594
  %s3606 = scalar_lea.vmem %s2, 112
  %v3607 = vld [vmem:[%s3606] sm:$0xff]
  %v3608 = vld [vmem:[%s3606 + $0x8] sm:$0xff]
  %v3609 = vld [vmem:[%s3606 + $0x10] sm:$0xff]
  %v3610 = vld [vmem:[%s3606 + $0x18] sm:$0xff]
  %v3611 = vld [vmem:[%s3606 + $0x20] sm:$0xff]
  %v3612 = vld [vmem:[%s3606 + $0x28] sm:$0xff]
  %v3613 = vld [vmem:[%s3606 + $0x30] sm:$0x11]
  %v3621 = vunpack.c.l.b16 %v3607
  %v3622 = vunpack.c.h.b16 %v3607
  %v3623 = vunpack.c.l.b16 %v3608
  %v3624 = vunpack.c.h.b16 %v3608
  %v3625 = vunpack.c.l.b16 %v3609
  %v3626 = vunpack.c.h.b16 %v3609
  %v3627 = vunpack.c.l.b16 %v3610
  %v3628 = vunpack.c.h.b16 %v3610
  %v3629 = vunpack.c.l.b16 %v3611
  %v3630 = vunpack.c.h.b16 %v3611
  %v3631 = vunpack.c.l.b16 %v3612
  %v3632 = vunpack.c.h.b16 %v3612
  %v3633 = vunpack.c.l.b16 %v3613
  %v3634 = vunpack.c.h.b16 %v3613
  %v3635 = vpack.c.b16 %v3623, %v3621
  %v3636 = vpack.c.b16 %v3624, %v3622
  %v3637 = vpack.c.b16 %v3627, %v3625
  %v3638 = vpack.c.b16 %v3628, %v3626
  %v3639 = vpack.c.b16 %v3631, %v3629
  %v3640 = vpack.c.b16 %v3632, %v3630
  %v3641 = vpack.c.b16 %v3633, %v3633
  %v3642 = vpack.c.b16 %v3634, %v3634
  %v3648 = vsel %vm3194, %v3636, 0
  %v3651 = vsel %vm3194, %v3638, 0
  %v3654 = vsel %vm3194, %v3640, 0
  %v3657 = vsel %vm3194, %v3642, 0
  %3659 = vmatprep.subr.bf16.mxu0 0
  %3660 = vmatpush1.bf16.msra.mxu0 %v3142
  %3661 = vmatprep.subr.bf16.mxu0 0
  %3662 = vmatpush1.bf16.msra.mxu0 %v3143
  %3663 = vmatprep.subr.bf16.mxu0 0
  %3664 = vmatpush1.bf16.msra.mxu0 %v3144
  %3665 = vmatprep.subr.bf16.mxu0 0
  %3666 = vmatpush1.bf16.msra.mxu0 %v3145
  %3667 = vmatprep.subr.bf16.mxu0 0
  %3668 = vmatpush1.bf16.msra.mxu0 %v3146
  %3669 = vmatprep.subr.bf16.mxu0 0
  %3670 = vmatpush1.bf16.msra.mxu0 %v3147
  %3671 = vmatprep.subr.bf16.mxu0 0
  %3672 = vmatpush1.bf16.msra.mxu0 %v3148
  %3673 = vmatprep.subr.bf16.mxu0 0
  %3674 = vmatpush1.bf16.msra.mxu0 %v3149
  %3675 = vmatprep.subr.bf16.mxu0 0
  %3676 = vmatpush1.bf16.msra.mxu0 %v3150
  %3677 = vmatprep.subr.bf16.mxu0 0
  %3678 = vmatpush1.bf16.msra.mxu0 %v3151
  %3679 = vmatprep.subr.bf16.mxu0 0
  %3680 = vmatpush1.bf16.msra.mxu0 %v3209
  %3681 = vmatprep.subr.bf16.mxu0 0
  %3682 = vmatpush1.bf16.msra.mxu0 0
  %3683 = vmatprep.subr.bf16.mxu0 0
  %3684 = vmatpush1.bf16.msra.mxu0 0
  %3685 = vmatprep.subr.bf16.mxu0 0
  %3686 = vmatpush1.bf16.msra.mxu0 0
  %3687 = vmatprep.subr.bf16.mxu0 0
  %3688 = vmatpush1.bf16.msra.mxu0 0
  %3689 = vmatprep.subr.bf16.mxu0 0
  %3690 = vmatpush1.bf16.msra.mxu0 0
  %3691 = vmatprep.mubr.bf16.mxu0 %v3648
  %3692 = vmatmul.mubr.bf16.gmra.mrb[0].mxu0 %v3635
  %v3693 = vpop.f32.mrb[0].mxu0
  %v3694 = vadd.f32 0.0, %v3693
  %v3695 = vpop.f32.mrb[0].mxu0
  %v3696 = vpop.f32.mrb[0].mxu0
  %v3697 = vadd.f32 0.0, %v3696
  %v3698 = vpop.f32.mrb[0].mxu0
  %3699 = vmatprep.mubr.bf16.mxu0 %v3651
  %3700 = vmatmul.mubr.bf16.gmra.mrb[0].mxu0 %v3637
  %v3701 = vpop.f32.mrb[0].mxu0
  %v3702 = vadd.f32 0.0, %v3701
  %v3703 = vpop.f32.mrb[0].mxu0
  %v3704 = vpop.f32.mrb[0].mxu0
  %v3705 = vadd.f32 0.0, %v3704
  %v3706 = vpop.f32.mrb[0].mxu0
  %3707 = vmatprep.mubr.bf16.mxu0 %v3654
  %3708 = vmatmul.mubr.bf16.gmra.mrb[0].mxu0 %v3639
  %v3709 = vpop.f32.mrb[0].mxu0
  %v3710 = vadd.f32 0.0, %v3709
  %v3711 = vpop.f32.mrb[0].mxu0
  %v3712 = vpop.f32.mrb[0].mxu0
  %v3713 = vadd.f32 0.0, %v3712
  %v3714 = vpop.f32.mrb[0].mxu0
  %3715 = vmatprep.mubr.bf16.mxu0 %v3657
  %3716 = vmatmul.mubr.bf16.gmra.mrb[0].mxu0 %v3641
  %v3717 = vpop.f32.mrb[0].mxu0
  %v3718 = vadd.f32 0.0, %v3717
  %v3719 = vpop.f32.mrb[0].mxu0
  %v3720 = vpop.f32.mrb[0].mxu0
  %v3721 = vpop.f32.mrb[0].mxu0
  %3722 = vdwg.mxu0
  %v3723 = vpack.c.bf16 %v3697, %v3694
  %v3724 = vpack.c.bf16 %v3705, %v3702
  %v3725 = vpack.c.bf16 %v3713, %v3710
  %v3726 = vpack.c.bf16 %v3718, %v3718
  %s3727 = scalar_lea.vmem %s6, 32
  %v3728 = vld [vmem:[%s3727] sm:$0xf]
  %v3729 = vld [vmem:[%s3727 + $0x4] sm:$0xf]
  %v3730 = vld [vmem:[%s3727 + $0x8] sm:$0xf]
  %v3731 = vld [vmem:[%s3727 + $0xc] sm:$0xf]
  %v3736 = vunpack.c.l.b16 %v3728
  %v3737 = vunpack.c.l.b16 %v3729
  %v3738 = vunpack.c.l.b16 %v3730
  %v3739 = vunpack.c.l.b16 %v3731
  %v3740 = vpack.c.b16 %v3737, %v3736
  %v3741 = vpack.c.b16 %v3739, %v3738
  %v3745 = vsel %vm3295, %v3723, 0
  %v3748 = vsel %vm3295, %v3724, 0
  %v3751 = vsel %vm3295, %v3725, 0
  %v3754 = vsel %vm3295, %v3726, 0
  %3756 = vmatprep.subr.bf16.mxu0 0
  %3757 = vmatpush1.bf16.msra.mxu0 %v3740
  %3758 = vmatprep.subr.bf16.mxu0 0
  %3759 = vmatpush1.bf16.msra.mxu0 %v3741
  %3760 = vmatprep.subr.bf16.mxu0 0
  %3761 = vmatpush1.bf16.msra.mxu0 0
  %3762 = vmatprep.subr.bf16.mxu0 0
  %3763 = vmatpush1.bf16.msra.mxu0 0
  %3764 = vmatprep.subr.bf16.mxu0 0
  %3765 = vmatpush1.bf16.msra.mxu0 0
  %3766 = vmatprep.subr.bf16.mxu0 0
  %3767 = vmatpush1.bf16.msra.mxu0 0
  %3768 = vmatprep.subr.bf16.mxu0 0
  %3769 = vmatpush1.bf16.msra.mxu0 0
  %3770 = vmatprep.subr.bf16.mxu0 0
  %3771 = vmatpush1.bf16.msra.mxu0 0
  %3772 = vmatprep.subr.bf16.mxu0 0
  %3773 = vmatpush1.bf16.msra.mxu0 0
  %3774 = vmatprep.subr.bf16.mxu0 0
  %3775 = vmatpush1.bf16.msra.mxu0 0
  %3776 = vmatprep.subr.bf16.mxu0 0
  %3777 = vmatpush1.bf16.msra.mxu0 0
  %3778 = vmatprep.subr.bf16.mxu0 0
  %3779 = vmatpush1.bf16.msra.mxu0 0
  %3780 = vmatprep.subr.bf16.mxu0 0
  %3781 = vmatpush1.bf16.msra.mxu0 0
  %3782 = vmatprep.subr.bf16.mxu0 0
  %3783 = vmatpush1.bf16.msra.mxu0 0
  %3784 = vmatprep.subr.bf16.mxu0 0
  %3785 = vmatpush1.bf16.msra.mxu0 0
  %3786 = vmatprep.subr.bf16.mxu0 0
  %3787 = vmatpush1.bf16.msra.mxu0 0
  %3788 = vmatprep.mubr.bf16.mxu0 0
  %3789 = vmatmul.mubr.bf16.gmra.mrb[0].mxu0 %v3745
  %v3790 = vpop.f32.mrb[0].mxu0
  %v3791 = vadd.f32 0.0, %v3790
  %v3792 = vpop.f32.mrb[0].mxu0
  %v3793 = vpop.f32.mrb[0].mxu0
  %v3794 = vadd.f32 0.0, %v3793
  %v3795 = vpop.f32.mrb[0].mxu0
  %3796 = vmatprep.mubr.bf16.mxu0 0
  %3797 = vmatmul.mubr.bf16.gmra.mrb[0].mxu0 %v3748
  %v3798 = vpop.f32.mrb[0].mxu0
  %v3799 = vadd.f32 0.0, %v3798
  %v3800 = vpop.f32.mrb[0].mxu0
  %v3801 = vpop.f32.mrb[0].mxu0
  %v3802 = vadd.f32 0.0, %v3801
  %v3803 = vpop.f32.mrb[0].mxu0
  %3804 = vmatprep.mubr.bf16.mxu0 0
  %3805 = vmatmul.mubr.bf16.gmra.mrb[0].mxu0 %v3751
  %v3806 = vpop.f32.mrb[0].mxu0
  %v3807 = vadd.f32 0.0, %v3806
  %v3808 = vpop.f32.mrb[0].mxu0
  %v3809 = vpop.f32.mrb[0].mxu0
  %v3810 = vadd.f32 0.0, %v3809
  %v3811 = vpop.f32.mrb[0].mxu0
  %3812 = vmatprep.mubr.bf16.mxu0 0
  %3813 = vmatmul.mubr.bf16.gmra.mrb[0].mxu0 %v3754
  %v3814 = vpop.f32.mrb[0].mxu0
  %v3815 = vadd.f32 0.0, %v3814
  %v3816 = vpop.f32.mrb[0].mxu0
  %v3817 = vpop.f32.mrb[0].mxu0
  %v3818 = vpop.f32.mrb[0].mxu0
  %3819 = vdwg.mxu0
  %v3820 = vadd.f32 %v3599, %v3791
  %v3821 = vadd.f32 %v3600, %v3794
  %v3822 = vadd.f32 %v3601, %v3799
  %v3823 = vadd.f32 %v3602, %v3802
  %v3824 = vadd.f32 %v3603, %v3807
  %v3825 = vadd.f32 %v3604, %v3810
  %v3826 = vadd.f32 %v3605, %v3815
  %s3827 = scalar_lea.vmem %s2, 168
  %v3828 = vld [vmem:[%s3827] sm:$0xff]
  %v3829 = vld [vmem:[%s3827 + $0x8] sm:$0xff]
  %v3830 = vld [vmem:[%s3827 + $0x10] sm:$0xff]
  %v3831 = vld [vmem:[%s3827 + $0x18] sm:$0xff]
  %v3832 = vld [vmem:[%s3827 + $0x20] sm:$0xff]
  %v3833 = vld [vmem:[%s3827 + $0x28] sm:$0xff]
  %v3834 = vld [vmem:[%s3827 + $0x30] sm:$0x11]
  %v3842 = vunpack.c.l.b16 %v3828
  %v3843 = vunpack.c.h.b16 %v3828
  %v3844 = vunpack.c.l.b16 %v3829
  %v3845 = vunpack.c.h.b16 %v3829
  %v3846 = vunpack.c.l.b16 %v3830
  %v3847 = vunpack.c.h.b16 %v3830
  %v3848 = vunpack.c.l.b16 %v3831
  %v3849 = vunpack.c.h.b16 %v3831
  %v3850 = vunpack.c.l.b16 %v3832
  %v3851 = vunpack.c.h.b16 %v3832
  %v3852 = vunpack.c.l.b16 %v3833
  %v3853 = vunpack.c.h.b16 %v3833
  %v3854 = vunpack.c.l.b16 %v3834
  %v3855 = vunpack.c.h.b16 %v3834
  %v3856 = vpack.c.b16 %v3844, %v3842
  %v3857 = vpack.c.b16 %v3845, %v3843
  %v3858 = vpack.c.b16 %v3848, %v3846
  %v3859 = vpack.c.b16 %v3849, %v3847
  %v3860 = vpack.c.b16 %v3852, %v3850
  %v3861 = vpack.c.b16 %v3853, %v3851
  %v3862 = vpack.c.b16 %v3854, %v3854
  %v3863 = vpack.c.b16 %v3855, %v3855
  %v3869 = vsel %vm3194, %v3857, 0
  %v3872 = vsel %vm3194, %v3859, 0
  %v3875 = vsel %vm3194, %v3861, 0
  %v3878 = vsel %vm3194, %v3863, 0
  %3880 = vmatprep.subr.bf16.mxu0 0
  %3881 = vmatpush1.bf16.msra.mxu0 %v3142
  %3882 = vmatprep.subr.bf16.mxu0 0
  %3883 = vmatpush1.bf16.msra.mxu0 %v3143
  %3884 = vmatprep.subr.bf16.mxu0 0
  %3885 = vmatpush1.bf16.msra.mxu0 %v3144
  %3886 = vmatprep.subr.bf16.mxu0 0
  %3887 = vmatpush1.bf16.msra.mxu0 %v3145
  %3888 = vmatprep.subr.bf16.mxu0 0
  %3889 = vmatpush1.bf16.msra.mxu0 %v3146
  %3890 = vmatprep.subr.bf16.mxu0 0
  %3891 = vmatpush1.bf16.msra.mxu0 %v3147
  %3892 = vmatprep.subr.bf16.mxu0 0
  %3893 = vmatpush1.bf16.msra.mxu0 %v3148
  %3894 = vmatprep.subr.bf16.mxu0 0
  %3895 = vmatpush1.bf16.msra.mxu0 %v3149
  %3896 = vmatprep.subr.bf16.mxu0 0
  %3897 = vmatpush1.bf16.msra.mxu0 %v3150
  %3898 = vmatprep.subr.bf16.mxu0 0
  %3899 = vmatpush1.bf16.msra.mxu0 %v3151
  %3900 = vmatprep.subr.bf16.mxu0 0
  %3901 = vmatpush1.bf16.msra.mxu0 %v3209
  %3902 = vmatprep.subr.bf16.mxu0 0
  %3903 = vmatpush1.bf16.msra.mxu0 0
  %3904 = vmatprep.subr.bf16.mxu0 0
  %3905 = vmatpush1.bf16.msra.mxu0 0
  %3906 = vmatprep.subr.bf16.mxu0 0
  %3907 = vmatpush1.bf16.msra.mxu0 0
  %3908 = vmatprep.subr.bf16.mxu0 0
  %3909 = vmatpush1.bf16.msra.mxu0 0
  %3910 = vmatprep.subr.bf16.mxu0 0
  %3911 = vmatpush1.bf16.msra.mxu0 0
  %3912 = vmatprep.mubr.bf16.mxu0 %v3869
  %3913 = vmatmul.mubr.bf16.gmra.mrb[0].mxu0 %v3856
  %v3914 = vpop.f32.mrb[0].mxu0
  %v3915 = vadd.f32 0.0, %v3914
  %v3916 = vpop.f32.mrb[0].mxu0
  %v3917 = vpop.f32.mrb[0].mxu0
  %v3918 = vadd.f32 0.0, %v3917
  %v3919 = vpop.f32.mrb[0].mxu0
  %3920 = vmatprep.mubr.bf16.mxu0 %v3872
  %3921 = vmatmul.mubr.bf16.gmra.mrb[0].mxu0 %v3858
  %v3922 = vpop.f32.mrb[0].mxu0
  %v3923 = vadd.f32 0.0, %v3922
  %v3924 = vpop.f32.mrb[0].mxu0
  %v3925 = vpop.f32.mrb[0].mxu0
  %v3926 = vadd.f32 0.0, %v3925
  %v3927 = vpop.f32.mrb[0].mxu0
  %3928 = vmatprep.mubr.bf16.mxu0 %v3875
  %3929 = vmatmul.mubr.bf16.gmra.mrb[0].mxu0 %v3860
  %v3930 = vpop.f32.mrb[0].mxu0
  %v3931 = vadd.f32 0.0, %v3930
  %v3932 = vpop.f32.mrb[0].mxu0
  %v3933 = vpop.f32.mrb[0].mxu0
  %v3934 = vadd.f32 0.0, %v3933
  %v3935 = vpop.f32.mrb[0].mxu0
  %3936 = vmatprep.mubr.bf16.mxu0 %v3878
  %3937 = vmatmul.mubr.bf16.gmra.mrb[0].mxu0 %v3862
  %v3938 = vpop.f32.mrb[0].mxu0
  %v3939 = vadd.f32 0.0, %v3938
  %v3940 = vpop.f32.mrb[0].mxu0
  %v3941 = vpop.f32.mrb[0].mxu0
  %v3942 = vpop.f32.mrb[0].mxu0
  %3943 = vdwg.mxu0
  %v3944 = vpack.c.bf16 %v3918, %v3915
  %v3945 = vpack.c.bf16 %v3926, %v3923
  %v3946 = vpack.c.bf16 %v3934, %v3931
  %v3947 = vpack.c.bf16 %v3939, %v3939
  %s3948 = scalar_lea.vmem %s6, 48
  %v3949 = vld [vmem:[%s3948] sm:$0xf]
  %v3950 = vld [vmem:[%s3948 + $0x4] sm:$0xf]
  %v3951 = vld [vmem:[%s3948 + $0x8] sm:$0xf]
  %v3952 = vld [vmem:[%s3948 + $0xc] sm:$0xf]
  %v3957 = vunpack.c.l.b16 %v3949
  %v3958 = vunpack.c.l.b16 %v3950
  %v3959 = vunpack.c.l.b16 %v3951
  %v3960 = vunpack.c.l.b16 %v3952
  %v3961 = vpack.c.b16 %v3958, %v3957
  %v3962 = vpack.c.b16 %v3960, %v3959
  %v3966 = vsel %vm3295, %v3944, 0
  %v3969 = vsel %vm3295, %v3945, 0
  %v3972 = vsel %vm3295, %v3946, 0
  %v3975 = vsel %vm3295, %v3947, 0
  %3977 = vmatprep.subr.bf16.mxu0 0
  %3978 = vmatpush1.bf16.msra.mxu0 %v3961
  %3979 = vmatprep.subr.bf16.mxu0 0
  %3980 = vmatpush1.bf16.msra.mxu0 %v3962
  %3981 = vmatprep.subr.bf16.mxu0 0
  %3982 = vmatpush1.bf16.msra.mxu0 0
  %3983 = vmatprep.subr.bf16.mxu0 0
  %3984 = vmatpush1.bf16.msra.mxu0 0
  %3985 = vmatprep.subr.bf16.mxu0 0
  %3986 = vmatpush1.bf16.msra.mxu0 0
  %3987 = vmatprep.subr.bf16.mxu0 0
  %3988 = vmatpush1.bf16.msra.mxu0 0
  %3989 = vmatprep.subr.bf16.mxu0 0
  %3990 = vmatpush1.bf16.msra.mxu0 0
  %3991 = vmatprep.subr.bf16.mxu0 0
  %3992 = vmatpush1.bf16.msra.mxu0 0
  %3993 = vmatprep.subr.bf16.mxu0 0
  %3994 = vmatpush1.bf16.msra.mxu0 0
  %3995 = vmatprep.subr.bf16.mxu0 0
  %3996 = vmatpush1.bf16.msra.mxu0 0
  %3997 = vmatprep.subr.bf16.mxu0 0
  %3998 = vmatpush1.bf16.msra.mxu0 0
  %3999 = vmatprep.subr.bf16.mxu0 0
  %4000 = vmatpush1.bf16.msra.mxu0 0
  %4001 = vmatprep.subr.bf16.mxu0 0
  %4002 = vmatpush1.bf16.msra.mxu0 0
  %4003 = vmatprep.subr.bf16.mxu0 0
  %4004 = vmatpush1.bf16.msra.mxu0 0
  %4005 = vmatprep.subr.bf16.mxu0 0
  %4006 = vmatpush1.bf16.msra.mxu0 0
  %4007 = vmatprep.subr.bf16.mxu0 0
  %4008 = vmatpush1.bf16.msra.mxu0 0
  %4009 = vmatprep.mubr.bf16.mxu0 0
  %4010 = vmatmul.mubr.bf16.gmra.mrb[0].mxu0 %v3966
  %v4011 = vpop.f32.mrb[0].mxu0
  %v4012 = vadd.f32 0.0, %v4011
  %v4013 = vpop.f32.mrb[0].mxu0
  %v4014 = vpop.f32.mrb[0].mxu0
  %v4015 = vadd.f32 0.0, %v4014
  %v4016 = vpop.f32.mrb[0].mxu0
  %4017 = vmatprep.mubr.bf16.mxu0 0
  %4018 = vmatmul.mubr.bf16.gmra.mrb[0].mxu0 %v3969
  %v4019 = vpop.f32.mrb[0].mxu0
  %v4020 = vadd.f32 0.0, %v4019
  %v4021 = vpop.f32.mrb[0].mxu0
  %v4022 = vpop.f32.mrb[0].mxu0
  %v4023 = vadd.f32 0.0, %v4022
  %v4024 = vpop.f32.mrb[0].mxu0
  %4025 = vmatprep.mubr.bf16.mxu0 0
  %4026 = vmatmul.mubr.bf16.gmra.mrb[0].mxu0 %v3972
  %v4027 = vpop.f32.mrb[0].mxu0
  %v4028 = vadd.f32 0.0, %v4027
  %v4029 = vpop.f32.mrb[0].mxu0
  %v4030 = vpop.f32.mrb[0].mxu0
  %v4031 = vadd.f32 0.0, %v4030
  %v4032 = vpop.f32.mrb[0].mxu0
  %4033 = vmatprep.mubr.bf16.mxu0 0
  %4034 = vmatmul.mubr.bf16.gmra.mrb[0].mxu0 %v3975
  %v4035 = vpop.f32.mrb[0].mxu0
  %v4036 = vadd.f32 0.0, %v4035
  %v4037 = vpop.f32.mrb[0].mxu0
  %v4038 = vpop.f32.mrb[0].mxu0
  %v4039 = vpop.f32.mrb[0].mxu0
  %4040 = vdwg.mxu0
  %v4041 = vadd.f32 %v3820, %v4012
  %v4042 = vadd.f32 %v3821, %v4015
  %v4043 = vadd.f32 %v3822, %v4020
  %v4044 = vadd.f32 %v3823, %v4023
  %v4045 = vadd.f32 %v3824, %v4028
  %v4046 = vadd.f32 %v3825, %v4031
  %v4047 = vadd.f32 %v3826, %v4036
  %v4048 = vmax.f32 %v4041, 0.0
  %v4049 = vmax.f32 %v4042, 0.0
  %v4050 = vmax.f32 %v4043, 0.0
  %v4051 = vmax.f32 %v4044, 0.0
  %v4052 = vmax.f32 %v4045, 0.0
  %v4053 = vmax.f32 %v4046, 0.0
  %v4054 = vmax.f32 %v4047, 0.0
  %v4055 = vpack.c.bf16 %v4049, %v4048
  %v4056 = vpack.c.bf16 %v4051, %v4050
  %v4057 = vpack.c.bf16 %v4053, %v4052
  %v4058 = vpack.c.bf16 %v4054, %v4054
  %v4059 = vld [vmem:[%s11] sm:$0x1]
  %v4060 = vld [vmem:[%s3] sm:$0xf]
  %v4061 = vld [vmem:[%s3 + $0x4] sm:$0xf]
  %v4062 = vld [vmem:[%s3 + $0x8] sm:$0x1]
  %v4066 = vunpack.c.l.b16 %v4060
  %v4067 = vunpack.c.l.b16 %v4061
  %v4068 = vunpack.c.l.b16 %v4062
  %v4069 = vpack.c.b16 %v4067, %v4066
  %v4070 = vpack.c.b16 %v4068, %v4068
  %vm4071 = vcmask 408576
  %v4073 = vsel %vm4071, %v4069, 0
  %v4076 = vsel %vm4071, %v4070, 0
  %v4079 = vsel %vm3207, %v4058, 0
  %4081 = vmatprep.subr.bf16.mxu0 0
  %4082 = vmatpush1.bf16.msra.mxu0 %v4055
  %4083 = vmatprep.subr.bf16.mxu0 0
  %4084 = vmatpush1.bf16.msra.mxu0 %v4056
  %4085 = vmatprep.subr.bf16.mxu0 0
  %4086 = vmatpush1.bf16.msra.mxu0 %v4057
  %4087 = vmatprep.subr.bf16.mxu0 0
  %4088 = vmatpush1.bf16.msra.mxu0 %v4079
  %4089 = vmatprep.subr.bf16.mxu0 0
  %4090 = vmatpush1.bf16.msra.mxu0 0
  %4091 = vmatprep.subr.bf16.mxu0 0
  %4092 = vmatpush1.bf16.msra.mxu0 0
  %4093 = vmatprep.subr.bf16.mxu0 0
  %4094 = vmatpush1.bf16.msra.mxu0 0
  %4095 = vmatprep.subr.bf16.mxu0 0
  %4096 = vmatpush1.bf16.msra.mxu0 0
  %4097 = vmatprep.subr.bf16.mxu0 0
  %4098 = vmatpush1.bf16.msra.mxu0 0
  %4099 = vmatprep.subr.bf16.mxu0 0
  %4100 = vmatpush1.bf16.msra.mxu0 0
  %4101 = vmatprep.subr.bf16.mxu0 0
  %4102 = vmatpush1.bf16.msra.mxu0 0
  %4103 = vmatprep.subr.bf16.mxu0 0
  %4104 = vmatpush1.bf16.msra.mxu0 0
  %4105 = vmatprep.subr.bf16.mxu0 0
  %4106 = vmatpush1.bf16.msra.mxu0 0
  %4107 = vmatprep.subr.bf16.mxu0 0
  %4108 = vmatpush1.bf16.msra.mxu0 0
  %4109 = vmatprep.subr.bf16.mxu0 0
  %4110 = vmatpush1.bf16.msra.mxu0 0
  %4111 = vmatprep.subr.bf16.mxu0 0
  %4112 = vmatpush1.bf16.msra.mxu0 0
  %4113 = vmatprep.mubr.bf16.mxu0 0
  %4114 = vmatmul.mubr.bf16.gmra.mrb[0].mxu0 %v4073
  %v4115 = vpop.f32.mrb[0].mxu0
  %v4116 = vadd.f32 0.0, %v4115
  %v4117 = vpop.f32.mrb[0].mxu0
  %v4118 = vpop.f32.mrb[0].mxu0
  %v4119 = vadd.f32 0.0, %v4118
  %v4120 = vpop.f32.mrb[0].mxu0
  %4121 = vmatprep.mubr.bf16.mxu0 0
  %4122 = vmatmul.mubr.bf16.gmra.mrb[0].mxu0 %v4076
  %v4123 = vpop.f32.mrb[0].mxu0
  %v4124 = vadd.f32 0.0, %v4123
  %v4125 = vpop.f32.mrb[0].mxu0
  %v4126 = vpop.f32.mrb[0].mxu0
  %v4127 = vpop.f32.mrb[0].mxu0
  %4128 = vdwg.mxu0
  %v4129 = vpack.c.bf16 %v4119, %v4116
  %v4130 = vpack.c.bf16 %v4124, %v4124
  %v4131 = vld [vmem:[%s7] sm:$0xf]
  %v4132 = vld [vmem:[%s7 + $0x4] sm:$0xf]
  %v4133 = vld [vmem:[%s7 + $0x8] sm:$0xf]
  %v4134 = vld [vmem:[%s7 + $0xc] sm:$0xf]
  %v4135 = vld [vmem:[%s7 + $0x10] sm:$0xf]
  %v4136 = vld [vmem:[%s7 + $0x14] sm:$0xf]
  %v4137 = vld [vmem:[%s7 + $0x18] sm:$0xf]
  %v4138 = vld [vmem:[%s7 + $0x1c] sm:$0xf]
  %v4147 = vunpack.c.l.b16 %v4131
  %v4148 = vunpack.c.l.b16 %v4132
  %v4149 = vunpack.c.l.b16 %v4133
  %v4150 = vunpack.c.l.b16 %v4134
  %v4151 = vunpack.c.l.b16 %v4135
  %v4152 = vunpack.c.l.b16 %v4136
  %v4153 = vunpack.c.l.b16 %v4137
  %v4154 = vunpack.c.l.b16 %v4138
  %v4155 = vpack.c.b16 %v4148, %v4147
  %v4156 = vpack.c.b16 %v4150, %v4149
  %v4157 = vpack.c.b16 %v4152, %v4151
  %v4158 = vpack.c.b16 %v4154, %v4153
  %vm4163 = vcmask 523264
  %v4165 = vsel %vm4163, %v4129, 0
  %v4168 = vsel %vm4163, %v4130, 0
  %4170 = vmatprep.subr.bf16.mxu0 0
  %4171 = vmatpush1.bf16.msra.mxu0 %v4155
  %4172 = vmatprep.subr.bf16.mxu0 0
  %4173 = vmatpush1.bf16.msra.mxu0 %v4156
  %4174 = vmatprep.subr.bf16.mxu0 0
  %4175 = vmatpush1.bf16.msra.mxu0 %v4157
  %4176 = vmatprep.subr.bf16.mxu0 0
  %4177 = vmatpush1.bf16.msra.mxu0 %v4158
  %4178 = vmatprep.subr.bf16.mxu0 0
  %4179 = vmatpush1.bf16.msra.mxu0 0
  %4180 = vmatprep.subr.bf16.mxu0 0
  %4181 = vmatpush1.bf16.msra.mxu0 0
  %4182 = vmatprep.subr.bf16.mxu0 0
  %4183 = vmatpush1.bf16.msra.mxu0 0
  %4184 = vmatprep.subr.bf16.mxu0 0
  %4185 = vmatpush1.bf16.msra.mxu0 0
  %4186 = vmatprep.subr.bf16.mxu0 0
  %4187 = vmatpush1.bf16.msra.mxu0 0
  %4188 = vmatprep.subr.bf16.mxu0 0
  %4189 = vmatpush1.bf16.msra.mxu0 0
  %4190 = vmatprep.subr.bf16.mxu0 0
  %4191 = vmatpush1.bf16.msra.mxu0 0
  %4192 = vmatprep.subr.bf16.mxu0 0
  %4193 = vmatpush1.bf16.msra.mxu0 0
  %4194 = vmatprep.subr.bf16.mxu0 0
  %4195 = vmatpush1.bf16.msra.mxu0 0
  %4196 = vmatprep.subr.bf16.mxu0 0
  %4197 = vmatpush1.bf16.msra.mxu0 0
  %4198 = vmatprep.subr.bf16.mxu0 0
  %4199 = vmatpush1.bf16.msra.mxu0 0
  %4200 = vmatprep.subr.bf16.mxu0 0
  %4201 = vmatpush1.bf16.msra.mxu0 0
  %4202 = vmatprep.mubr.bf16.mxu0 0
  %4203 = vmatmul.mubr.bf16.gmra.mrb[0].mxu0 %v4165
  %v4204 = vpop.f32.mrb[0].mxu0
  %v4205 = vadd.f32 0.0, %v4204
  %v4206 = vpop.f32.mrb[0].mxu0
  %v4207 = vpop.f32.mrb[0].mxu0
  %v4208 = vadd.f32 0.0, %v4207
  %v4209 = vpop.f32.mrb[0].mxu0
  %4210 = vmatprep.mubr.bf16.mxu0 0
  %4211 = vmatmul.mubr.bf16.gmra.mrb[0].mxu0 %v4168
  %v4212 = vpop.f32.mrb[0].mxu0
  %v4213 = vadd.f32 0.0, %v4212
  %v4214 = vpop.f32.mrb[0].mxu0
  %v4215 = vpop.f32.mrb[0].mxu0
  %v4216 = vpop.f32.mrb[0].mxu0
  %4217 = vdwg.mxu0
  %v4219 = vlaneseq
  %v4220 = vshrl.u32 %v4219, 7
  %v4221 = vsub.s32 0, %v4220
  %v4222 = vrot.slane %v4059, %v4221
  %v4224 = vadd.f32 %v4222, %v4205
  %v4225 = vadd.f32 %v4222, %v4208
  %v4226 = vadd.f32 %v4222, %v4213
  %s4227 = scalar_lea.vmem %s3, 12
  %v4228 = vld [vmem:[%s4227] sm:$0xf]
  %v4229 = vld [vmem:[%s4227 + $0x4] sm:$0xf]
  %v4230 = vld [vmem:[%s4227 + $0x8] sm:$0x1]
  %v4234 = vunpack.c.l.b16 %v4228
  %v4235 = vunpack.c.l.b16 %v4229
  %v4236 = vunpack.c.l.b16 %v4230
  %v4237 = vpack.c.b16 %v4235, %v4234
  %v4238 = vpack.c.b16 %v4236, %v4236
  %v4240 = vsel %vm4071, %v4237, 0
  %v4243 = vsel %vm4071, %v4238, 0
  %4245 = vmatprep.subr.bf16.mxu0 0
  %4246 = vmatpush1.bf16.msra.mxu0 %v4055
  %4247 = vmatprep.subr.bf16.mxu0 0
  %4248 = vmatpush1.bf16.msra.mxu0 %v4056
  %4249 = vmatprep.subr.bf16.mxu0 0
  %4250 = vmatpush1.bf16.msra.mxu0 %v4057
  %4251 = vmatprep.subr.bf16.mxu0 0
  %4252 = vmatpush1.bf16.msra.mxu0 %v4079
  %4253 = vmatprep.subr.bf16.mxu0 0
  %4254 = vmatpush1.bf16.msra.mxu0 0
  %4255 = vmatprep.subr.bf16.mxu0 0
  %4256 = vmatpush1.bf16.msra.mxu0 0
  %4257 = vmatprep.subr.bf16.mxu0 0
  %4258 = vmatpush1.bf16.msra.mxu0 0
  %4259 = vmatprep.subr.bf16.mxu0 0
  %4260 = vmatpush1.bf16.msra.mxu0 0
  %4261 = vmatprep.subr.bf16.mxu0 0
  %4262 = vmatpush1.bf16.msra.mxu0 0
  %4263 = vmatprep.subr.bf16.mxu0 0
  %4264 = vmatpush1.bf16.msra.mxu0 0
  %4265 = vmatprep.subr.bf16.mxu0 0
  %4266 = vmatpush1.bf16.msra.mxu0 0
  %4267 = vmatprep.subr.bf16.mxu0 0
  %4268 = vmatpush1.bf16.msra.mxu0 0
  %4269 = vmatprep.subr.bf16.mxu0 0
  %4270 = vmatpush1.bf16.msra.mxu0 0
  %4271 = vmatprep.subr.bf16.mxu0 0
  %4272 = vmatpush1.bf16.msra.mxu0 0
  %4273 = vmatprep.subr.bf16.mxu0 0
  %4274 = vmatpush1.bf16.msra.mxu0 0
  %4275 = vmatprep.subr.bf16.mxu0 0
  %4276 = vmatpush1.bf16.msra.mxu0 0
  %4277 = vmatprep.mubr.bf16.mxu0 0
  %4278 = vmatmul.mubr.bf16.gmra.mrb[0].mxu0 %v4240
  %v4279 = vpop.f32.mrb[0].mxu0
  %v4280 = vadd.f32 0.0, %v4279
  %v4281 = vpop.f32.mrb[0].mxu0
  %v4282 = vpop.f32.mrb[0].mxu0
  %v4283 = vadd.f32 0.0, %v4282
  %v4284 = vpop.f32.mrb[0].mxu0
  %4285 = vmatprep.mubr.bf16.mxu0 0
  %4286 = vmatmul.mubr.bf16.gmra.mrb[0].mxu0 %v4243
  %v4287 = vpop.f32.mrb[0].mxu0
  %v4288 = vadd.f32 0.0, %v4287
  %v4289 = vpop.f32.mrb[0].mxu0
  %v4290 = vpop.f32.mrb[0].mxu0
  %v4291 = vpop.f32.mrb[0].mxu0
  %4292 = vdwg.mxu0
  %v4293 = vpack.c.bf16 %v4283, %v4280
  %v4294 = vpack.c.bf16 %v4288, %v4288
  %s4295 = scalar_lea.vmem %s7, 32
  %v4296 = vld [vmem:[%s4295] sm:$0xf]
  %v4297 = vld [vmem:[%s4295 + $0x4] sm:$0xf]
  %v4298 = vld [vmem:[%s4295 + $0x8] sm:$0xf]
  %v4299 = vld [vmem:[%s4295 + $0xc] sm:$0xf]
  %v4300 = vld [vmem:[%s4295 + $0x10] sm:$0xf]
  %v4301 = vld [vmem:[%s4295 + $0x14] sm:$0xf]
  %v4302 = vld [vmem:[%s4295 + $0x18] sm:$0xf]
  %v4303 = vld [vmem:[%s4295 + $0x1c] sm:$0xf]
  %v4312 = vunpack.c.l.b16 %v4296
  %v4313 = vunpack.c.l.b16 %v4297
  %v4314 = vunpack.c.l.b16 %v4298
  %v4315 = vunpack.c.l.b16 %v4299
  %v4316 = vunpack.c.l.b16 %v4300
  %v4317 = vunpack.c.l.b16 %v4301
  %v4318 = vunpack.c.l.b16 %v4302
  %v4319 = vunpack.c.l.b16 %v4303
  %v4320 = vpack.c.b16 %v4313, %v4312
  %v4321 = vpack.c.b16 %v4315, %v4314
  %v4322 = vpack.c.b16 %v4317, %v4316
  %v4323 = vpack.c.b16 %v4319, %v4318
  %v4329 = vsel %vm4163, %v4293, 0
  %v4332 = vsel %vm4163, %v4294, 0
  %4334 = vmatprep.subr.bf16.mxu0 0
  %4335 = vmatpush1.bf16.msra.mxu0 %v4320
  %4336 = vmatprep.subr.bf16.mxu0 0
  %4337 = vmatpush1.bf16.msra.mxu0 %v4321
  %4338 = vmatprep.subr.bf16.mxu0 0
  %4339 = vmatpush1.bf16.msra.mxu0 %v4322
  %4340 = vmatprep.subr.bf16.mxu0 0
  %4341 = vmatpush1.bf16.msra.mxu0 %v4323
  %4342 = vmatprep.subr.bf16.mxu0 0
  %4343 = vmatpush1.bf16.msra.mxu0 0
  %4344 = vmatprep.subr.bf16.mxu0 0
  %4345 = vmatpush1.bf16.msra.mxu0 0
  %4346 = vmatprep.subr.bf16.mxu0 0
  %4347 = vmatpush1.bf16.msra.mxu0 0
  %4348 = vmatprep.subr.bf16.mxu0 0
  %4349 = vmatpush1.bf16.msra.mxu0 0
  %4350 = vmatprep.subr.bf16.mxu0 0
  %4351 = vmatpush1.bf16.msra.mxu0 0
  %4352 = vmatprep.subr.bf16.mxu0 0
  %4353 = vmatpush1.bf16.msra.mxu0 0
  %4354 = vmatprep.subr.bf16.mxu0 0
  %4355 = vmatpush1.bf16.msra.mxu0 0
  %4356 = vmatprep.subr.bf16.mxu0 0
  %4357 = vmatpush1.bf16.msra.mxu0 0
  %4358 = vmatprep.subr.bf16.mxu0 0
  %4359 = vmatpush1.bf16.msra.mxu0 0
  %4360 = vmatprep.subr.bf16.mxu0 0
  %4361 = vmatpush1.bf16.msra.mxu0 0
  %4362 = vmatprep.subr.bf16.mxu0 0
  %4363 = vmatpush1.bf16.msra.mxu0 0
  %4364 = vmatprep.subr.bf16.mxu0 0
  %4365 = vmatpush1.bf16.msra.mxu0 0
  %4366 = vmatprep.mubr.bf16.mxu0 0
  %4367 = vmatmul.mubr.bf16.gmra.mrb[0].mxu0 %v4329
  %v4368 = vpop.f32.mrb[0].mxu0
  %v4369 = vadd.f32 0.0, %v4368
  %v4370 = vpop.f32.mrb[0].mxu0
  %v4371 = vpop.f32.mrb[0].mxu0
  %v4372 = vadd.f32 0.0, %v4371
  %v4373 = vpop.f32.mrb[0].mxu0
  %4374 = vmatprep.mubr.bf16.mxu0 0
  %4375 = vmatmul.mubr.bf16.gmra.mrb[0].mxu0 %v4332
  %v4376 = vpop.f32.mrb[0].mxu0
  %v4377 = vadd.f32 0.0, %v4376
  %v4378 = vpop.f32.mrb[0].mxu0
  %v4379 = vpop.f32.mrb[0].mxu0
  %v4380 = vpop.f32.mrb[0].mxu0
  %4381 = vdwg.mxu0
  %v4382 = vadd.f32 %v4224, %v4369
  %v4383 = vadd.f32 %v4225, %v4372
  %v4384 = vadd.f32 %v4226, %v4377
  %s4385 = scalar_lea.vmem %s3, 24
  %v4386 = vld [vmem:[%s4385] sm:$0xf]
  %v4387 = vld [vmem:[%s4385 + $0x4] sm:$0xf]
  %v4388 = vld [vmem:[%s4385 + $0x8] sm:$0x1]
  %v4392 = vunpack.c.l.b16 %v4386
  %v4393 = vunpack.c.l.b16 %v4387
  %v4394 = vunpack.c.l.b16 %v4388
  %v4395 = vpack.c.b16 %v4393, %v4392
  %v4396 = vpack.c.b16 %v4394, %v4394
  %v4398 = vsel %vm4071, %v4395, 0
  %v4401 = vsel %vm4071, %v4396, 0
  %4403 = vmatprep.subr.bf16.mxu0 0
  %4404 = vmatpush1.bf16.msra.mxu0 %v4055
  %4405 = vmatprep.subr.bf16.mxu0 0
  %4406 = vmatpush1.bf16.msra.mxu0 %v4056
  %4407 = vmatprep.subr.bf16.mxu0 0
  %4408 = vmatpush1.bf16.msra.mxu0 %v4057
  %4409 = vmatprep.subr.bf16.mxu0 0
  %4410 = vmatpush1.bf16.msra.mxu0 %v4079
  %4411 = vmatprep.subr.bf16.mxu0 0
  %4412 = vmatpush1.bf16.msra.mxu0 0
  %4413 = vmatprep.subr.bf16.mxu0 0
  %4414 = vmatpush1.bf16.msra.mxu0 0
  %4415 = vmatprep.subr.bf16.mxu0 0
  %4416 = vmatpush1.bf16.msra.mxu0 0
  %4417 = vmatprep.subr.bf16.mxu0 0
  %4418 = vmatpush1.bf16.msra.mxu0 0
  %4419 = vmatprep.subr.bf16.mxu0 0
  %4420 = vmatpush1.bf16.msra.mxu0 0
  %4421 = vmatprep.subr.bf16.mxu0 0
  %4422 = vmatpush1.bf16.msra.mxu0 0
  %4423 = vmatprep.subr.bf16.mxu0 0
  %4424 = vmatpush1.bf16.msra.mxu0 0
  %4425 = vmatprep.subr.bf16.mxu0 0
  %4426 = vmatpush1.bf16.msra.mxu0 0
  %4427 = vmatprep.subr.bf16.mxu0 0
  %4428 = vmatpush1.bf16.msra.mxu0 0
  %4429 = vmatprep.subr.bf16.mxu0 0
  %4430 = vmatpush1.bf16.msra.mxu0 0
  %4431 = vmatprep.subr.bf16.mxu0 0
  %4432 = vmatpush1.bf16.msra.mxu0 0
  %4433 = vmatprep.subr.bf16.mxu0 0
  %4434 = vmatpush1.bf16.msra.mxu0 0
  %4435 = vmatprep.mubr.bf16.mxu0 0
  %4436 = vmatmul.mubr.bf16.gmra.mrb[0].mxu0 %v4398
  %v4437 = vpop.f32.mrb[0].mxu0
  %v4438 = vadd.f32 0.0, %v4437
  %v4439 = vpop.f32.mrb[0].mxu0
  %v4440 = vpop.f32.mrb[0].mxu0
  %v4441 = vadd.f32 0.0, %v4440
  %v4442 = vpop.f32.mrb[0].mxu0
  %4443 = vmatprep.mubr.bf16.mxu0 0
  %4444 = vmatmul.mubr.bf16.gmra.mrb[0].mxu0 %v4401
  %v4445 = vpop.f32.mrb[0].mxu0
  %v4446 = vadd.f32 0.0, %v4445
  %v4447 = vpop.f32.mrb[0].mxu0
  %v4448 = vpop.f32.mrb[0].mxu0
  %v4449 = vpop.f32.mrb[0].mxu0
  %4450 = vdwg.mxu0
  %v4451 = vpack.c.bf16 %v4441, %v4438
  %v4452 = vpack.c.bf16 %v4446, %v4446
  %s4453 = scalar_lea.vmem %s7, 64
  %v4454 = vld [vmem:[%s4453] sm:$0xf]
  %v4455 = vld [vmem:[%s4453 + $0x4] sm:$0xf]
  %v4456 = vld [vmem:[%s4453 + $0x8] sm:$0xf]
  %v4457 = vld [vmem:[%s4453 + $0xc] sm:$0xf]
  %v4458 = vld [vmem:[%s4453 + $0x10] sm:$0xf]
  %v4459 = vld [vmem:[%s4453 + $0x14] sm:$0xf]
  %v4460 = vld [vmem:[%s4453 + $0x18] sm:$0xf]
  %v4461 = vld [vmem:[%s4453 + $0x1c] sm:$0xf]
  %v4470 = vunpack.c.l.b16 %v4454
  %v4471 = vunpack.c.l.b16 %v4455
  %v4472 = vunpack.c.l.b16 %v4456
  %v4473 = vunpack.c.l.b16 %v4457
  %v4474 = vunpack.c.l.b16 %v4458
  %v4475 = vunpack.c.l.b16 %v4459
  %v4476 = vunpack.c.l.b16 %v4460
  %v4477 = vunpack.c.l.b16 %v4461
  %v4478 = vpack.c.b16 %v4471, %v4470
  %v4479 = vpack.c.b16 %v4473, %v4472
  %v4480 = vpack.c.b16 %v4475, %v4474
  %v4481 = vpack.c.b16 %v4477, %v4476
  %v4487 = vsel %vm4163, %v4451, 0
  %v4490 = vsel %vm4163, %v4452, 0
  %4492 = vmatprep.subr.bf16.mxu0 0
  %4493 = vmatpush1.bf16.msra.mxu0 %v4478
  %4494 = vmatprep.subr.bf16.mxu0 0
  %4495 = vmatpush1.bf16.msra.mxu0 %v4479
  %4496 = vmatprep.subr.bf16.mxu0 0
  %4497 = vmatpush1.bf16.msra.mxu0 %v4480
  %4498 = vmatprep.subr.bf16.mxu0 0
  %4499 = vmatpush1.bf16.msra.mxu0 %v4481
  %4500 = vmatprep.subr.bf16.mxu0 0
  %4501 = vmatpush1.bf16.msra.mxu0 0
  %4502 = vmatprep.subr.bf16.mxu0 0
  %4503 = vmatpush1.bf16.msra.mxu0 0
  %4504 = vmatprep.subr.bf16.mxu0 0
  %4505 = vmatpush1.bf16.msra.mxu0 0
  %4506 = vmatprep.subr.bf16.mxu0 0
  %4507 = vmatpush1.bf16.msra.mxu0 0
  %4508 = vmatprep.subr.bf16.mxu0 0
  %4509 = vmatpush1.bf16.msra.mxu0 0
  %4510 = vmatprep.subr.bf16.mxu0 0
  %4511 = vmatpush1.bf16.msra.mxu0 0
  %4512 = vmatprep.subr.bf16.mxu0 0
  %4513 = vmatpush1.bf16.msra.mxu0 0
  %4514 = vmatprep.subr.bf16.mxu0 0
  %4515 = vmatpush1.bf16.msra.mxu0 0
  %4516 = vmatprep.subr.bf16.mxu0 0
  %4517 = vmatpush1.bf16.msra.mxu0 0
  %4518 = vmatprep.subr.bf16.mxu0 0
  %4519 = vmatpush1.bf16.msra.mxu0 0
  %4520 = vmatprep.subr.bf16.mxu0 0
  %4521 = vmatpush1.bf16.msra.mxu0 0
  %4522 = vmatprep.subr.bf16.mxu0 0
  %4523 = vmatpush1.bf16.msra.mxu0 0
  %4524 = vmatprep.mubr.bf16.mxu0 0
  %4525 = vmatmul.mubr.bf16.gmra.mrb[0].mxu0 %v4487
  %v4526 = vpop.f32.mrb[0].mxu0
  %v4527 = vadd.f32 0.0, %v4526
  %v4528 = vpop.f32.mrb[0].mxu0
  %v4529 = vpop.f32.mrb[0].mxu0
  %v4530 = vadd.f32 0.0, %v4529
  %v4531 = vpop.f32.mrb[0].mxu0
  %4532 = vmatprep.mubr.bf16.mxu0 0
  %4533 = vmatmul.mubr.bf16.gmra.mrb[0].mxu0 %v4490
  %v4534 = vpop.f32.mrb[0].mxu0
  %v4535 = vadd.f32 0.0, %v4534
  %v4536 = vpop.f32.mrb[0].mxu0
  %v4537 = vpop.f32.mrb[0].mxu0
  %v4538 = vpop.f32.mrb[0].mxu0
  %4539 = vdwg.mxu0
  %v4540 = vadd.f32 %v4382, %v4527
  %v4541 = vadd.f32 %v4383, %v4530
  %v4542 = vadd.f32 %v4384, %v4535
  %s4543 = scalar_lea.vmem %s3, 36
  %v4544 = vld [vmem:[%s4543] sm:$0xf]
  %v4545 = vld [vmem:[%s4543 + $0x4] sm:$0xf]
  %v4546 = vld [vmem:[%s4543 + $0x8] sm:$0x1]
  %v4550 = vunpack.c.l.b16 %v4544
  %v4551 = vunpack.c.l.b16 %v4545
  %v4552 = vunpack.c.l.b16 %v4546
  %v4553 = vpack.c.b16 %v4551, %v4550
  %v4554 = vpack.c.b16 %v4552, %v4552
  %v4556 = vsel %vm4071, %v4553, 0
  %v4559 = vsel %vm4071, %v4554, 0
  %4561 = vmatprep.subr.bf16.mxu0 0
  %4562 = vmatpush1.bf16.msra.mxu0 %v4055
  %4563 = vmatprep.subr.bf16.mxu0 0
  %4564 = vmatpush1.bf16.msra.mxu0 %v4056
  %4565 = vmatprep.subr.bf16.mxu0 0
  %4566 = vmatpush1.bf16.msra.mxu0 %v4057
  %4567 = vmatprep.subr.bf16.mxu0 0
  %4568 = vmatpush1.bf16.msra.mxu0 %v4079
  %4569 = vmatprep.subr.bf16.mxu0 0
  %4570 = vmatpush1.bf16.msra.mxu0 0
  %4571 = vmatprep.subr.bf16.mxu0 0
  %4572 = vmatpush1.bf16.msra.mxu0 0
  %4573 = vmatprep.subr.bf16.mxu0 0
  %4574 = vmatpush1.bf16.msra.mxu0 0
  %4575 = vmatprep.subr.bf16.mxu0 0
  %4576 = vmatpush1.bf16.msra.mxu0 0
  %4577 = vmatprep.subr.bf16.mxu0 0
  %4578 = vmatpush1.bf16.msra.mxu0 0
  %4579 = vmatprep.subr.bf16.mxu0 0
  %4580 = vmatpush1.bf16.msra.mxu0 0
  %4581 = vmatprep.subr.bf16.mxu0 0
  %4582 = vmatpush1.bf16.msra.mxu0 0
  %4583 = vmatprep.subr.bf16.mxu0 0
  %4584 = vmatpush1.bf16.msra.mxu0 0
  %4585 = vmatprep.subr.bf16.mxu0 0
  %4586 = vmatpush1.bf16.msra.mxu0 0
  %4587 = vmatprep.subr.bf16.mxu0 0
  %4588 = vmatpush1.bf16.msra.mxu0 0
  %4589 = vmatprep.subr.bf16.mxu0 0
  %4590 = vmatpush1.bf16.msra.mxu0 0
  %4591 = vmatprep.subr.bf16.mxu0 0
  %4592 = vmatpush1.bf16.msra.mxu0 0
  %4593 = vmatprep.mubr.bf16.mxu0 0
  %4594 = vmatmul.mubr.bf16.gmra.mrb[0].mxu0 %v4556
  %v4595 = vpop.f32.mrb[0].mxu0
  %v4596 = vadd.f32 0.0, %v4595
  %v4597 = vpop.f32.mrb[0].mxu0
  %v4598 = vpop.f32.mrb[0].mxu0
  %v4599 = vadd.f32 0.0, %v4598
  %v4600 = vpop.f32.mrb[0].mxu0
  %4601 = vmatprep.mubr.bf16.mxu0 0
  %4602 = vmatmul.mubr.bf16.gmra.mrb[0].mxu0 %v4559
  %v4603 = vpop.f32.mrb[0].mxu0
  %v4604 = vadd.f32 0.0, %v4603
  %v4605 = vpop.f32.mrb[0].mxu0
  %v4606 = vpop.f32.mrb[0].mxu0
  %v4607 = vpop.f32.mrb[0].mxu0
  %4608 = vdwg.mxu0
  %v4609 = vpack.c.bf16 %v4599, %v4596
  %v4610 = vpack.c.bf16 %v4604, %v4604
  %s4611 = scalar_lea.vmem %s7, 96
  %v4612 = vld [vmem:[%s4611] sm:$0xf]
  %v4613 = vld [vmem:[%s4611 + $0x4] sm:$0xf]
  %v4614 = vld [vmem:[%s4611 + $0x8] sm:$0xf]
  %v4615 = vld [vmem:[%s4611 + $0xc] sm:$0xf]
  %v4616 = vld [vmem:[%s4611 + $0x10] sm:$0xf]
  %v4617 = vld [vmem:[%s4611 + $0x14] sm:$0xf]
  %v4618 = vld [vmem:[%s4611 + $0x18] sm:$0xf]
  %v4619 = vld [vmem:[%s4611 + $0x1c] sm:$0xf]
  %v4628 = vunpack.c.l.b16 %v4612
  %v4629 = vunpack.c.l.b16 %v4613
  %v4630 = vunpack.c.l.b16 %v4614
  %v4631 = vunpack.c.l.b16 %v4615
  %v4632 = vunpack.c.l.b16 %v4616
  %v4633 = vunpack.c.l.b16 %v4617
  %v4634 = vunpack.c.l.b16 %v4618
  %v4635 = vunpack.c.l.b16 %v4619
  %v4636 = vpack.c.b16 %v4629, %v4628
  %v4637 = vpack.c.b16 %v4631, %v4630
  %v4638 = vpack.c.b16 %v4633, %v4632
  %v4639 = vpack.c.b16 %v4635, %v4634
  %v4645 = vsel %vm4163, %v4609, 0
  %v4648 = vsel %vm4163, %v4610, 0
  %4650 = vmatprep.subr.bf16.mxu0 0
  %4651 = vmatpush1.bf16.msra.mxu0 %v4636
  %4652 = vmatprep.subr.bf16.mxu0 0
  %4653 = vmatpush1.bf16.msra.mxu0 %v4637
  %4654 = vmatprep.subr.bf16.mxu0 0
  %4655 = vmatpush1.bf16.msra.mxu0 %v4638
  %4656 = vmatprep.subr.bf16.mxu0 0
  %4657 = vmatpush1.bf16.msra.mxu0 %v4639
  %4658 = vmatprep.subr.bf16.mxu0 0
  %4659 = vmatpush1.bf16.msra.mxu0 0
  %4660 = vmatprep.subr.bf16.mxu0 0
  %4661 = vmatpush1.bf16.msra.mxu0 0
  %4662 = vmatprep.subr.bf16.mxu0 0
  %4663 = vmatpush1.bf16.msra.mxu0 0
  %4664 = vmatprep.subr.bf16.mxu0 0
  %4665 = vmatpush1.bf16.msra.mxu0 0
  %4666 = vmatprep.subr.bf16.mxu0 0
  %4667 = vmatpush1.bf16.msra.mxu0 0
  %4668 = vmatprep.subr.bf16.mxu0 0
  %4669 = vmatpush1.bf16.msra.mxu0 0
  %4670 = vmatprep.subr.bf16.mxu0 0
  %4671 = vmatpush1.bf16.msra.mxu0 0
  %4672 = vmatprep.subr.bf16.mxu0 0
  %4673 = vmatpush1.bf16.msra.mxu0 0
  %4674 = vmatprep.subr.bf16.mxu0 0
  %4675 = vmatpush1.bf16.msra.mxu0 0
  %4676 = vmatprep.subr.bf16.mxu0 0
  %4677 = vmatpush1.bf16.msra.mxu0 0
  %4678 = vmatprep.subr.bf16.mxu0 0
  %4679 = vmatpush1.bf16.msra.mxu0 0
  %4680 = vmatprep.subr.bf16.mxu0 0
  %4681 = vmatpush1.bf16.msra.mxu0 0
  %4682 = vmatprep.mubr.bf16.mxu0 0
  %4683 = vmatmul.mubr.bf16.gmra.mrb[0].mxu0 %v4645
  %v4684 = vpop.f32.mrb[0].mxu0
  %v4685 = vadd.f32 0.0, %v4684
  %v4686 = vpop.f32.mrb[0].mxu0
  %v4687 = vpop.f32.mrb[0].mxu0
  %v4688 = vadd.f32 0.0, %v4687
  %v4689 = vpop.f32.mrb[0].mxu0
  %4690 = vmatprep.mubr.bf16.mxu0 0
  %4691 = vmatmul.mubr.bf16.gmra.mrb[0].mxu0 %v4648
  %v4692 = vpop.f32.mrb[0].mxu0
  %v4693 = vadd.f32 0.0, %v4692
  %v4694 = vpop.f32.mrb[0].mxu0
  %v4695 = vpop.f32.mrb[0].mxu0
  %v4696 = vpop.f32.mrb[0].mxu0
  %4697 = vdwg.mxu0
  %v4698 = vadd.f32 %v4540, %v4685
  %v4699 = vadd.f32 %v4541, %v4688
  %v4700 = vadd.f32 %v4542, %v4693
  %v4701 = vmax.f32 %v4698, 0.0
  %v4702 = vmax.f32 %v4699, 0.0
  %v4703 = vmax.f32 %v4700, 0.0
  %v4704 = vpack.c.bf16 %v4702, %v4701
  %v4705 = vpack.c.bf16 %v4703, %v4703
  %v4706 = vld [vmem:[%s12] sm:$0x1]
  %v4707 = vld [vmem:[%s4] sm:$0xf]
  %vm4708 = vcmask 146432
  %v4710 = vsel %vm4708, %v4707, 0
  %v4713 = vsel %vm3207, %v4705, 0
  %4715 = vmatprep.subr.bf16.mxu0 0
  %4716 = vmatpush1.bf16.msra.mxu0 %v4704
  %4717 = vmatprep.subr.bf16.mxu0 0
  %4718 = vmatpush1.bf16.msra.mxu0 %v4713
  %4719 = vmatprep.subr.bf16.mxu0 0
  %4720 = vmatpush1.bf16.msra.mxu0 0
  %4721 = vmatprep.subr.bf16.mxu0 0
  %4722 = vmatpush1.bf16.msra.mxu0 0
  %4723 = vmatprep.subr.bf16.mxu0 0
  %4724 = vmatpush1.bf16.msra.mxu0 0
  %4725 = vmatprep.subr.bf16.mxu0 0
  %4726 = vmatpush1.bf16.msra.mxu0 0
  %4727 = vmatprep.subr.bf16.mxu0 0
  %4728 = vmatpush1.bf16.msra.mxu0 0
  %4729 = vmatprep.subr.bf16.mxu0 0
  %4730 = vmatpush1.bf16.msra.mxu0 0
  %4731 = vmatprep.subr.bf16.mxu0 0
  %4732 = vmatpush1.bf16.msra.mxu0 0
  %4733 = vmatprep.subr.bf16.mxu0 0
  %4734 = vmatpush1.bf16.msra.mxu0 0
  %4735 = vmatprep.subr.bf16.mxu0 0
  %4736 = vmatpush1.bf16.msra.mxu0 0
  %4737 = vmatprep.subr.bf16.mxu0 0
  %4738 = vmatpush1.bf16.msra.mxu0 0
  %4739 = vmatprep.subr.bf16.mxu0 0
  %4740 = vmatpush1.bf16.msra.mxu0 0
  %4741 = vmatprep.subr.bf16.mxu0 0
  %4742 = vmatpush1.bf16.msra.mxu0 0
  %4743 = vmatprep.subr.bf16.mxu0 0
  %4744 = vmatpush1.bf16.msra.mxu0 0
  %4745 = vmatprep.subr.bf16.mxu0 0
  %4746 = vmatpush1.bf16.msra.mxu0 0
  %4747 = vmatprep.mubr.bf16.mxu0 0
  %4748 = vmatmul.mubr.bf16.gmra.mrb[0].mxu0 %v4710
  %v4749 = vpop.f32.mrb[0].mxu0
  %v4750 = vadd.f32 0.0, %v4749
  %v4751 = vpop.f32.mrb[0].mxu0
  %v4752 = vpop.f32.mrb[0].mxu0
  %v4753 = vpop.f32.mrb[0].mxu0
  %4754 = vdwg.mxu0
  %v4755 = vpack.c.bf16 %v4750, %v4750
  %v4756 = vld [vmem:[%s8] sm:$0xf]
  %v4757 = vld [vmem:[%s8 + $0x4] sm:$0xf]
  %v4758 = vld [vmem:[%s8 + $0x8] sm:$0xf]
  %v4759 = vld [vmem:[%s8 + $0xc] sm:$0xf]
  %v4760 = vld [vmem:[%s8 + $0x10] sm:$0xf]
  %v4761 = vld [vmem:[%s8 + $0x14] sm:$0xf]
  %v4762 = vld [vmem:[%s8 + $0x18] sm:$0xf]
  %v4763 = vld [vmem:[%s8 + $0x1c] sm:$0xf]
  %v4772 = vunpack.c.l.b16 %v4756
  %v4773 = vunpack.c.l.b16 %v4757
  %v4774 = vunpack.c.l.b16 %v4758
  %v4775 = vunpack.c.l.b16 %v4759
  %v4776 = vunpack.c.l.b16 %v4760
  %v4777 = vunpack.c.l.b16 %v4761
  %v4778 = vunpack.c.l.b16 %v4762
  %v4779 = vunpack.c.l.b16 %v4763
  %v4780 = vpack.c.b16 %v4773, %v4772
  %v4781 = vpack.c.b16 %v4775, %v4774
  %v4782 = vpack.c.b16 %v4777, %v4776
  %v4783 = vpack.c.b16 %v4779, %v4778
  %v4789 = vsel %vm4163, %v4755, 0
  %4791 = vmatprep.subr.bf16.mxu0 0
  %4792 = vmatpush1.bf16.msra.mxu0 %v4780
  %4793 = vmatprep.subr.bf16.mxu0 0
  %4794 = vmatpush1.bf16.msra.mxu0 %v4781
  %4795 = vmatprep.subr.bf16.mxu0 0
  %4796 = vmatpush1.bf16.msra.mxu0 %v4782
  %4797 = vmatprep.subr.bf16.mxu0 0
  %4798 = vmatpush1.bf16.msra.mxu0 %v4783
  %4799 = vmatprep.subr.bf16.mxu0 0
  %4800 = vmatpush1.bf16.msra.mxu0 0
  %4801 = vmatprep.subr.bf16.mxu0 0
  %4802 = vmatpush1.bf16.msra.mxu0 0
  %4803 = vmatprep.subr.bf16.mxu0 0
  %4804 = vmatpush1.bf16.msra.mxu0 0
  %4805 = vmatprep.subr.bf16.mxu0 0
  %4806 = vmatpush1.bf16.msra.mxu0 0
  %4807 = vmatprep.subr.bf16.mxu0 0
  %4808 = vmatpush1.bf16.msra.mxu0 0
  %4809 = vmatprep.subr.bf16.mxu0 0
  %4810 = vmatpush1.bf16.msra.mxu0 0
  %4811 = vmatprep.subr.bf16.mxu0 0
  %4812 = vmatpush1.bf16.msra.mxu0 0
  %4813 = vmatprep.subr.bf16.mxu0 0
  %4814 = vmatpush1.bf16.msra.mxu0 0
  %4815 = vmatprep.subr.bf16.mxu0 0
  %4816 = vmatpush1.bf16.msra.mxu0 0
  %4817 = vmatprep.subr.bf16.mxu0 0
  %4818 = vmatpush1.bf16.msra.mxu0 0
  %4819 = vmatprep.subr.bf16.mxu0 0
  %4820 = vmatpush1.bf16.msra.mxu0 0
  %4821 = vmatprep.subr.bf16.mxu0 0
  %4822 = vmatpush1.bf16.msra.mxu0 0
  %4823 = vmatprep.mubr.bf16.mxu0 0
  %4824 = vmatmul.mubr.bf16.gmra.mrb[0].mxu0 %v4789
  %v4825 = vpop.f32.mrb[0].mxu0
  %v4826 = vadd.f32 0.0, %v4825
  %v4827 = vpop.f32.mrb[0].mxu0
  %v4828 = vpop.f32.mrb[0].mxu0
  %v4829 = vpop.f32.mrb[0].mxu0
  %4830 = vdwg.mxu0
  %v4832 = vlaneseq
  %v4833 = vshrl.u32 %v4832, 7
  %v4834 = vsub.s32 0, %v4833
  %v4835 = vrot.slane %v4706, %v4834
  %v4837 = vadd.f32 %v4835, %v4826
  %s4838 = scalar_lea.vmem %s4, 4
  %v4839 = vld [vmem:[%s4838] sm:$0xf]
  %v4841 = vsel %vm4708, %v4839, 0
  %4843 = vmatprep.subr.bf16.mxu0 0
  %4844 = vmatpush1.bf16.msra.mxu0 %v4704
  %4845 = vmatprep.subr.bf16.mxu0 0
  %4846 = vmatpush1.bf16.msra.mxu0 %v4713
  %4847 = vmatprep.subr.bf16.mxu0 0
  %4848 = vmatpush1.bf16.msra.mxu0 0
  %4849 = vmatprep.subr.bf16.mxu0 0
  %4850 = vmatpush1.bf16.msra.mxu0 0
  %4851 = vmatprep.subr.bf16.mxu0 0
  %4852 = vmatpush1.bf16.msra.mxu0 0
  %4853 = vmatprep.subr.bf16.mxu0 0
  %4854 = vmatpush1.bf16.msra.mxu0 0
  %4855 = vmatprep.subr.bf16.mxu0 0
  %4856 = vmatpush1.bf16.msra.mxu0 0
  %4857 = vmatprep.subr.bf16.mxu0 0
  %4858 = vmatpush1.bf16.msra.mxu0 0
  %4859 = vmatprep.subr.bf16.mxu0 0
  %4860 = vmatpush1.bf16.msra.mxu0 0
  %4861 = vmatprep.subr.bf16.mxu0 0
  %4862 = vmatpush1.bf16.msra.mxu0 0
  %4863 = vmatprep.subr.bf16.mxu0 0
  %4864 = vmatpush1.bf16.msra.mxu0 0
  %4865 = vmatprep.subr.bf16.mxu0 0
  %4866 = vmatpush1.bf16.msra.mxu0 0
  %4867 = vmatprep.subr.bf16.mxu0 0
  %4868 = vmatpush1.bf16.msra.mxu0 0
  %4869 = vmatprep.subr.bf16.mxu0 0
  %4870 = vmatpush1.bf16.msra.mxu0 0
  %4871 = vmatprep.subr.bf16.mxu0 0
  %4872 = vmatpush1.bf16.msra.mxu0 0
  %4873 = vmatprep.subr.bf16.mxu0 0
  %4874 = vmatpush1.bf16.msra.mxu0 0
  %4875 = vmatprep.mubr.bf16.mxu0 0
  %4876 = vmatmul.mubr.bf16.gmra.mrb[0].mxu0 %v4841
  %v4877 = vpop.f32.mrb[0].mxu0
  %v4878 = vadd.f32 0.0, %v4877
  %v4879 = vpop.f32.mrb[0].mxu0
  %v4880 = vpop.f32.mrb[0].mxu0
  %v4881 = vpop.f32.mrb[0].mxu0
  %4882 = vdwg.mxu0
  %v4883 = vpack.c.bf16 %v4878, %v4878
  %s4884 = scalar_lea.vmem %s8, 32
  %v4885 = vld [vmem:[%s4884] sm:$0xf]
  %v4886 = vld [vmem:[%s4884 + $0x4] sm:$0xf]
  %v4887 = vld [vmem:[%s4884 + $0x8] sm:$0xf]
  %v4888 = vld [vmem:[%s4884 + $0xc] sm:$0xf]
  %v4889 = vld [vmem:[%s4884 + $0x10] sm:$0xf]
  %v4890 = vld [vmem:[%s4884 + $0x14] sm:$0xf]
  %v4891 = vld [vmem:[%s4884 + $0x18] sm:$0xf]
  %v4892 = vld [vmem:[%s4884 + $0x1c] sm:$0xf]
  %v4901 = vunpack.c.l.b16 %v4885
  %v4902 = vunpack.c.l.b16 %v4886
  %v4903 = vunpack.c.l.b16 %v4887
  %v4904 = vunpack.c.l.b16 %v4888
  %v4905 = vunpack.c.l.b16 %v4889
  %v4906 = vunpack.c.l.b16 %v4890
  %v4907 = vunpack.c.l.b16 %v4891
  %v4908 = vunpack.c.l.b16 %v4892
  %v4909 = vpack.c.b16 %v4902, %v4901
  %v4910 = vpack.c.b16 %v4904, %v4903
  %v4911 = vpack.c.b16 %v4906, %v4905
  %v4912 = vpack.c.b16 %v4908, %v4907
  %v4918 = vsel %vm4163, %v4883, 0
  %4920 = vmatprep.subr.bf16.mxu0 0
  %4921 = vmatpush1.bf16.msra.mxu0 %v4909
  %4922 = vmatprep.subr.bf16.mxu0 0
  %4923 = vmatpush1.bf16.msra.mxu0 %v4910
  %4924 = vmatprep.subr.bf16.mxu0 0
  %4925 = vmatpush1.bf16.msra.mxu0 %v4911
  %4926 = vmatprep.subr.bf16.mxu0 0
  %4927 = vmatpush1.bf16.msra.mxu0 %v4912
  %4928 = vmatprep.subr.bf16.mxu0 0
  %4929 = vmatpush1.bf16.msra.mxu0 0
  %4930 = vmatprep.subr.bf16.mxu0 0
  %4931 = vmatpush1.bf16.msra.mxu0 0
  %4932 = vmatprep.subr.bf16.mxu0 0
  %4933 = vmatpush1.bf16.msra.mxu0 0
  %4934 = vmatprep.subr.bf16.mxu0 0
  %4935 = vmatpush1.bf16.msra.mxu0 0
  %4936 = vmatprep.subr.bf16.mxu0 0
  %4937 = vmatpush1.bf16.msra.mxu0 0
  %4938 = vmatprep.subr.bf16.mxu0 0
  %4939 = vmatpush1.bf16.msra.mxu0 0
  %4940 = vmatprep.subr.bf16.mxu0 0
  %4941 = vmatpush1.bf16.msra.mxu0 0
  %4942 = vmatprep.subr.bf16.mxu0 0
  %4943 = vmatpush1.bf16.msra.mxu0 0
  %4944 = vmatprep.subr.bf16.mxu0 0
  %4945 = vmatpush1.bf16.msra.mxu0 0
  %4946 = vmatprep.subr.bf16.mxu0 0
  %4947 = vmatpush1.bf16.msra.mxu0 0
  %4948 = vmatprep.subr.bf16.mxu0 0
  %4949 = vmatpush1.bf16.msra.mxu0 0
  %4950 = vmatprep.subr.bf16.mxu0 0
  %4951 = vmatpush1.bf16.msra.mxu0 0
  %4952 = vmatprep.mubr.bf16.mxu0 0
  %4953 = vmatmul.mubr.bf16.gmra.mrb[0].mxu0 %v4918
  %v4954 = vpop.f32.mrb[0].mxu0
  %v4955 = vadd.f32 0.0, %v4954
  %v4956 = vpop.f32.mrb[0].mxu0
  %v4957 = vpop.f32.mrb[0].mxu0
  %v4958 = vpop.f32.mrb[0].mxu0
  %4959 = vdwg.mxu0
  %v4960 = vadd.f32 %v4837, %v4955
  %s4961 = scalar_lea.vmem %s4, 8
  %v4962 = vld [vmem:[%s4961] sm:$0xf]
  %v4964 = vsel %vm4708, %v4962, 0
  %4966 = vmatprep.subr.bf16.mxu0 0
  %4967 = vmatpush1.bf16.msra.mxu0 %v4704
  %4968 = vmatprep.subr.bf16.mxu0 0
  %4969 = vmatpush1.bf16.msra.mxu0 %v4713
  %4970 = vmatprep.subr.bf16.mxu0 0
  %4971 = vmatpush1.bf16.msra.mxu0 0
  %4972 = vmatprep.subr.bf16.mxu0 0
  %4973 = vmatpush1.bf16.msra.mxu0 0
  %4974 = vmatprep.subr.bf16.mxu0 0
  %4975 = vmatpush1.bf16.msra.mxu0 0
  %4976 = vmatprep.subr.bf16.mxu0 0
  %4977 = vmatpush1.bf16.msra.mxu0 0
  %4978 = vmatprep.subr.bf16.mxu0 0
  %4979 = vmatpush1.bf16.msra.mxu0 0
  %4980 = vmatprep.subr.bf16.mxu0 0
  %4981 = vmatpush1.bf16.msra.mxu0 0
  %4982 = vmatprep.subr.bf16.mxu0 0
  %4983 = vmatpush1.bf16.msra.mxu0 0
  %4984 = vmatprep.subr.bf16.mxu0 0
  %4985 = vmatpush1.bf16.msra.mxu0 0
  %4986 = vmatprep.subr.bf16.mxu0 0
  %4987 = vmatpush1.bf16.msra.mxu0 0
  %4988 = vmatprep.subr.bf16.mxu0 0
  %4989 = vmatpush1.bf16.msra.mxu0 0
  %4990 = vmatprep.subr.bf16.mxu0 0
  %4991 = vmatpush1.bf16.msra.mxu0 0
  %4992 = vmatprep.subr.bf16.mxu0 0
  %4993 = vmatpush1.bf16.msra.mxu0 0
  %4994 = vmatprep.subr.bf16.mxu0 0
  %4995 = vmatpush1.bf16.msra.mxu0 0
  %4996 = vmatprep.subr.bf16.mxu0 0
  %4997 = vmatpush1.bf16.msra.mxu0 0
  %4998 = vmatprep.mubr.bf16.mxu0 0
  %4999 = vmatmul.mubr.bf16.gmra.mrb[0].mxu0 %v4964
  %v5000 = vpop.f32.mrb[0].mxu0
  %v5001 = vadd.f32 0.0, %v5000
  %v5002 = vpop.f32.mrb[0].mxu0
  %v5003 = vpop.f32.mrb[0].mxu0
  %v5004 = vpop.f32.mrb[0].mxu0
  %5005 = vdwg.mxu0
  %v5006 = vpack.c.bf16 %v5001, %v5001
  %s5007 = scalar_lea.vmem %s8, 64
  %v5008 = vld [vmem:[%s5007] sm:$0xf]
  %v5009 = vld [vmem:[%s5007 + $0x4] sm:$0xf]
  %v5010 = vld [vmem:[%s5007 + $0x8] sm:$0xf]
  %v5011 = vld [vmem:[%s5007 + $0xc] sm:$0xf]
  %v5012 = vld [vmem:[%s5007 + $0x10] sm:$0xf]
  %v5013 = vld [vmem:[%s5007 + $0x14] sm:$0xf]
  %v5014 = vld [vmem:[%s5007 + $0x18] sm:$0xf]
  %v5015 = vld [vmem:[%s5007 + $0x1c] sm:$0xf]
  %v5024 = vunpack.c.l.b16 %v5008
  %v5025 = vunpack.c.l.b16 %v5009
  %v5026 = vunpack.c.l.b16 %v5010
  %v5027 = vunpack.c.l.b16 %v5011
  %v5028 = vunpack.c.l.b16 %v5012
  %v5029 = vunpack.c.l.b16 %v5013
  %v5030 = vunpack.c.l.b16 %v5014
  %v5031 = vunpack.c.l.b16 %v5015
  %v5032 = vpack.c.b16 %v5025, %v5024
  %v5033 = vpack.c.b16 %v5027, %v5026
  %v5034 = vpack.c.b16 %v5029, %v5028
  %v5035 = vpack.c.b16 %v5031, %v5030
  %v5041 = vsel %vm4163, %v5006, 0
  %5043 = vmatprep.subr.bf16.mxu0 0
  %5044 = vmatpush1.bf16.msra.mxu0 %v5032
  %5045 = vmatprep.subr.bf16.mxu0 0
  %5046 = vmatpush1.bf16.msra.mxu0 %v5033
  %5047 = vmatprep.subr.bf16.mxu0 0
  %5048 = vmatpush1.bf16.msra.mxu0 %v5034
  %5049 = vmatprep.subr.bf16.mxu0 0
  %5050 = vmatpush1.bf16.msra.mxu0 %v5035
  %5051 = vmatprep.subr.bf16.mxu0 0
  %5052 = vmatpush1.bf16.msra.mxu0 0
  %5053 = vmatprep.subr.bf16.mxu0 0
  %5054 = vmatpush1.bf16.msra.mxu0 0
  %5055 = vmatprep.subr.bf16.mxu0 0
  %5056 = vmatpush1.bf16.msra.mxu0 0
  %5057 = vmatprep.subr.bf16.mxu0 0
  %5058 = vmatpush1.bf16.msra.mxu0 0
  %5059 = vmatprep.subr.bf16.mxu0 0
  %5060 = vmatpush1.bf16.msra.mxu0 0
  %5061 = vmatprep.subr.bf16.mxu0 0
  %5062 = vmatpush1.bf16.msra.mxu0 0
  %5063 = vmatprep.subr.bf16.mxu0 0
  %5064 = vmatpush1.bf16.msra.mxu0 0
  %5065 = vmatprep.subr.bf16.mxu0 0
  %5066 = vmatpush1.bf16.msra.mxu0 0
  %5067 = vmatprep.subr.bf16.mxu0 0
  %5068 = vmatpush1.bf16.msra.mxu0 0
  %5069 = vmatprep.subr.bf16.mxu0 0
  %5070 = vmatpush1.bf16.msra.mxu0 0
  %5071 = vmatprep.subr.bf16.mxu0 0
  %5072 = vmatpush1.bf16.msra.mxu0 0
  %5073 = vmatprep.subr.bf16.mxu0 0
  %5074 = vmatpush1.bf16.msra.mxu0 0
  %5075 = vmatprep.mubr.bf16.mxu0 0
  %5076 = vmatmul.mubr.bf16.gmra.mrb[0].mxu0 %v5041
  %v5077 = vpop.f32.mrb[0].mxu0
  %v5078 = vadd.f32 0.0, %v5077
  %v5079 = vpop.f32.mrb[0].mxu0
  %v5080 = vpop.f32.mrb[0].mxu0
  %v5081 = vpop.f32.mrb[0].mxu0
  %5082 = vdwg.mxu0
  %v5083 = vadd.f32 %v4960, %v5078
  %s5084 = scalar_lea.vmem %s4, 12
  %v5085 = vld [vmem:[%s5084] sm:$0xf]
  %v5087 = vsel %vm4708, %v5085, 0
  %5089 = vmatprep.subr.bf16.mxu0 0
  %5090 = vmatpush1.bf16.msra.mxu0 %v4704
  %5091 = vmatprep.subr.bf16.mxu0 0
  %5092 = vmatpush1.bf16.msra.mxu0 %v4713
  %5093 = vmatprep.subr.bf16.mxu0 0
  %5094 = vmatpush1.bf16.msra.mxu0 0
  %5095 = vmatprep.subr.bf16.mxu0 0
  %5096 = vmatpush1.bf16.msra.mxu0 0
  %5097 = vmatprep.subr.bf16.mxu0 0
  %5098 = vmatpush1.bf16.msra.mxu0 0
  %5099 = vmatprep.subr.bf16.mxu0 0
  %5100 = vmatpush1.bf16.msra.mxu0 0
  %5101 = vmatprep.subr.bf16.mxu0 0
  %5102 = vmatpush1.bf16.msra.mxu0 0
  %5103 = vmatprep.subr.bf16.mxu0 0
  %5104 = vmatpush1.bf16.msra.mxu0 0
  %5105 = vmatprep.subr.bf16.mxu0 0
  %5106 = vmatpush1.bf16.msra.mxu0 0
  %5107 = vmatprep.subr.bf16.mxu0 0
  %5108 = vmatpush1.bf16.msra.mxu0 0
  %5109 = vmatprep.subr.bf16.mxu0 0
  %5110 = vmatpush1.bf16.msra.mxu0 0
  %5111 = vmatprep.subr.bf16.mxu0 0
  %5112 = vmatpush1.bf16.msra.mxu0 0
  %5113 = vmatprep.subr.bf16.mxu0 0
  %5114 = vmatpush1.bf16.msra.mxu0 0
  %5115 = vmatprep.subr.bf16.mxu0 0
  %5116 = vmatpush1.bf16.msra.mxu0 0
  %5117 = vmatprep.subr.bf16.mxu0 0
  %5118 = vmatpush1.bf16.msra.mxu0 0
  %5119 = vmatprep.subr.bf16.mxu0 0
  %5120 = vmatpush1.bf16.msra.mxu0 0
  %5121 = vmatprep.mubr.bf16.mxu0 0
  %5122 = vmatmul.mubr.bf16.gmra.mrb[0].mxu0 %v5087
  %v5123 = vpop.f32.mrb[0].mxu0
  %v5124 = vadd.f32 0.0, %v5123
  %v5125 = vpop.f32.mrb[0].mxu0
  %v5126 = vpop.f32.mrb[0].mxu0
  %v5127 = vpop.f32.mrb[0].mxu0
  %5128 = vdwg.mxu0
  %v5129 = vpack.c.bf16 %v5124, %v5124
  %s5130 = scalar_lea.vmem %s8, 96
  %v5131 = vld [vmem:[%s5130] sm:$0xf]
  %v5132 = vld [vmem:[%s5130 + $0x4] sm:$0xf]
  %v5133 = vld [vmem:[%s5130 + $0x8] sm:$0xf]
  %v5134 = vld [vmem:[%s5130 + $0xc] sm:$0xf]
  %v5135 = vld [vmem:[%s5130 + $0x10] sm:$0xf]
  %v5136 = vld [vmem:[%s5130 + $0x14] sm:$0xf]
  %v5137 = vld [vmem:[%s5130 + $0x18] sm:$0xf]
  %v5138 = vld [vmem:[%s5130 + $0x1c] sm:$0xf]
  %v5147 = vunpack.c.l.b16 %v5131
  %v5148 = vunpack.c.l.b16 %v5132
  %v5149 = vunpack.c.l.b16 %v5133
  %v5150 = vunpack.c.l.b16 %v5134
  %v5151 = vunpack.c.l.b16 %v5135
  %v5152 = vunpack.c.l.b16 %v5136
  %v5153 = vunpack.c.l.b16 %v5137
  %v5154 = vunpack.c.l.b16 %v5138
  %v5155 = vpack.c.b16 %v5148, %v5147
  %v5156 = vpack.c.b16 %v5150, %v5149
  %v5157 = vpack.c.b16 %v5152, %v5151
  %v5158 = vpack.c.b16 %v5154, %v5153
  %v5164 = vsel %vm4163, %v5129, 0
  %5166 = vmatprep.subr.bf16.mxu0 0
  %5167 = vmatpush1.bf16.msra.mxu0 %v5155
  %5168 = vmatprep.subr.bf16.mxu0 0
  %5169 = vmatpush1.bf16.msra.mxu0 %v5156
  %5170 = vmatprep.subr.bf16.mxu0 0
  %5171 = vmatpush1.bf16.msra.mxu0 %v5157
  %5172 = vmatprep.subr.bf16.mxu0 0
  %5173 = vmatpush1.bf16.msra.mxu0 %v5158
  %5174 = vmatprep.subr.bf16.mxu0 0
  %5175 = vmatpush1.bf16.msra.mxu0 0
  %5176 = vmatprep.subr.bf16.mxu0 0
  %5177 = vmatpush1.bf16.msra.mxu0 0
  %5178 = vmatprep.subr.bf16.mxu0 0
  %5179 = vmatpush1.bf16.msra.mxu0 0
  %5180 = vmatprep.subr.bf16.mxu0 0
  %5181 = vmatpush1.bf16.msra.mxu0 0
  %5182 = vmatprep.subr.bf16.mxu0 0
  %5183 = vmatpush1.bf16.msra.mxu0 0
  %5184 = vmatprep.subr.bf16.mxu0 0
  %5185 = vmatpush1.bf16.msra.mxu0 0
  %5186 = vmatprep.subr.bf16.mxu0 0
  %5187 = vmatpush1.bf16.msra.mxu0 0
  %5188 = vmatprep.subr.bf16.mxu0 0
  %5189 = vmatpush1.bf16.msra.mxu0 0
  %5190 = vmatprep.subr.bf16.mxu0 0
  %5191 = vmatpush1.bf16.msra.mxu0 0
  %5192 = vmatprep.subr.bf16.mxu0 0
  %5193 = vmatpush1.bf16.msra.mxu0 0
  %5194 = vmatprep.subr.bf16.mxu0 0
  %5195 = vmatpush1.bf16.msra.mxu0 0
  %5196 = vmatprep.subr.bf16.mxu0 0
  %5197 = vmatpush1.bf16.msra.mxu0 0
  %5198 = vmatprep.mubr.bf16.mxu0 0
  %5199 = vmatmul.mubr.bf16.gmra.mrb[0].mxu0 %v5164
  %v5200 = vpop.f32.mrb[0].mxu0
  %v5201 = vadd.f32 0.0, %v5200
  %v5202 = vpop.f32.mrb[0].mxu0
  %v5203 = vpop.f32.mrb[0].mxu0
  %v5204 = vpop.f32.mrb[0].mxu0
  %5205 = vdwg.mxu0
  %v5206 = vadd.f32 %v5083, %v5201
  %v5207 = vmax.f32 %v5206, 0.0
  %v5208 = vpack.c.bf16 %v5207, %v5207
  %v5209 = vld [vmem:[%s15] sm:$0x1]
  %v5210 = vld [vmem:[%s13] sm:$0x1]
  %vm5211 = vcmask 64512
  %v5213 = vsel %vm5211, %v5210, 0
  %v5216 = vsel %vm876, %v5208, 0
  %5218 = vmatprep.subr.bf16.mxu0 0
  %5219 = vmatpush1.bf16.msra.mxu0 %v5216
  %5220 = vmatprep.subr.bf16.mxu0 0
  %5221 = vmatpush1.bf16.msra.mxu0 0
  %5222 = vmatprep.subr.bf16.mxu0 0
  %5223 = vmatpush1.bf16.msra.mxu0 0
  %5224 = vmatprep.subr.bf16.mxu0 0
  %5225 = vmatpush1.bf16.msra.mxu0 0
  %5226 = vmatprep.subr.bf16.mxu0 0
  %5227 = vmatpush1.bf16.msra.mxu0 0
  %5228 = vmatprep.subr.bf16.mxu0 0
  %5229 = vmatpush1.bf16.msra.mxu0 0
  %5230 = vmatprep.subr.bf16.mxu0 0
  %5231 = vmatpush1.bf16.msra.mxu0 0
  %5232 = vmatprep.subr.bf16.mxu0 0
  %5233 = vmatpush1.bf16.msra.mxu0 0
  %5234 = vmatprep.subr.bf16.mxu0 0
  %5235 = vmatpush1.bf16.msra.mxu0 0
  %5236 = vmatprep.subr.bf16.mxu0 0
  %5237 = vmatpush1.bf16.msra.mxu0 0
  %5238 = vmatprep.subr.bf16.mxu0 0
  %5239 = vmatpush1.bf16.msra.mxu0 0
  %5240 = vmatprep.subr.bf16.mxu0 0
  %5241 = vmatpush1.bf16.msra.mxu0 0
  %5242 = vmatprep.subr.bf16.mxu0 0
  %5243 = vmatpush1.bf16.msra.mxu0 0
  %5244 = vmatprep.subr.bf16.mxu0 0
  %5245 = vmatpush1.bf16.msra.mxu0 0
  %5246 = vmatprep.subr.bf16.mxu0 0
  %5247 = vmatpush1.bf16.msra.mxu0 0
  %5248 = vmatprep.subr.bf16.mxu0 0
  %5249 = vmatpush1.bf16.msra.mxu0 0
  %5250 = vmatprep.mubr.bf16.mxu0 0
  %5251 = vmatmul.mubr.bf16.gmra.mrb[0].mxu0 %v5213
  %v5252 = vpop.f32.mrb[0].mxu0
  %v5253 = vadd.f32 0.0, %v5252
  %v5254 = vpop.f32.mrb[0].mxu0
  %v5255 = vpop.f32.mrb[0].mxu0
  %v5256 = vpop.f32.mrb[0].mxu0
  %5257 = vdwg.mxu0
  %v5258 = vpack.c.bf16 %v5253, %v5253
  %v5259 = vld [vmem:[%s14] sm:$0xf]
  %v5260 = vld [vmem:[%s14 + $0x4] sm:$0xf]
  %v5261 = vld [vmem:[%s14 + $0x8] sm:$0xf]
  %v5262 = vld [vmem:[%s14 + $0xc] sm:$0xf]
  %v5267 = vunpack.c.l.b16 %v5259
  %v5268 = vunpack.c.l.b16 %v5260
  %v5269 = vunpack.c.l.b16 %v5261
  %v5270 = vunpack.c.l.b16 %v5262
  %v5271 = vpack.c.b16 %v5268, %v5267
  %v5272 = vpack.c.b16 %v5270, %v5269
  %v5276 = vsel %vm3295, %v5258, 0
  %5278 = vmatprep.subr.bf16.mxu0 0
  %5279 = vmatpush1.bf16.msra.mxu0 %v5271
  %5280 = vmatprep.subr.bf16.mxu0 0
  %5281 = vmatpush1.bf16.msra.mxu0 %v5272
  %5282 = vmatprep.subr.bf16.mxu0 0
  %5283 = vmatpush1.bf16.msra.mxu0 0
  %5284 = vmatprep.subr.bf16.mxu0 0
  %5285 = vmatpush1.bf16.msra.mxu0 0
  %5286 = vmatprep.subr.bf16.mxu0 0
  %5287 = vmatpush1.bf16.msra.mxu0 0
  %5288 = vmatprep.subr.bf16.mxu0 0
  %5289 = vmatpush1.bf16.msra.mxu0 0
  %5290 = vmatprep.subr.bf16.mxu0 0
  %5291 = vmatpush1.bf16.msra.mxu0 0
  %5292 = vmatprep.subr.bf16.mxu0 0
  %5293 = vmatpush1.bf16.msra.mxu0 0
  %5294 = vmatprep.subr.bf16.mxu0 0
  %5295 = vmatpush1.bf16.msra.mxu0 0
  %5296 = vmatprep.subr.bf16.mxu0 0
  %5297 = vmatpush1.bf16.msra.mxu0 0
  %5298 = vmatprep.subr.bf16.mxu0 0
  %5299 = vmatpush1.bf16.msra.mxu0 0
  %5300 = vmatprep.subr.bf16.mxu0 0
  %5301 = vmatpush1.bf16.msra.mxu0 0
  %5302 = vmatprep.subr.bf16.mxu0 0
  %5303 = vmatpush1.bf16.msra.mxu0 0
  %5304 = vmatprep.subr.bf16.mxu0 0
  %5305 = vmatpush1.bf16.msra.mxu0 0
  %5306 = vmatprep.subr.bf16.mxu0 0
  %5307 = vmatpush1.bf16.msra.mxu0 0
  %5308 = vmatprep.subr.bf16.mxu0 0
  %5309 = vmatpush1.bf16.msra.mxu0 0
  %5310 = vmatprep.mubr.bf16.mxu0 0
  %5311 = vmatmul.mubr.bf16.gmra.mrb[0].mxu0 %v5276
  %v5312 = vpop.f32.mrb[0].mxu0
  %v5313 = vadd.f32 0.0, %v5312
  %v5314 = vpop.f32.mrb[0].mxu0
  %v5315 = vpop.f32.mrb[0].mxu0
  %v5316 = vpop.f32.mrb[0].mxu0
  %5317 = vdwg.mxu0
  %v5319 = vlaneseq
  %v5320 = vshrl.u32 %v5319, 7
  %v5321 = vsub.s32 0, %v5320
  %v5322 = vrot.slane %v5209, %v5321
  %v5324 = vadd.f32 %v5322, %v5313
  %s5325 = scalar_lea.vmem %s13, 1
  %v5326 = vld [vmem:[%s5325] sm:$0x1]
  %v5328 = vsel %vm5211, %v5326, 0
  %5330 = vmatprep.subr.bf16.mxu0 0
  %5331 = vmatpush1.bf16.msra.mxu0 %v5216
  %5332 = vmatprep.subr.bf16.mxu0 0
  %5333 = vmatpush1.bf16.msra.mxu0 0
  %5334 = vmatprep.subr.bf16.mxu0 0
  %5335 = vmatpush1.bf16.msra.mxu0 0
  %5336 = vmatprep.subr.bf16.mxu0 0
  %5337 = vmatpush1.bf16.msra.mxu0 0
  %5338 = vmatprep.subr.bf16.mxu0 0
  %5339 = vmatpush1.bf16.msra.mxu0 0
  %5340 = vmatprep.subr.bf16.mxu0 0
  %5341 = vmatpush1.bf16.msra.mxu0 0
  %5342 = vmatprep.subr.bf16.mxu0 0
  %5343 = vmatpush1.bf16.msra.mxu0 0
  %5344 = vmatprep.subr.bf16.mxu0 0
  %5345 = vmatpush1.bf16.msra.mxu0 0
  %5346 = vmatprep.subr.bf16.mxu0 0
  %5347 = vmatpush1.bf16.msra.mxu0 0
  %5348 = vmatprep.subr.bf16.mxu0 0
  %5349 = vmatpush1.bf16.msra.mxu0 0
  %5350 = vmatprep.subr.bf16.mxu0 0
  %5351 = vmatpush1.bf16.msra.mxu0 0
  %5352 = vmatprep.subr.bf16.mxu0 0
  %5353 = vmatpush1.bf16.msra.mxu0 0
  %5354 = vmatprep.subr.bf16.mxu0 0
  %5355 = vmatpush1.bf16.msra.mxu0 0
  %5356 = vmatprep.subr.bf16.mxu0 0
  %5357 = vmatpush1.bf16.msra.mxu0 0
  %5358 = vmatprep.subr.bf16.mxu0 0
  %5359 = vmatpush1.bf16.msra.mxu0 0
  %5360 = vmatprep.subr.bf16.mxu0 0
  %5361 = vmatpush1.bf16.msra.mxu0 0
  %5362 = vmatprep.mubr.bf16.mxu0 0
  %5363 = vmatmul.mubr.bf16.gmra.mrb[0].mxu0 %v5328
  %v5364 = vpop.f32.mrb[0].mxu0
  %v5365 = vadd.f32 0.0, %v5364
  %v5366 = vpop.f32.mrb[0].mxu0
  %v5367 = vpop.f32.mrb[0].mxu0
  %v5368 = vpop.f32.mrb[0].mxu0
  %5369 = vdwg.mxu0
  %v5370 = vpack.c.bf16 %v5365, %v5365
  %s5371 = scalar_lea.vmem %s14, 16
  %v5372 = vld [vmem:[%s5371] sm:$0xf]
  %v5373 = vld [vmem:[%s5371 + $0x4] sm:$0xf]
  %v5374 = vld [vmem:[%s5371 + $0x8] sm:$0xf]
  %v5375 = vld [vmem:[%s5371 + $0xc] sm:$0xf]
  %v5380 = vunpack.c.l.b16 %v5372
  %v5381 = vunpack.c.l.b16 %v5373
  %v5382 = vunpack.c.l.b16 %v5374
  %v5383 = vunpack.c.l.b16 %v5375
  %v5384 = vpack.c.b16 %v5381, %v5380
  %v5385 = vpack.c.b16 %v5383, %v5382
  %v5389 = vsel %vm3295, %v5370, 0
  %5391 = vmatprep.subr.bf16.mxu0 0
  %5392 = vmatpush1.bf16.msra.mxu0 %v5384
  %5393 = vmatprep.subr.bf16.mxu0 0
  %5394 = vmatpush1.bf16.msra.mxu0 %v5385
  %5395 = vmatprep.subr.bf16.mxu0 0
  %5396 = vmatpush1.bf16.msra.mxu0 0
  %5397 = vmatprep.subr.bf16.mxu0 0
  %5398 = vmatpush1.bf16.msra.mxu0 0
  %5399 = vmatprep.subr.bf16.mxu0 0
  %5400 = vmatpush1.bf16.msra.mxu0 0
  %5401 = vmatprep.subr.bf16.mxu0 0
  %5402 = vmatpush1.bf16.msra.mxu0 0
  %5403 = vmatprep.subr.bf16.mxu0 0
  %5404 = vmatpush1.bf16.msra.mxu0 0
  %5405 = vmatprep.subr.bf16.mxu0 0
  %5406 = vmatpush1.bf16.msra.mxu0 0
  %5407 = vmatprep.subr.bf16.mxu0 0
  %5408 = vmatpush1.bf16.msra.mxu0 0
  %5409 = vmatprep.subr.bf16.mxu0 0
  %5410 = vmatpush1.bf16.msra.mxu0 0
  %5411 = vmatprep.subr.bf16.mxu0 0
  %5412 = vmatpush1.bf16.msra.mxu0 0
  %5413 = vmatprep.subr.bf16.mxu0 0
  %5414 = vmatpush1.bf16.msra.mxu0 0
  %5415 = vmatprep.subr.bf16.mxu0 0
  %5416 = vmatpush1.bf16.msra.mxu0 0
  %5417 = vmatprep.subr.bf16.mxu0 0
  %5418 = vmatpush1.bf16.msra.mxu0 0
  %5419 = vmatprep.subr.bf16.mxu0 0
  %5420 = vmatpush1.bf16.msra.mxu0 0
  %5421 = vmatprep.subr.bf16.mxu0 0
  %5422 = vmatpush1.bf16.msra.mxu0 0
  %5423 = vmatprep.mubr.bf16.mxu0 0
  %5424 = vmatmul.mubr.bf16.gmra.mrb[0].mxu0 %v5389
  %v5425 = vpop.f32.mrb[0].mxu0
  %v5426 = vadd.f32 0.0, %v5425
  %v5427 = vpop.f32.mrb[0].mxu0
  %v5428 = vpop.f32.mrb[0].mxu0
  %v5429 = vpop.f32.mrb[0].mxu0
  %5430 = vdwg.mxu0
  %v5431 = vadd.f32 %v5324, %v5426
  %s5432 = scalar_lea.vmem %s13, 2
  %v5433 = vld [vmem:[%s5432] sm:$0x1]
  %v5435 = vsel %vm5211, %v5433, 0
  %5437 = vmatprep.subr.bf16.mxu0 0
  %5438 = vmatpush1.bf16.msra.mxu0 %v5216
  %5439 = vmatprep.subr.bf16.mxu0 0
  %5440 = vmatpush1.bf16.msra.mxu0 0
  %5441 = vmatprep.subr.bf16.mxu0 0
  %5442 = vmatpush1.bf16.msra.mxu0 0
  %5443 = vmatprep.subr.bf16.mxu0 0
  %5444 = vmatpush1.bf16.msra.mxu0 0
  %5445 = vmatprep.subr.bf16.mxu0 0
  %5446 = vmatpush1.bf16.msra.mxu0 0
  %5447 = vmatprep.subr.bf16.mxu0 0
  %5448 = vmatpush1.bf16.msra.mxu0 0
  %5449 = vmatprep.subr.bf16.mxu0 0
  %5450 = vmatpush1.bf16.msra.mxu0 0
  %5451 = vmatprep.subr.bf16.mxu0 0
  %5452 = vmatpush1.bf16.msra.mxu0 0
  %5453 = vmatprep.subr.bf16.mxu0 0
  %5454 = vmatpush1.bf16.msra.mxu0 0
  %5455 = vmatprep.subr.bf16.mxu0 0
  %5456 = vmatpush1.bf16.msra.mxu0 0
  %5457 = vmatprep.subr.bf16.mxu0 0
  %5458 = vmatpush1.bf16.msra.mxu0 0
  %5459 = vmatprep.subr.bf16.mxu0 0
  %5460 = vmatpush1.bf16.msra.mxu0 0
  %5461 = vmatprep.subr.bf16.mxu0 0
  %5462 = vmatpush1.bf16.msra.mxu0 0
  %5463 = vmatprep.subr.bf16.mxu0 0
  %5464 = vmatpush1.bf16.msra.mxu0 0
  %5465 = vmatprep.subr.bf16.mxu0 0
  %5466 = vmatpush1.bf16.msra.mxu0 0
  %5467 = vmatprep.subr.bf16.mxu0 0
  %5468 = vmatpush1.bf16.msra.mxu0 0
  %5469 = vmatprep.mubr.bf16.mxu0 0
  %5470 = vmatmul.mubr.bf16.gmra.mrb[0].mxu0 %v5435
  %v5471 = vpop.f32.mrb[0].mxu0
  %v5472 = vadd.f32 0.0, %v5471
  %v5473 = vpop.f32.mrb[0].mxu0
  %v5474 = vpop.f32.mrb[0].mxu0
  %v5475 = vpop.f32.mrb[0].mxu0
  %5476 = vdwg.mxu0
  %v5477 = vpack.c.bf16 %v5472, %v5472
  %s5478 = scalar_lea.vmem %s14, 32
  %v5479 = vld [vmem:[%s5478] sm:$0xf]
  %v5480 = vld [vmem:[%s5478 + $0x4] sm:$0xf]
  %v5481 = vld [vmem:[%s5478 + $0x8] sm:$0xf]
  %v5482 = vld [vmem:[%s5478 + $0xc] sm:$0xf]
  %v5487 = vunpack.c.l.b16 %v5479
  %v5488 = vunpack.c.l.b16 %v5480
  %v5489 = vunpack.c.l.b16 %v5481
  %v5490 = vunpack.c.l.b16 %v5482
  %v5491 = vpack.c.b16 %v5488, %v5487
  %v5492 = vpack.c.b16 %v5490, %v5489
  %v5496 = vsel %vm3295, %v5477, 0
  %5498 = vmatprep.subr.bf16.mxu0 0
  %5499 = vmatpush1.bf16.msra.mxu0 %v5491
  %5500 = vmatprep.subr.bf16.mxu0 0
  %5501 = vmatpush1.bf16.msra.mxu0 %v5492
  %5502 = vmatprep.subr.bf16.mxu0 0
  %5503 = vmatpush1.bf16.msra.mxu0 0
  %5504 = vmatprep.subr.bf16.mxu0 0
  %5505 = vmatpush1.bf16.msra.mxu0 0
  %5506 = vmatprep.subr.bf16.mxu0 0
  %5507 = vmatpush1.bf16.msra.mxu0 0
  %5508 = vmatprep.subr.bf16.mxu0 0
  %5509 = vmatpush1.bf16.msra.mxu0 0
  %5510 = vmatprep.subr.bf16.mxu0 0
  %5511 = vmatpush1.bf16.msra.mxu0 0
  %5512 = vmatprep.subr.bf16.mxu0 0
  %5513 = vmatpush1.bf16.msra.mxu0 0
  %5514 = vmatprep.subr.bf16.mxu0 0
  %5515 = vmatpush1.bf16.msra.mxu0 0
  %5516 = vmatprep.subr.bf16.mxu0 0
  %5517 = vmatpush1.bf16.msra.mxu0 0
  %5518 = vmatprep.subr.bf16.mxu0 0
  %5519 = vmatpush1.bf16.msra.mxu0 0
  %5520 = vmatprep.subr.bf16.mxu0 0
  %5521 = vmatpush1.bf16.msra.mxu0 0
  %5522 = vmatprep.subr.bf16.mxu0 0
  %5523 = vmatpush1.bf16.msra.mxu0 0
  %5524 = vmatprep.subr.bf16.mxu0 0
  %5525 = vmatpush1.bf16.msra.mxu0 0
  %5526 = vmatprep.subr.bf16.mxu0 0
  %5527 = vmatpush1.bf16.msra.mxu0 0
  %5528 = vmatprep.subr.bf16.mxu0 0
  %5529 = vmatpush1.bf16.msra.mxu0 0
  %5530 = vmatprep.mubr.bf16.mxu0 0
  %5531 = vmatmul.mubr.bf16.gmra.mrb[0].mxu0 %v5496
  %v5532 = vpop.f32.mrb[0].mxu0
  %v5533 = vadd.f32 0.0, %v5532
  %v5534 = vpop.f32.mrb[0].mxu0
  %v5535 = vpop.f32.mrb[0].mxu0
  %v5536 = vpop.f32.mrb[0].mxu0
  %5537 = vdwg.mxu0
  %v5538 = vadd.f32 %v5431, %v5533
  %s5539 = scalar_lea.vmem %s13, 3
  %v5540 = vld [vmem:[%s5539] sm:$0x1]
  %v5542 = vsel %vm5211, %v5540, 0
  %5544 = vmatprep.subr.bf16.mxu0 0
  %5545 = vmatpush1.bf16.msra.mxu0 %v5216
  %5546 = vmatprep.subr.bf16.mxu0 0
  %5547 = vmatpush1.bf16.msra.mxu0 0
  %5548 = vmatprep.subr.bf16.mxu0 0
  %5549 = vmatpush1.bf16.msra.mxu0 0
  %5550 = vmatprep.subr.bf16.mxu0 0
  %5551 = vmatpush1.bf16.msra.mxu0 0
  %5552 = vmatprep.subr.bf16.mxu0 0
  %5553 = vmatpush1.bf16.msra.mxu0 0
  %5554 = vmatprep.subr.bf16.mxu0 0
  %5555 = vmatpush1.bf16.msra.mxu0 0
  %5556 = vmatprep.subr.bf16.mxu0 0
  %5557 = vmatpush1.bf16.msra.mxu0 0
  %5558 = vmatprep.subr.bf16.mxu0 0
  %5559 = vmatpush1.bf16.msra.mxu0 0
  %5560 = vmatprep.subr.bf16.mxu0 0
  %5561 = vmatpush1.bf16.msra.mxu0 0
  %5562 = vmatprep.subr.bf16.mxu0 0
  %5563 = vmatpush1.bf16.msra.mxu0 0
  %5564 = vmatprep.subr.bf16.mxu0 0
  %5565 = vmatpush1.bf16.msra.mxu0 0
  %5566 = vmatprep.subr.bf16.mxu0 0
  %5567 = vmatpush1.bf16.msra.mxu0 0
  %5568 = vmatprep.subr.bf16.mxu0 0
  %5569 = vmatpush1.bf16.msra.mxu0 0
  %5570 = vmatprep.subr.bf16.mxu0 0
  %5571 = vmatpush1.bf16.msra.mxu0 0
  %5572 = vmatprep.subr.bf16.mxu0 0
  %5573 = vmatpush1.bf16.msra.mxu0 0
  %5574 = vmatprep.subr.bf16.mxu0 0
  %5575 = vmatpush1.bf16.msra.mxu0 0
  %5576 = vmatprep.mubr.bf16.mxu0 0
  %5577 = vmatmul.mubr.bf16.gmra.mrb[0].mxu0 %v5542
  %v5578 = vpop.f32.mrb[0].mxu0
  %v5579 = vadd.f32 0.0, %v5578
  %v5580 = vpop.f32.mrb[0].mxu0
  %v5581 = vpop.f32.mrb[0].mxu0
  %v5582 = vpop.f32.mrb[0].mxu0
  %5583 = vdwg.mxu0
  %v5584 = vpack.c.bf16 %v5579, %v5579
  %s5585 = scalar_lea.vmem %s14, 48
  %v5586 = vld [vmem:[%s5585] sm:$0xf]
  %v5587 = vld [vmem:[%s5585 + $0x4] sm:$0xf]
  %v5588 = vld [vmem:[%s5585 + $0x8] sm:$0xf]
  %v5589 = vld [vmem:[%s5585 + $0xc] sm:$0xf]
  %v5594 = vunpack.c.l.b16 %v5586
  %v5595 = vunpack.c.l.b16 %v5587
  %v5596 = vunpack.c.l.b16 %v5588
  %v5597 = vunpack.c.l.b16 %v5589
  %v5598 = vpack.c.b16 %v5595, %v5594
  %v5599 = vpack.c.b16 %v5597, %v5596
  %v5603 = vsel %vm3295, %v5584, 0
  %5605 = vmatprep.subr.bf16.mxu0 0
  %5606 = vmatpush1.bf16.msra.mxu0 %v5598
  %5607 = vmatprep.subr.bf16.mxu0 0
  %5608 = vmatpush1.bf16.msra.mxu0 %v5599
  %5609 = vmatprep.subr.bf16.mxu0 0
  %5610 = vmatpush1.bf16.msra.mxu0 0
  %5611 = vmatprep.subr.bf16.mxu0 0
  %5612 = vmatpush1.bf16.msra.mxu0 0
  %5613 = vmatprep.subr.bf16.mxu0 0
  %5614 = vmatpush1.bf16.msra.mxu0 0
  %5615 = vmatprep.subr.bf16.mxu0 0
  %5616 = vmatpush1.bf16.msra.mxu0 0
  %5617 = vmatprep.subr.bf16.mxu0 0
  %5618 = vmatpush1.bf16.msra.mxu0 0
  %5619 = vmatprep.subr.bf16.mxu0 0
  %5620 = vmatpush1.bf16.msra.mxu0 0
  %5621 = vmatprep.subr.bf16.mxu0 0
  %5622 = vmatpush1.bf16.msra.mxu0 0
  %5623 = vmatprep.subr.bf16.mxu0 0
  %5624 = vmatpush1.bf16.msra.mxu0 0
  %5625 = vmatprep.subr.bf16.mxu0 0
  %5626 = vmatpush1.bf16.msra.mxu0 0
  %5627 = vmatprep.subr.bf16.mxu0 0
  %5628 = vmatpush1.bf16.msra.mxu0 0
  %5629 = vmatprep.subr.bf16.mxu0 0
  %5630 = vmatpush1.bf16.msra.mxu0 0
  %5631 = vmatprep.subr.bf16.mxu0 0
  %5632 = vmatpush1.bf16.msra.mxu0 0
  %5633 = vmatprep.subr.bf16.mxu0 0
  %5634 = vmatpush1.bf16.msra.mxu0 0
  %5635 = vmatprep.subr.bf16.mxu0 0
  %5636 = vmatpush1.bf16.msra.mxu0 0
  %5637 = vmatprep.mubr.bf16.mxu0 0
  %5638 = vmatmul.mubr.bf16.gmra.mrb[0].mxu0 %v5603
  %v5639 = vpop.f32.mrb[0].mxu0
  %v5640 = vadd.f32 0.0, %v5639
  %v5641 = vpop.f32.mrb[0].mxu0
  %v5642 = vpop.f32.mrb[0].mxu0
  %v5643 = vpop.f32.mrb[0].mxu0
  %5644 = vdwg.mxu0
  %v5645 = vadd.f32 %v5538, %v5640
  %v5646 = vmax.f32 %v5645, 0.0
  %v5647 = vpack.c.bf16 %v5646, %v5646
  %v5648 = vld [vmem:[%s16] sm:$0xff]
  %v5649 = vld [vmem:[%s16 + $0x8] sm:$0xff]
  %v5650 = vld [vmem:[%s16 + $0x10] sm:$0xff]
  %v5651 = vld [vmem:[%s16 + $0x18] sm:$0xff]
  %v5652 = vld [vmem:[%s16 + $0x20] sm:$0xff]
  %v5653 = vld [vmem:[%s16 + $0x28] sm:$0xff]
  %v5654 = vld [vmem:[%s16 + $0x30] sm:$0xff]
  %v5655 = vld [vmem:[%s16 + $0x38] sm:$0xff]
  %v5656 = vld [vmem:[%s16 + $0x40] sm:$0xff]
  %v5657 = vld [vmem:[%s16 + $0x48] sm:$0xff]
  %v5658 = vld [vmem:[%s16 + $0x50] sm:$0xff]
  %v5659 = vld [vmem:[%s16 + $0x58] sm:$0xff]
  %v5660 = vld [vmem:[%s16 + $0x60] sm:$0xff]
  %v5661 = vld [vmem:[%s16 + $0x68] sm:$0xff]
  %v5662 = vld [vmem:[%s16 + $0x70] sm:$0xff]
  %v5663 = vld [vmem:[%s16 + $0x78] sm:$0xff]
  %v5664 = vld [vmem:[%s17] sm:$0x3]
  %v5666 = vlaneseq
  %v5667 = vshrl.u32 %v5666, 7
  %v5668 = vsub.s32 0, %v5667
  %v5669 = vrot.slane %v5664, %v5668
  %v5670 = vlaneseq
  %v5671 = vshrl.u32 %v5670, 7
  %v5672 = vsub.s32 1, %v5671
  %v5673 = vrot.slane %v5664, %v5672
  %v5692 = vunpack.c.l.b16 %v5648
  %v5693 = vunpack.c.h.b16 %v5648
  %v5694 = vunpack.c.l.b16 %v5649
  %v5695 = vunpack.c.h.b16 %v5649
  %v5696 = vunpack.c.l.b16 %v5650
  %v5697 = vunpack.c.h.b16 %v5650
  %v5698 = vunpack.c.l.b16 %v5651
  %v5699 = vunpack.c.h.b16 %v5651
  %v5700 = vunpack.c.l.b16 %v5652
  %v5701 = vunpack.c.h.b16 %v5652
  %v5702 = vunpack.c.l.b16 %v5653
  %v5703 = vunpack.c.h.b16 %v5653
  %v5704 = vunpack.c.l.b16 %v5654
  %v5705 = vunpack.c.h.b16 %v5654
  %v5706 = vunpack.c.l.b16 %v5655
  %v5707 = vunpack.c.h.b16 %v5655
  %v5708 = vunpack.c.l.b16 %v5656
  %v5709 = vunpack.c.h.b16 %v5656
  %v5710 = vunpack.c.l.b16 %v5657
  %v5711 = vunpack.c.h.b16 %v5657
  %v5712 = vunpack.c.l.b16 %v5658
  %v5713 = vunpack.c.h.b16 %v5658
  %v5714 = vunpack.c.l.b16 %v5659
  %v5715 = vunpack.c.h.b16 %v5659
  %v5716 = vunpack.c.l.b16 %v5660
  %v5717 = vunpack.c.h.b16 %v5660
  %v5718 = vunpack.c.l.b16 %v5661
  %v5719 = vunpack.c.h.b16 %v5661
  %v5720 = vunpack.c.l.b16 %v5662
  %v5721 = vunpack.c.h.b16 %v5662
  %v5722 = vunpack.c.l.b16 %v5663
  %v5723 = vunpack.c.h.b16 %v5663
  %v5724 = vpack.c.b16 %v5694, %v5692
  %v5725 = vpack.c.b16 %v5695, %v5693
  %v5726 = vpack.c.b16 %v5698, %v5696
  %v5727 = vpack.c.b16 %v5699, %v5697
  %v5728 = vpack.c.b16 %v5702, %v5700
  %v5729 = vpack.c.b16 %v5703, %v5701
  %v5730 = vpack.c.b16 %v5706, %v5704
  %v5731 = vpack.c.b16 %v5707, %v5705
  %v5732 = vpack.c.b16 %v5710, %v5708
  %v5733 = vpack.c.b16 %v5711, %v5709
  %v5734 = vpack.c.b16 %v5714, %v5712
  %v5735 = vpack.c.b16 %v5715, %v5713
  %v5736 = vpack.c.b16 %v5718, %v5716
  %v5737 = vpack.c.b16 %v5719, %v5717
  %v5738 = vpack.c.b16 %v5722, %v5720
  %v5739 = vpack.c.b16 %v5723, %v5721
  %5756 = vmatprep.subr.bf16.mxu0 %v5725
  %5757 = vmatpush1.bf16.msra.mxu0 %v5724
  %5758 = vmatprep.subr.bf16.mxu0 %v5727
  %5759 = vmatpush1.bf16.msra.mxu0 %v5726
  %5760 = vmatprep.subr.bf16.mxu0 %v5729
  %5761 = vmatpush1.bf16.msra.mxu0 %v5728
  %5762 = vmatprep.subr.bf16.mxu0 %v5731
  %5763 = vmatpush1.bf16.msra.mxu0 %v5730
  %5764 = vmatprep.subr.bf16.mxu0 %v5733
  %5765 = vmatpush1.bf16.msra.mxu0 %v5732
  %5766 = vmatprep.subr.bf16.mxu0 %v5735
  %5767 = vmatpush1.bf16.msra.mxu0 %v5734
  %5768 = vmatprep.subr.bf16.mxu0 %v5737
  %5769 = vmatpush1.bf16.msra.mxu0 %v5736
  %5770 = vmatprep.subr.bf16.mxu0 %v5739
  %5771 = vmatpush1.bf16.msra.mxu0 %v5738
  %5772 = vmatprep.subr.bf16.mxu0 0
  %5773 = vmatpush1.bf16.msra.mxu0 0
  %5774 = vmatprep.subr.bf16.mxu0 0
  %5775 = vmatpush1.bf16.msra.mxu0 0
  %5776 = vmatprep.subr.bf16.mxu0 0
  %5777 = vmatpush1.bf16.msra.mxu0 0
  %5778 = vmatprep.subr.bf16.mxu0 0
  %5779 = vmatpush1.bf16.msra.mxu0 0
  %5780 = vmatprep.subr.bf16.mxu0 0
  %5781 = vmatpush1.bf16.msra.mxu0 0
  %5782 = vmatprep.subr.bf16.mxu0 0
  %5783 = vmatpush1.bf16.msra.mxu0 0
  %5784 = vmatprep.subr.bf16.mxu0 0
  %5785 = vmatpush1.bf16.msra.mxu0 0
  %5786 = vmatprep.subr.bf16.mxu0 0
  %5787 = vmatpush1.bf16.msra.mxu0 0
  %5788 = vmatprep.mubr.bf16.mxu0 0
  %5789 = vmatmul.mubr.bf16.gmra.mrb[0].mxu0 %v5647
  %v5790 = vpop.f32.mrb[0].mxu0
  %v5791 = vadd.f32 %v5669, %v5790
  %v5792 = vpop.f32.mrb[0].mxu0
  %v5793 = vadd.f32 %v5673, %v5792
  %v5794 = vpop.f32.mrb[0].mxu0
  %v5795 = vpop.f32.mrb[0].mxu0
  %5796 = vdwg.mxu0
  %v5797 = vmax.f32 %v5791, 0.0
  %v5798 = vmax.f32 %v5793, 0.0
  %v5799 = vpack.c.bf16 %v5797, %v5797
  %v5800 = vpack.c.bf16 %v5798, %v5798
  %v5801 = vld [vmem:[%s18] sm:$0xf]
  %v5802 = vld [vmem:[%s18 + $0x4] sm:$0xf]
  %v5803 = vld [vmem:[%s18 + $0x8] sm:$0xf]
  %v5804 = vld [vmem:[%s18 + $0xc] sm:$0xf]
  %v5805 = vld [vmem:[%s18 + $0x10] sm:$0xf]
  %v5806 = vld [vmem:[%s18 + $0x14] sm:$0xf]
  %v5807 = vld [vmem:[%s18 + $0x18] sm:$0xf]
  %v5808 = vld [vmem:[%s18 + $0x1c] sm:$0xf]
  %v5809 = vld [vmem:[%s18 + $0x20] sm:$0xf]
  %v5810 = vld [vmem:[%s18 + $0x24] sm:$0xf]
  %v5811 = vld [vmem:[%s18 + $0x28] sm:$0xf]
  %v5812 = vld [vmem:[%s18 + $0x2c] sm:$0xf]
  %v5813 = vld [vmem:[%s18 + $0x30] sm:$0xf]
  %v5814 = vld [vmem:[%s18 + $0x34] sm:$0xf]
  %v5815 = vld [vmem:[%s18 + $0x38] sm:$0xf]
  %v5816 = vld [vmem:[%s18 + $0x3c] sm:$0xf]
  %v5817 = vld [vmem:[%s18 + $0x40] sm:$0xf]
  %v5818 = vld [vmem:[%s18 + $0x44] sm:$0xf]
  %v5819 = vld [vmem:[%s18 + $0x48] sm:$0xf]
  %v5820 = vld [vmem:[%s18 + $0x4c] sm:$0xf]
  %v5821 = vld [vmem:[%s18 + $0x50] sm:$0xf]
  %v5822 = vld [vmem:[%s18 + $0x54] sm:$0xf]
  %v5823 = vld [vmem:[%s18 + $0x58] sm:$0xf]
  %v5824 = vld [vmem:[%s18 + $0x5c] sm:$0xf]
  %v5825 = vld [vmem:[%s18 + $0x60] sm:$0xf]
  %v5826 = vld [vmem:[%s18 + $0x64] sm:$0xf]
  %v5827 = vld [vmem:[%s18 + $0x68] sm:$0xf]
  %v5828 = vld [vmem:[%s18 + $0x6c] sm:$0xf]
  %v5829 = vld [vmem:[%s18 + $0x70] sm:$0xf]
  %v5830 = vld [vmem:[%s18 + $0x74] sm:$0xf]
  %v5831 = vld [vmem:[%s18 + $0x78] sm:$0xf]
  %v5832 = vld [vmem:[%s18 + $0x7c] sm:$0xf]
  %v5833 = vld [vmem:[%s19] sm:$0x1]
  %v5835 = vlaneseq
  %v5836 = vshrl.u32 %v5835, 7
  %v5837 = vsub.s32 0, %v5836
  %v5838 = vrot.slane %v5833, %v5837
  %v5872 = vunpack.c.l.b16 %v5801
  %v5873 = vunpack.c.l.b16 %v5802
  %v5874 = vunpack.c.l.b16 %v5803
  %v5875 = vunpack.c.l.b16 %v5804
  %v5876 = vunpack.c.l.b16 %v5805
  %v5877 = vunpack.c.l.b16 %v5806
  %v5878 = vunpack.c.l.b16 %v5807
  %v5879 = vunpack.c.l.b16 %v5808
  %v5880 = vunpack.c.l.b16 %v5809
  %v5881 = vunpack.c.l.b16 %v5810
  %v5882 = vunpack.c.l.b16 %v5811
  %v5883 = vunpack.c.l.b16 %v5812
  %v5884 = vunpack.c.l.b16 %v5813
  %v5885 = vunpack.c.l.b16 %v5814
  %v5886 = vunpack.c.l.b16 %v5815
  %v5887 = vunpack.c.l.b16 %v5816
  %v5888 = vunpack.c.l.b16 %v5817
  %v5889 = vunpack.c.l.b16 %v5818
  %v5890 = vunpack.c.l.b16 %v5819
  %v5891 = vunpack.c.l.b16 %v5820
  %v5892 = vunpack.c.l.b16 %v5821
  %v5893 = vunpack.c.l.b16 %v5822
  %v5894 = vunpack.c.l.b16 %v5823
  %v5895 = vunpack.c.l.b16 %v5824
  %v5896 = vunpack.c.l.b16 %v5825
  %v5897 = vunpack.c.l.b16 %v5826
  %v5898 = vunpack.c.l.b16 %v5827
  %v5899 = vunpack.c.l.b16 %v5828
  %v5900 = vunpack.c.l.b16 %v5829
  %v5901 = vunpack.c.l.b16 %v5830
  %v5902 = vunpack.c.l.b16 %v5831
  %v5903 = vunpack.c.l.b16 %v5832
  %v5904 = vpack.c.b16 %v5873, %v5872
  %v5905 = vpack.c.b16 %v5875, %v5874
  %v5906 = vpack.c.b16 %v5877, %v5876
  %v5907 = vpack.c.b16 %v5879, %v5878
  %v5908 = vpack.c.b16 %v5881, %v5880
  %v5909 = vpack.c.b16 %v5883, %v5882
  %v5910 = vpack.c.b16 %v5885, %v5884
  %v5911 = vpack.c.b16 %v5887, %v5886
  %v5912 = vpack.c.b16 %v5889, %v5888
  %v5913 = vpack.c.b16 %v5891, %v5890
  %v5914 = vpack.c.b16 %v5893, %v5892
  %v5915 = vpack.c.b16 %v5895, %v5894
  %v5916 = vpack.c.b16 %v5897, %v5896
  %v5917 = vpack.c.b16 %v5899, %v5898
  %v5918 = vpack.c.b16 %v5901, %v5900
  %v5919 = vpack.c.b16 %v5903, %v5902
  %5936 = vmatprep.subr.bf16.mxu0 0
  %5937 = vmatpush1.bf16.msra.mxu0 %v5904
  %5938 = vmatprep.subr.bf16.mxu0 0
  %5939 = vmatpush1.bf16.msra.mxu0 %v5905
  %5940 = vmatprep.subr.bf16.mxu0 0
  %5941 = vmatpush1.bf16.msra.mxu0 %v5906
  %5942 = vmatprep.subr.bf16.mxu0 0
  %5943 = vmatpush1.bf16.msra.mxu0 %v5907
  %5944 = vmatprep.subr.bf16.mxu0 0
  %5945 = vmatpush1.bf16.msra.mxu0 %v5908
  %5946 = vmatprep.subr.bf16.mxu0 0
  %5947 = vmatpush1.bf16.msra.mxu0 %v5909
  %5948 = vmatprep.subr.bf16.mxu0 0
  %5949 = vmatpush1.bf16.msra.mxu0 %v5910
  %5950 = vmatprep.subr.bf16.mxu0 0
  %5951 = vmatpush1.bf16.msra.mxu0 %v5911
  %5952 = vmatprep.subr.bf16.mxu0 0
  %5953 = vmatpush1.bf16.msra.mxu0 %v5912
  %5954 = vmatprep.subr.bf16.mxu0 0
  %5955 = vmatpush1.bf16.msra.mxu0 %v5913
  %5956 = vmatprep.subr.bf16.mxu0 0
  %5957 = vmatpush1.bf16.msra.mxu0 %v5914
  %5958 = vmatprep.subr.bf16.mxu0 0
  %5959 = vmatpush1.bf16.msra.mxu0 %v5915
  %5960 = vmatprep.subr.bf16.mxu0 0
  %5961 = vmatpush1.bf16.msra.mxu0 %v5916
  %5962 = vmatprep.subr.bf16.mxu0 0
  %5963 = vmatpush1.bf16.msra.mxu0 %v5917
  %5964 = vmatprep.subr.bf16.mxu0 0
  %5965 = vmatpush1.bf16.msra.mxu0 %v5918
  %5966 = vmatprep.subr.bf16.mxu0 0
  %5967 = vmatpush1.bf16.msra.mxu0 %v5919
  %5968 = vmatprep.mubr.bf16.mxu0 %v5800
  %5969 = vmatmul.mubr.bf16.gmra.mrb[0].mxu0 %v5799
  %v5970 = vpop.f32.mrb[0].mxu0
  %v5971 = vadd.f32 %v5838, %v5970
  %v5972 = vpop.f32.mrb[0].mxu0
  %v5973 = vpop.f32.mrb[0].mxu0
  %v5974 = vpop.f32.mrb[0].mxu0
  %5975 = vdwg.mxu0
  %5976 = vst [vmem:[%s20] sm:$0x3] %v5971
  // Predicated region
  $region82: #{policy_value_forward.1} parent=0 // pred_check
    _
  $region83: #{policy_value_forward.1} parent=0 // pred_check_branch
    %5978 = sbr.rel (0) target = $region85
  $region84: #{policy_value_forward.1} parent=0 // pred_region
    _
  $region85: #{policy_value_forward.1} parent=0 // pred_fallthru
    _
  // Predicated region
  $region86: #{policy_value_forward.1} parent=0 // pred_check
    _
  $region87: #{policy_value_forward.1} parent=0 // pred_check_branch
    %5980 = sbr.rel (0) target = $region89
  $region88: #{policy_value_forward.1} parent=0 // pred_region
    _
  $region89: #{policy_value_forward.1} parent=0 // pred_fallthru
    _

</llo_original>
